<compile_context>
chip_gen: v6e
topology: v6e:2x2x1
jax: 0.10.0
libtpu: 0.0.40
codegen_flags: <defaults>
</compile_context>

<pallas_src>
import numpy as np

import jax
import jax.numpy as jnp
from jax.experimental import pallas as pl
from jax.experimental.pallas import tpu as pltpu

VMEM = pltpu.MemorySpace.VMEM
HALO = 128  # lane-aligned halo of the in-kernel conv shift buffer (>= W+1)


def _ceil_to(x, m):
    return (x + m - 1) // m * m


def _bf16_round(a):
    # Round values to bf16 so kernel (bf16 weights) and reference use identical numbers.
    return np.asarray(jnp.asarray(a, jnp.float32).astype(jnp.bfloat16).astype(jnp.float32))


# ------------------- trace-time constants (numpy, static) -------------------

def _avgpool_matrix(n, h, w):
    """(S, S//4) matrix implementing F.avg_pool2d(kernel_size=2, stride=2)."""
    ho, wo = h // 2, w // 2
    s = n * h * w
    idx = np.arange(s)
    nn = idx // (h * w)
    hh = (idx // w) % h
    ww = idx % w
    tgt = nn * ho * wo + (hh // 2) * wo + (ww // 2)
    p = np.zeros((s, n * ho * wo), np.float32)
    p[idx, tgt] = 0.25
    return p


def _global_pool_matrix(n, h, w):
    """(S, N) matrix implementing adaptive_avg_pool2d(output_size=1)."""
    s = n * h * w
    idx = np.arange(s)
    p = np.zeros((s, n), np.float32)
    p[idx, idx // (h * w)] = 1.0 / (h * w)
    return p


# ------------------------------ parameter setup -----------------------------

def _conv3x3_w(key, cin, cout):
    # nn.init.kaiming_normal_(mode='fan_out'); stored as (kh, kw, Cout, Cin).
    std = (2.0 / (cout * 9)) ** 0.5
    w = jax.random.normal(key, (3, 3, cout, cin), jnp.float32) * std
    return _bf16_round(w)


def _conv1x1_w(key, cin, cout):
    std = (2.0 / cout) ** 0.5
    w = jax.random.normal(key, (cout, cin), jnp.float32) * std
    return _bf16_round(w)


def _bn_folded(c, eps=1e-5):
    # Inference-mode BatchNorm2d folded to a per-channel affine. PyTorch defaults
    # + initialize_weights: gamma=1, beta=0, running_mean=0, running_var=1.
    gamma = np.ones((c, 1), np.float32)
    beta = np.zeros((c, 1), np.float32)
    mean = np.zeros((c, 1), np.float32)
    var = np.ones((c, 1), np.float32)
    scale = gamma / np.sqrt(var + eps)
    bias = beta - mean * scale
    return scale, bias


def build_params(key, config):
    """Logical (un-padded) parameters matching the PyTorch module structure."""
    growth = config['growth_rate']
    depth = config['depth']
    comp = config['compression_rate']
    assert config['block_type'] == 'basic'
    n_blocks = (depth - 4) // 3
    assert n_blocks * 3 + 4 == depth

    params = {}
    in_ch = 2 * growth
    key, k = jax.random.split(key)
    params['conv0_w'] = _conv3x3_w(k, config['input_shape'][1], in_ch)

    stages = []
    for stage_idx in range(3):
        blocks = []
        for _ in range(n_blocks):
            key, k = jax.random.split(key)
            scale, bias = _bn_folded(in_ch)
            blocks.append({'scale': scale, 'bias': bias,
                           'w': _conv3x3_w(k, in_ch, growth)})
            in_ch += growth
        trans = None
        if stage_idx < 2:
            out_ch = int(in_ch * comp)
            key, k = jax.random.split(key)
            scale, bias = _bn_folded(in_ch)
            trans = {'scale': scale, 'bias': bias,
                     'w': _conv1x1_w(k, in_ch, out_ch)}
            in_ch = out_ch
        stages.append({'blocks': blocks, 'trans': trans})
    params['stages'] = stages

    scale, bias = _bn_folded(in_ch)
    params['bn_scale'], params['bn_bias'] = scale, bias
    key, k = jax.random.split(key)
    params['fc_w'] = np.asarray(
        jax.random.normal(k, (config['n_classes'], in_ch), jnp.float32)) * 0.05
    params['fc_b'] = np.zeros((config['n_classes'], 1), np.float32)
    return params


# --------------------- kernel-layout parameter preparation -------------------

def prepare_kernel_params(params, config):
    """Pad channels to sublane-aligned counts and pre-stack the 3x3 weights."""
    n, cin0, h0, w0 = config['input_shape']
    growth = config['growth_rate']
    assert growth % 8 == 0, "growth_rate must be a multiple of 8 for this kernel"
    c0 = 2 * growth
    cin0_pad = _ceil_to(cin0, 16)   # 16-aligned: keeps bf16 sublane tiles aligned

    def scatter_rows(a, positions, rows):
        out = np.zeros((rows,) + a.shape[1:], np.float32)
        out[np.asarray(positions)] = a
        return out

    def stack_conv_w(w, col_positions, cin_pad):
        # w: (3, 3, cout, cin_logical) -> (cout, 9*cin_pad) bf16, tap-major K.
        cout = w.shape[2]
        wp = np.zeros((3, 3, cout, cin_pad), np.float32)
        wp[:, :, :, np.asarray(col_positions)] = w
        return jnp.asarray(wp.transpose(2, 0, 1, 3).reshape(cout, 9 * cin_pad),
                           jnp.bfloat16)

    conv0_w = stack_conv_w(np.asarray(params['conv0_w'], np.float32),
                           list(range(cin0)), cin0_pad)

    bundle_stages = []
    stage_dims = []
    h, w = h0, w0
    positions = list(range(c0))   # physical rows of the real (logical) channels
    c_pad = c0                    # physical row count of the current activation
    max_conv_cin = cin0_pad
    for st in params['stages']:
        stage_dims.append((h, w))
        blocks = []
        for blk in st['blocks']:
            scale = scatter_rows(blk['scale'], positions, c_pad)
            bias = scatter_rows(blk['bias'], positions, c_pad)
            wst = stack_conv_w(np.asarray(blk['w'], np.float32), positions, c_pad)
            blocks.append({'scale': jnp.asarray(scale), 'bias': jnp.asarray(bias),
                           'w': wst})
            max_conv_cin = max(max_conv_cin, c_pad)
            positions = positions + list(range(c_pad, c_pad + growth))
            c_pad += growth
        trans = None
        if st['trans'] is not None:
            tr = st['trans']
            scale = scatter_rows(tr['scale'], positions, c_pad)
            bias = scatter_rows(tr['bias'], positions, c_pad)
            wt = np.asarray(tr['w'], np.float32)       # (out_real, in_real)
            out_real = wt.shape[0]
            out_pad = _ceil_to(out_real, 8)
            wp = np.zeros((out_pad, c_pad), np.float32)
            wp[:out_real, np.asarray(positions)] = wt  # padded rows/cols stay 0
            trans = {'scale': jnp.asarray(scale), 'bias': jnp.asarray(bias),
                     'w': jnp.asarray(wp, jnp.bfloat16),
                     'pool': jnp.asarray(_avgpool_matrix(n, h, w), jnp.bfloat16)}
            positions = list(range(out_real))
            c_pad = out_pad
            h, w = h // 2, w // 2
        bundle_stages.append({'blocks': blocks, 'trans': trans})

    bn_scale = scatter_rows(params['bn_scale'], positions, c_pad)
    bn_bias = scatter_rows(params['bn_bias'], positions, c_pad)
    fc_w = np.zeros((params['fc_w'].shape[0], c_pad), np.float32)
    fc_w[:, np.asarray(positions)] = params['fc_w']

    bundle = {'conv0_w': conv0_w, 'stages': bundle_stages,
              'bn_scale': jnp.asarray(bn_scale), 'bn_bias': jnp.asarray(bn_bias),
              'fc_w': jnp.asarray(fc_w), 'fc_b': jnp.asarray(params['fc_b']),
              'gpool': jnp.asarray(_global_pool_matrix(n, h, w), jnp.bfloat16)}
    meta = {'stage_dims': stage_dims, 'cin0_pad': cin0_pad,
            'max_conv_cin': max_conv_cin}
    return bundle, meta


# --------------------------------- forward ----------------------------------

def make_forward(bundle, meta, config):
    n, cin0, h0, w0 = config['input_shape']
    n_classes = config['n_classes']
    s0 = n * h0 * w0
    cin0_pad = meta['cin0_pad']
    stage_dims = meta['stage_dims']
    buf_rows = meta['max_conv_cin']
    assert HALO >= w0 + 1

    leaves, treedef = jax.tree_util.tree_flatten(bundle)
    n_leaves = len(leaves)

    def kernel(*refs):
        x_ref = refs[0]
        out_ref = refs[1 + n_leaves]
        buf_ref = refs[2 + n_leaves]          # bf16 shift scratch (never zeroed)
        net = jax.tree_util.tree_unflatten(treedef, refs[1:1 + n_leaves])

        def bn_relu(v, scale_ref, bias_ref):
            # Folded inference-mode BatchNorm + ReLU (f32 VPU work).
            return jnp.maximum(v * scale_ref[...] + bias_ref[...], 0.0)

        def conv3x3(v, w_ref, h, w):
            # v: (cin_pad, S) f32; w_ref: (cout, 9*cin_pad) bf16 (stacked taps).
            # stride 1 / padding 1 / no bias, as ONE stacked-K MXU dot.
            cin, s = v.shape
            vb = v.astype(jnp.bfloat16)
            buf_ref[0:cin, HALO:HALO + s] = vb          # lane-aligned interior store
            lane = jax.lax.broadcasted_iota(jnp.int32, (cin, s), 1)
            if (h & (h - 1)) == 0 and (w & (w - 1)) == 0:
                hh = (lane >> int(np.log2(w))) & (h - 1)
                ww = lane & (w - 1)
            else:
                hh = (lane // w) % h
                ww = lane % w
            pieces = []
            for kh in range(3):
                for kw in range(3):
                    dh, dw = kh - 1, kw - 1
                    off = dh * w + dw
                    if off == 0:
                        pieces.append(vb)
                        continue
                    shifted = buf_ref[0:cin, HALO + off:HALO + off + s]
                    conds = []
                    if dh < 0:
                        conds.append(hh >= -dh)
                    if dh > 0:
                        conds.append(hh < h - dh)
                    if dw < 0:
                        conds.append(ww >= -dw)
                    if dw > 0:
                        conds.append(ww < w - dw)
                    valid = conds[0]
                    for c in conds[1:]:
                        valid = jnp.logical_and(valid, c)
                    # where-select also discards any stale halo bits (incl. NaN).
                    pieces.append(jnp.where(valid, shifted, 0.0))
            stacked = jnp.concatenate(pieces, axis=0)   # (9*cin, S) bf16
            return jnp.dot(w_ref[...], stacked, preferred_element_type=jnp.float32)

        # initial 3x3 conv (no BN/ReLU before it)
        h, w = stage_dims[0]
        act = conv3x3(x_ref[...], net['conv0_w'], h, w)

        for si, stage in enumerate(net['stages']):
            h, w = stage_dims[si]
            x_in = act
            for blk in stage['blocks']:                  # BasicBlock
                pre = bn_relu(x_in, blk['scale'], blk['bias'])
                y = conv3x3(pre, blk['w'], h, w)
                # drop_rate == 0 -> dropout is identity.
                # Dense connection (torch.cat along channels) stays in vregs.
                x_in = jnp.concatenate([x_in, y], axis=0)
            act = x_in
            tr = stage['trans']
            if tr is not None:                           # TransitionBlock
                pre = bn_relu(act, tr['scale'], tr['bias']).astype(jnp.bfloat16)
                y = jnp.dot(tr['w'][...], pre,           # 1x1 conv
                            preferred_element_type=jnp.float32)
                act = jnp.dot(y.astype(jnp.bfloat16), tr['pool'][...],  # 2x2 avg pool
                              preferred_element_type=jnp.float32)

        act = bn_relu(act, net['bn_scale'], net['bn_bias'])   # F.relu(self.bn(x))
        pooled = jnp.dot(act.astype(jnp.bfloat16), net['gpool'][...],
                         preferred_element_type=jnp.float32)  # (C_pad, N)
        logits = jnp.dot(net['fc_w'][...], pooled,            # fc
                         preferred_element_type=jnp.float32) + net['fc_b'][...]
        out_ref[...] = logits                                  # (n_classes, N)

    pallas_fn = pl.pallas_call(
        kernel,
        out_shape=jax.ShapeDtypeStruct((n_classes, n), jnp.float32),
        in_specs=[pl.BlockSpec(memory_space=VMEM)] * (1 + n_leaves),
        out_specs=pl.BlockSpec(memory_space=VMEM),
        scratch_shapes=[
            pltpu.VMEM((buf_rows, HALO + s0 + HALO), jnp.bfloat16),
        ],
    )

    def forward(x_nchw):
        # NCHW -> (C_pad, N*H*W): channels on sublanes, spatial on the lane axis.
        x = jnp.transpose(x_nchw, (1, 0, 2, 3)).reshape(cin0, s0)
        if cin0_pad > cin0:
            x = jnp.pad(x, ((0, cin0_pad - cin0), (0, 0)))
        out = pallas_fn(x, *leaves)
        return out.T                                          # (N, n_classes)

    return forward


# --------------------------- pure-JAX reference ------------------------------

def reference_forward(params, x):
    x = x.astype(jnp.float32)

    def conv3x3(x, w):
        w_oihw = jnp.transpose(jnp.asarray(w, jnp.float32), (2, 3, 0, 1))
        return jax.lax.conv_general_dilated(
            x, w_oihw, window_strides=(1, 1), padding=((1, 1), (1, 1)),
            dimension_numbers=('NCHW', 'OIHW', 'NCHW'),
            precision=jax.lax.Precision.HIGHEST)

    def bn_relu(x, scale, bias):
        s = jnp.asarray(scale, jnp.float32).reshape(1, -1, 1, 1)
        b = jnp.asarray(bias, jnp.float32).reshape(1, -1, 1, 1)
        return jnp.maximum(x * s + b, 0.0)

    y = conv3x3(x, params['conv0_w'])
    for st in params['stages']:
        for blk in st['blocks']:
            out = conv3x3(bn_relu(y, blk['scale'], blk['bias']), blk['w'])
            y = jnp.concatenate([y, out], axis=1)
        if st['trans'] is not None:
            tr = st['trans']
            t = bn_relu(y, tr['scale'], tr['bias'])
            w11 = jnp.asarray(tr['w'], jnp.float32)
            t = jnp.einsum('oc,nchw->nohw', w11, t,
                           precision=jax.lax.Precision.HIGHEST)
            nn_, cc_, hh_, ww_ = t.shape
            y = t.reshape(nn_, cc_, hh_ // 2, 2, ww_ // 2, 2).mean(axis=(3, 5))
    y = bn_relu(y, params['bn_scale'], params['bn_bias'])
    pooled = y.mean(axis=(2, 3))                              # (N, C)
    logits = pooled @ jnp.asarray(params['fc_w'], jnp.float32).T
    logits = logits + jnp.asarray(params['fc_b'], jnp.float32)[:, 0][None, :]
    return logits


# ----------------------------------- main ------------------------------------

if __name__ == "__main__":
    config = {
        'input_shape': (2, 4, 16, 16),
        'n_classes': 10,
        'block_type': 'basic',
        'depth': 7,                 # -> 1 BasicBlock per stage
        'growth_rate': 8,
        'drop_rate': 0.0,
        'compression_rate': 0.5,
        'dropway': 'none',
        'p': 0.0,
    }

    key = jax.random.PRNGKey(0)
    pkey, xkey = jax.random.split(key)
    params = build_params(pkey, config)
    x = jax.random.normal(xkey, config['input_shape'], jnp.float32)

    bundle, meta = prepare_kernel_params(params, config)
    forward = make_forward(bundle, meta, config)

    logits = jax.block_until_ready(jax.jit(forward)(x))

    assert logits.shape == (config['input_shape'][0], config['n_classes'])
    assert bool(jnp.all(jnp.isfinite(logits)))

    # Tolerance-asserted reference comparison (kernel uses bf16 MXU operands).
    ref = jax.block_until_ready(reference_forward(params, x))
    np.testing.assert_allclose(np.asarray(logits), np.asarray(ref),
                               rtol=5e-2, atol=2e-2)

    print("KERNEL_OK")
</pallas_src>

<mosaic_0001>
module attributes {stable_mosaic.version = 11 : i64} {
  func.func @kernel(%arg0: memref<16x512xf32, #tpu.memory_space<vmem>>, %arg1: memref<24x1xf32, #tpu.memory_space<vmem>>, %arg2: memref<24x1xf32, #tpu.memory_space<vmem>>, %arg3: memref<16x144xbf16, #tpu.memory_space<vmem>>, %arg4: memref<10x1xf32, #tpu.memory_space<vmem>>, %arg5: memref<10x24xf32, #tpu.memory_space<vmem>>, %arg6: memref<32x2xbf16, #tpu.memory_space<vmem>>, %arg7: memref<16x1xf32, #tpu.memory_space<vmem>>, %arg8: memref<16x1xf32, #tpu.memory_space<vmem>>, %arg9: memref<8x144xbf16, #tpu.memory_space<vmem>>, %arg10: memref<24x1xf32, #tpu.memory_space<vmem>>, %arg11: memref<512x128xbf16, #tpu.memory_space<vmem>>, %arg12: memref<24x1xf32, #tpu.memory_space<vmem>>, %arg13: memref<16x24xbf16, #tpu.memory_space<vmem>>, %arg14: memref<16x1xf32, #tpu.memory_space<vmem>>, %arg15: memref<16x1xf32, #tpu.memory_space<vmem>>, %arg16: memref<8x144xbf16, #tpu.memory_space<vmem>>, %arg17: memref<24x1xf32, #tpu.memory_space<vmem>>, %arg18: memref<128x32xbf16, #tpu.memory_space<vmem>>, %arg19: memref<24x1xf32, #tpu.memory_space<vmem>>, %arg20: memref<16x24xbf16, #tpu.memory_space<vmem>>, %arg21: memref<16x1xf32, #tpu.memory_space<vmem>>, %arg22: memref<16x1xf32, #tpu.memory_space<vmem>>, %arg23: memref<8x144xbf16, #tpu.memory_space<vmem>>, %arg24: memref<10x2xf32, #tpu.memory_space<vmem>>, %arg25: memref<16x768xbf16, #tpu.memory_space<vmem>>) attributes {dimension_semantics = [], scalar_prefetch = 0 : i64, scratch_operands = 1 : i64, tpu.core_type = #tpu.core_type<tc>} {
    %c0 = arith.constant 0 : index
    %c0_0 = arith.constant 0 : index
    %0 = vector.load %arg0[%c0, %c0_0] : memref<16x512xf32, #tpu.memory_space<vmem>>, vector<16x512xf32>
    %1 = arith.truncf %0 : vector<16x512xf32> to vector<16x512xbf16>
    %c0_1 = arith.constant 0 : index
    %c128 = arith.constant 128 : index
    %2 = vector.load %arg25[%c0_1, %c128] : memref<16x768xbf16, #tpu.memory_space<vmem>>, vector<16x512xbf16>
    tpu.vector_store %arg25[%c0_1, %c128], %1 {strides = array<i32>} : memref<16x768xbf16, #tpu.memory_space<vmem>>, vector<16x512xbf16>,
    %3 = tpu.iota {dimensions = array<i32: 1>} : vector<16x512xi32>
    %c4_i32 = arith.constant 4 : i32
    %4 = vector.broadcast %c4_i32 : i32 to vector<16x512xi32>
    %5 = arith.shrsi %3, %4 : vector<16x512xi32>
    %c15_i32 = arith.constant 15 : i32
    %6 = vector.broadcast %c15_i32 : i32 to vector<16x512xi32>
    %7 = arith.andi %5, %6 : vector<16x512xi32>
    %c15_i32_2 = arith.constant 15 : i32
    %8 = vector.broadcast %c15_i32_2 : i32 to vector<16x512xi32>
    %9 = arith.andi %3, %8 : vector<16x512xi32>
    %c0_3 = arith.constant 0 : index
    %c111 = arith.constant 111 : index
    %10 = vector.load %arg25[%c0_3, %c111] : memref<16x768xbf16, #tpu.memory_space<vmem>>, vector<16x512xbf16>
    %c1_i32 = arith.constant 1 : i32
    %11 = vector.broadcast %c1_i32 : i32 to vector<16x512xi32>
    %12 = arith.cmpi sge, %7, %11 : vector<16x512xi32>
    %c1_i32_4 = arith.constant 1 : i32
    %13 = vector.broadcast %c1_i32_4 : i32 to vector<16x512xi32>
    %14 = arith.cmpi sge, %9, %13 : vector<16x512xi32>
    %15 = arith.andi %12, %14 : vector<16x512xi1>
    %cst = arith.constant 0.000000e+00 : f32
    %16 = arith.truncf %cst : f32 to bf16
    %17 = vector.broadcast %16 : bf16 to vector<16x512xbf16>
    %18 = arith.select %15, %10, %17 : vector<16x512xi1>, vector<16x512xbf16>
    %c0_5 = arith.constant 0 : index
    %c112 = arith.constant 112 : index
    %19 = vector.load %arg25[%c0_5, %c112] : memref<16x768xbf16, #tpu.memory_space<vmem>>, vector<16x512xbf16>
    %c1_i32_6 = arith.constant 1 : i32
    %20 = vector.broadcast %c1_i32_6 : i32 to vector<16x512xi32>
    %21 = arith.cmpi sge, %7, %20 : vector<16x512xi32>
    %cst_7 = arith.constant 0.000000e+00 : f32
    %22 = arith.truncf %cst_7 : f32 to bf16
    %23 = vector.broadcast %22 : bf16 to vector<16x512xbf16>
    %24 = arith.select %21, %19, %23 : vector<16x512xi1>, vector<16x512xbf16>
    %c0_8 = arith.constant 0 : index
    %c113 = arith.constant 113 : index
    %25 = vector.load %arg25[%c0_8, %c113] : memref<16x768xbf16, #tpu.memory_space<vmem>>, vector<16x512xbf16>
    %c1_i32_9 = arith.constant 1 : i32
    %26 = vector.broadcast %c1_i32_9 : i32 to vector<16x512xi32>
    %27 = arith.cmpi sge, %7, %26 : vector<16x512xi32>
    %c15_i32_10 = arith.constant 15 : i32
    %28 = vector.broadcast %c15_i32_10 : i32 to vector<16x512xi32>
    %29 = arith.cmpi slt, %9, %28 : vector<16x512xi32>
    %30 = arith.andi %27, %29 : vector<16x512xi1>
    %cst_11 = arith.constant 0.000000e+00 : f32
    %31 = arith.truncf %cst_11 : f32 to bf16
    %32 = vector.broadcast %31 : bf16 to vector<16x512xbf16>
    %33 = arith.select %30, %25, %32 : vector<16x512xi1>, vector<16x512xbf16>
    %c0_12 = arith.constant 0 : index
    %c127 = arith.constant 127 : index
    %34 = vector.load %arg25[%c0_12, %c127] : memref<16x768xbf16, #tpu.memory_space<vmem>>, vector<16x512xbf16>
    %c1_i32_13 = arith.constant 1 : i32
    %35 = vector.broadcast %c1_i32_13 : i32 to vector<16x512xi32>
    %36 = arith.cmpi sge, %9, %35 : vector<16x512xi32>
    %cst_14 = arith.constant 0.000000e+00 : f32
    %37 = arith.truncf %cst_14 : f32 to bf16
    %38 = vector.broadcast %37 : bf16 to vector<16x512xbf16>
    %39 = arith.select %36, %34, %38 : vector<16x512xi1>, vector<16x512xbf16>
    %c0_15 = arith.constant 0 : index
    %c129 = arith.constant 129 : index
    %40 = vector.load %arg25[%c0_15, %c129] : memref<16x768xbf16, #tpu.memory_space<vmem>>, vector<16x512xbf16>
    %c15_i32_16 = arith.constant 15 : i32
    %41 = vector.broadcast %c15_i32_16 : i32 to vector<16x512xi32>
    %42 = arith.cmpi slt, %9, %41 : vector<16x512xi32>
    %cst_17 = arith.constant 0.000000e+00 : f32
    %43 = arith.truncf %cst_17 : f32 to bf16
    %44 = vector.broadcast %43 : bf16 to vector<16x512xbf16>
    %45 = arith.select %42, %40, %44 : vector<16x512xi1>, vector<16x512xbf16>
    %c0_18 = arith.constant 0 : index
    %c143 = arith.constant 143 : index
    %46 = vector.load %arg25[%c0_18, %c143] : memref<16x768xbf16, #tpu.memory_space<vmem>>, vector<16x512xbf16>
    %c15_i32_19 = arith.constant 15 : i32
    %47 = vector.broadcast %c15_i32_19 : i32 to vector<16x512xi32>
    %48 = arith.cmpi slt, %7, %47 : vector<16x512xi32>
    %c1_i32_20 = arith.constant 1 : i32
    %49 = vector.broadcast %c1_i32_20 : i32 to vector<16x512xi32>
    %50 = arith.cmpi sge, %9, %49 : vector<16x512xi32>
    %51 = arith.andi %48, %50 : vector<16x512xi1>
    %cst_21 = arith.constant 0.000000e+00 : f32
    %52 = arith.truncf %cst_21 : f32 to bf16
    %53 = vector.broadcast %52 : bf16 to vector<16x512xbf16>
    %54 = arith.select %51, %46, %53 : vector<16x512xi1>, vector<16x512xbf16>
    %c0_22 = arith.constant 0 : index
    %c144 = arith.constant 144 : index
    %55 = vector.load %arg25[%c0_22, %c144] : memref<16x768xbf16, #tpu.memory_space<vmem>>, vector<16x512xbf16>
    %c15_i32_23 = arith.constant 15 : i32
    %56 = vector.broadcast %c15_i32_23 : i32 to vector<16x512xi32>
    %57 = arith.cmpi slt, %7, %56 : vector<16x512xi32>
    %cst_24 = arith.constant 0.000000e+00 : f32
    %58 = arith.truncf %cst_24 : f32 to bf16
    %59 = vector.broadcast %58 : bf16 to vector<16x512xbf16>
    %60 = arith.select %57, %55, %59 : vector<16x512xi1>, vector<16x512xbf16>
    %c0_25 = arith.constant 0 : index
    %c145 = arith.constant 145 : index
    %61 = vector.load %arg25[%c0_25, %c145] : memref<16x768xbf16, #tpu.memory_space<vmem>>, vector<16x512xbf16>
    %c15_i32_26 = arith.constant 15 : i32
    %62 = vector.broadcast %c15_i32_26 : i32 to vector<16x512xi32>
    %63 = arith.cmpi slt, %7, %62 : vector<16x512xi32>
    %c15_i32_27 = arith.constant 15 : i32
    %64 = vector.broadcast %c15_i32_27 : i32 to vector<16x512xi32>
    %65 = arith.cmpi slt, %9, %64 : vector<16x512xi32>
    %66 = arith.andi %63, %65 : vector<16x512xi1>
    %cst_28 = arith.constant 0.000000e+00 : f32
    %67 = arith.truncf %cst_28 : f32 to bf16
    %68 = vector.broadcast %67 : bf16 to vector<16x512xbf16>
    %69 = arith.select %66, %61, %68 : vector<16x512xi1>, vector<16x512xbf16>
    %70 = tpu.concatenate %18, %24, %33, %39, %1, %45, %54, %60, %69 in 0 : vector<16x512xbf16>, vector<16x512xbf16>, vector<16x512xbf16>, vector<16x512xbf16>, vector<16x512xbf16>, vector<16x512xbf16>, vector<16x512xbf16>, vector<16x512xbf16>, vector<16x512xbf16> -> vector<144x512xbf16>
    %c0_29 = arith.constant 0 : index
    %c0_30 = arith.constant 0 : index
    %71 = vector.load %arg3[%c0_29, %c0_30] : memref<16x144xbf16, #tpu.memory_space<vmem>>, vector<16x144xbf16>
    %cst_31 = arith.constant dense<0.000000e+00> : vector<16x512xf32>
    %72 = tpu.matmul %71, %70, %cst_31 {dimension_numbers = #tpu.dot_dimension_numbers<[1], [0], [0], [1], [0, 0, 1, 1], [], []>} : vector<16x144xbf16>, vector<144x512xbf16>, vector<16x512xf32> -> vector<16x512xf32>
    %c0_32 = arith.constant 0 : index
    %c0_33 = arith.constant 0 : index
    %73 = vector.load %arg8[%c0_32, %c0_33] : memref<16x1xf32, #tpu.memory_space<vmem>>, vector<16x1xf32>
    %74 = vector.broadcast %73 : vector<16x1xf32> to vector<16x512xf32>
    %75 = arith.mulf %72, %74 : vector<16x512xf32>
    %c0_34 = arith.constant 0 : index
    %c0_35 = arith.constant 0 : index
    %76 = vector.load %arg7[%c0_34, %c0_35] : memref<16x1xf32, #tpu.memory_space<vmem>>, vector<16x1xf32>
    %77 = vector.broadcast %76 : vector<16x1xf32> to vector<16x512xf32>
    %78 = arith.addf %75, %77 : vector<16x512xf32>
    %cst_36 = arith.constant 0.000000e+00 : f32
    %79 = vector.broadcast %cst_36 : f32 to vector<16x512xf32>
    %80 = arith.maximumf %78, %79 : vector<16x512xf32>
    %81 = arith.truncf %80 : vector<16x512xf32> to vector<16x512xbf16>
    %c0_37 = arith.constant 0 : index
    %c128_38 = arith.constant 128 : index
    %82 = vector.load %arg25[%c0_37, %c128_38] : memref<16x768xbf16, #tpu.memory_space<vmem>>, vector<16x512xbf16>
    tpu.vector_store %arg25[%c0_37, %c128_38], %81 {strides = array<i32>} : memref<16x768xbf16, #tpu.memory_space<vmem>>, vector<16x512xbf16>,
    %83 = tpu.iota {dimensions = array<i32: 1>} : vector<16x512xi32>
    %c4_i32_39 = arith.constant 4 : i32
    %84 = vector.broadcast %c4_i32_39 : i32 to vector<16x512xi32>
    %85 = arith.shrsi %83, %84 : vector<16x512xi32>
    %c15_i32_40 = arith.constant 15 : i32
    %86 = vector.broadcast %c15_i32_40 : i32 to vector<16x512xi32>
    %87 = arith.andi %85, %86 : vector<16x512xi32>
    %c15_i32_41 = arith.constant 15 : i32
    %88 = vector.broadcast %c15_i32_41 : i32 to vector<16x512xi32>
    %89 = arith.andi %83, %88 : vector<16x512xi32>
    %c0_42 = arith.constant 0 : index
    %c111_43 = arith.constant 111 : index
    %90 = vector.load %arg25[%c0_42, %c111_43] : memref<16x768xbf16, #tpu.memory_space<vmem>>, vector<16x512xbf16>
    %c1_i32_44 = arith.constant 1 : i32
    %91 = vector.broadcast %c1_i32_44 : i32 to vector<16x512xi32>
    %92 = arith.cmpi sge, %87, %91 : vector<16x512xi32>
    %c1_i32_45 = arith.constant 1 : i32
    %93 = vector.broadcast %c1_i32_45 : i32 to vector<16x512xi32>
    %94 = arith.cmpi sge, %89, %93 : vector<16x512xi32>
    %95 = arith.andi %92, %94 : vector<16x512xi1>
    %cst_46 = arith.constant 0.000000e+00 : f32
    %96 = arith.truncf %cst_46 : f32 to bf16
    %97 = vector.broadcast %96 : bf16 to vector<16x512xbf16>
    %98 = arith.select %95, %90, %97 : vector<16x512xi1>, vector<16x512xbf16>
    %c0_47 = arith.constant 0 : index
    %c112_48 = arith.constant 112 : index
    %99 = vector.load %arg25[%c0_47, %c112_48] : memref<16x768xbf16, #tpu.memory_space<vmem>>, vector<16x512xbf16>
    %c1_i32_49 = arith.constant 1 : i32
    %100 = vector.broadcast %c1_i32_49 : i32 to vector<16x512xi32>
    %101 = arith.cmpi sge, %87, %100 : vector<16x512xi32>
    %cst_50 = arith.constant 0.000000e+00 : f32
    %102 = arith.truncf %cst_50 : f32 to bf16
    %103 = vector.broadcast %102 : bf16 to vector<16x512xbf16>
    %104 = arith.select %101, %99, %103 : vector<16x512xi1>, vector<16x512xbf16>
    %c0_51 = arith.constant 0 : index
    %c113_52 = arith.constant 113 : index
    %105 = vector.load %arg25[%c0_51, %c113_52] : memref<16x768xbf16, #tpu.memory_space<vmem>>, vector<16x512xbf16>
    %c1_i32_53 = arith.constant 1 : i32
    %106 = vector.broadcast %c1_i32_53 : i32 to vector<16x512xi32>
    %107 = arith.cmpi sge, %87, %106 : vector<16x512xi32>
    %c15_i32_54 = arith.constant 15 : i32
    %108 = vector.broadcast %c15_i32_54 : i32 to vector<16x512xi32>
    %109 = arith.cmpi slt, %89, %108 : vector<16x512xi32>
    %110 = arith.andi %107, %109 : vector<16x512xi1>
    %cst_55 = arith.constant 0.000000e+00 : f32
    %111 = arith.truncf %cst_55 : f32 to bf16
    %112 = vector.broadcast %111 : bf16 to vector<16x512xbf16>
    %113 = arith.select %110, %105, %112 : vector<16x512xi1>, vector<16x512xbf16>
    %c0_56 = arith.constant 0 : index
    %c127_57 = arith.constant 127 : index
    %114 = vector.load %arg25[%c0_56, %c127_57] : memref<16x768xbf16, #tpu.memory_space<vmem>>, vector<16x512xbf16>
    %c1_i32_58 = arith.constant 1 : i32
    %115 = vector.broadcast %c1_i32_58 : i32 to vector<16x512xi32>
    %116 = arith.cmpi sge, %89, %115 : vector<16x512xi32>
    %cst_59 = arith.constant 0.000000e+00 : f32
    %117 = arith.truncf %cst_59 : f32 to bf16
    %118 = vector.broadcast %117 : bf16 to vector<16x512xbf16>
    %119 = arith.select %116, %114, %118 : vector<16x512xi1>, vector<16x512xbf16>
    %c0_60 = arith.constant 0 : index
    %c129_61 = arith.constant 129 : index
    %120 = vector.load %arg25[%c0_60, %c129_61] : memref<16x768xbf16, #tpu.memory_space<vmem>>, vector<16x512xbf16>
    %c15_i32_62 = arith.constant 15 : i32
    %121 = vector.broadcast %c15_i32_62 : i32 to vector<16x512xi32>
    %122 = arith.cmpi slt, %89, %121 : vector<16x512xi32>
    %cst_63 = arith.constant 0.000000e+00 : f32
    %123 = arith.truncf %cst_63 : f32 to bf16
    %124 = vector.broadcast %123 : bf16 to vector<16x512xbf16>
    %125 = arith.select %122, %120, %124 : vector<16x512xi1>, vector<16x512xbf16>
    %c0_64 = arith.constant 0 : index
    %c143_65 = arith.constant 143 : index
    %126 = vector.load %arg25[%c0_64, %c143_65] : memref<16x768xbf16, #tpu.memory_space<vmem>>, vector<16x512xbf16>
    %c15_i32_66 = arith.constant 15 : i32
    %127 = vector.broadcast %c15_i32_66 : i32 to vector<16x512xi32>
    %128 = arith.cmpi slt, %87, %127 : vector<16x512xi32>
    %c1_i32_67 = arith.constant 1 : i32
    %129 = vector.broadcast %c1_i32_67 : i32 to vector<16x512xi32>
    %130 = arith.cmpi sge, %89, %129 : vector<16x512xi32>
    %131 = arith.andi %128, %130 : vector<16x512xi1>
    %cst_68 = arith.constant 0.000000e+00 : f32
    %132 = arith.truncf %cst_68 : f32 to bf16
    %133 = vector.broadcast %132 : bf16 to vector<16x512xbf16>
    %134 = arith.select %131, %126, %133 : vector<16x512xi1>, vector<16x512xbf16>
    %c0_69 = arith.constant 0 : index
    %c144_70 = arith.constant 144 : index
    %135 = vector.load %arg25[%c0_69, %c144_70] : memref<16x768xbf16, #tpu.memory_space<vmem>>, vector<16x512xbf16>
    %c15_i32_71 = arith.constant 15 : i32
    %136 = vector.broadcast %c15_i32_71 : i32 to vector<16x512xi32>
    %137 = arith.cmpi slt, %87, %136 : vector<16x512xi32>
    %cst_72 = arith.constant 0.000000e+00 : f32
    %138 = arith.truncf %cst_72 : f32 to bf16
    %139 = vector.broadcast %138 : bf16 to vector<16x512xbf16>
    %140 = arith.select %137, %135, %139 : vector<16x512xi1>, vector<16x512xbf16>
    %c0_73 = arith.constant 0 : index
    %c145_74 = arith.constant 145 : index
    %141 = vector.load %arg25[%c0_73, %c145_74] : memref<16x768xbf16, #tpu.memory_space<vmem>>, vector<16x512xbf16>
    %c15_i32_75 = arith.constant 15 : i32
    %142 = vector.broadcast %c15_i32_75 : i32 to vector<16x512xi32>
    %143 = arith.cmpi slt, %87, %142 : vector<16x512xi32>
    %c15_i32_76 = arith.constant 15 : i32
    %144 = vector.broadcast %c15_i32_76 : i32 to vector<16x512xi32>
    %145 = arith.cmpi slt, %89, %144 : vector<16x512xi32>
    %146 = arith.andi %143, %145 : vector<16x512xi1>
    %cst_77 = arith.constant 0.000000e+00 : f32
    %147 = arith.truncf %cst_77 : f32 to bf16
    %148 = vector.broadcast %147 : bf16 to vector<16x512xbf16>
    %149 = arith.select %146, %141, %148 : vector<16x512xi1>, vector<16x512xbf16>
    %150 = tpu.concatenate %98, %104, %113, %119, %81, %125, %134, %140, %149 in 0 : vector<16x512xbf16>, vector<16x512xbf16>, vector<16x512xbf16>, vector<16x512xbf16>, vector<16x512xbf16>, vector<16x512xbf16>, vector<16x512xbf16>, vector<16x512xbf16>, vector<16x512xbf16> -> vector<144x512xbf16>
    %c0_78 = arith.constant 0 : index
    %c0_79 = arith.constant 0 : index
    %151 = vector.load %arg9[%c0_78, %c0_79] : memref<8x144xbf16, #tpu.memory_space<vmem>>, vector<8x144xbf16>
    %cst_80 = arith.constant dense<0.000000e+00> : vector<8x512xf32>
    %152 = tpu.matmul %151, %150, %cst_80 {dimension_numbers = #tpu.dot_dimension_numbers<[1], [0], [0], [1], [0, 0, 1, 1], [], []>} : vector<8x144xbf16>, vector<144x512xbf16>, vector<8x512xf32> -> vector<8x512xf32>
    %153 = tpu.concatenate %72, %152 in 0 : vector<16x512xf32>, vector<8x512xf32> -> vector<24x512xf32>
    %c0_81 = arith.constant 0 : index
    %c0_82 = arith.constant 0 : index
    %154 = vector.load %arg12[%c0_81, %c0_82] : memref<24x1xf32, #tpu.memory_space<vmem>>, vector<24x1xf32>
    %155 = vector.broadcast %154 : vector<24x1xf32> to vector<24x512xf32>
    %156 = arith.mulf %153, %155 : vector<24x512xf32>
    %c0_83 = arith.constant 0 : index
    %c0_84 = arith.constant 0 : index
    %157 = vector.load %arg10[%c0_83, %c0_84] : memref<24x1xf32, #tpu.memory_space<vmem>>, vector<24x1xf32>
    %158 = vector.broadcast %157 : vector<24x1xf32> to vector<24x512xf32>
    %159 = arith.addf %156, %158 : vector<24x512xf32>
    %cst_85 = arith.constant 0.000000e+00 : f32
    %160 = vector.broadcast %cst_85 : f32 to vector<24x512xf32>
    %161 = arith.maximumf %159, %160 : vector<24x512xf32>
    %162 = arith.truncf %161 : vector<24x512xf32> to vector<24x512xbf16>
    %c0_86 = arith.constant 0 : index
    %c0_87 = arith.constant 0 : index
    %163 = vector.load %arg13[%c0_86, %c0_87] : memref<16x24xbf16, #tpu.memory_space<vmem>>, vector<16x24xbf16>
    %cst_88 = arith.constant dense<0.000000e+00> : vector<16x512xf32>
    %164 = tpu.matmul %163, %162, %cst_88 {dimension_numbers = #tpu.dot_dimension_numbers<[1], [0], [0], [1], [0, 0, 1, 1], [], []>} : vector<16x24xbf16>, vector<24x512xbf16>, vector<16x512xf32> -> vector<16x512xf32>
    %165 = arith.truncf %164 : vector<16x512xf32> to vector<16x512xbf16>
    %c0_89 = arith.constant 0 : index
    %c0_90 = arith.constant 0 : index
    %166 = vector.load %arg11[%c0_89, %c0_90] : memref<512x128xbf16, #tpu.memory_space<vmem>>, vector<512x128xbf16>
    %cst_91 = arith.constant dense<0.000000e+00> : vector<16x128xf32>
    %167 = tpu.matmul %165, %166, %cst_91 {dimension_numbers = #tpu.dot_dimension_numbers<[1], [0], [0], [1], [0, 0, 1, 1], [], []>} : vector<16x512xbf16>, vector<512x128xbf16>, vector<16x128xf32> -> vector<16x128xf32>
    %c0_92 = arith.constant 0 : index
    %c0_93 = arith.constant 0 : index
    %168 = vector.load %arg15[%c0_92, %c0_93] : memref<16x1xf32, #tpu.memory_space<vmem>>, vector<16x1xf32>
    %169 = vector.broadcast %168 : vector<16x1xf32> to vector<16x128xf32>
    %170 = arith.mulf %167, %169 : vector<16x128xf32>
    %c0_94 = arith.constant 0 : index
    %c0_95 = arith.constant 0 : index
    %171 = vector.load %arg14[%c0_94, %c0_95] : memref<16x1xf32, #tpu.memory_space<vmem>>, vector<16x1xf32>
    %172 = vector.broadcast %171 : vector<16x1xf32> to vector<16x128xf32>
    %173 = arith.addf %170, %172 : vector<16x128xf32>
    %cst_96 = arith.constant 0.000000e+00 : f32
    %174 = vector.broadcast %cst_96 : f32 to vector<16x128xf32>
    %175 = arith.maximumf %173, %174 : vector<16x128xf32>
    %176 = arith.truncf %175 : vector<16x128xf32> to vector<16x128xbf16>
    %c0_97 = arith.constant 0 : index
    %c128_98 = arith.constant 128 : index
    %177 = vector.load %arg25[%c0_97, %c128_98] : memref<16x768xbf16, #tpu.memory_space<vmem>>, vector<16x128xbf16>
    tpu.vector_store %arg25[%c0_97, %c128_98], %176 {strides = array<i32>} : memref<16x768xbf16, #tpu.memory_space<vmem>>, vector<16x128xbf16>,
    %178 = tpu.iota {dimensions = array<i32: 1>} : vector<16x128xi32>
    %c3_i32 = arith.constant 3 : i32
    %179 = vector.broadcast %c3_i32 : i32 to vector<16x128xi32>
    %180 = arith.shrsi %178, %179 : vector<16x128xi32>
    %c7_i32 = arith.constant 7 : i32
    %181 = vector.broadcast %c7_i32 : i32 to vector<16x128xi32>
    %182 = arith.andi %180, %181 : vector<16x128xi32>
    %c7_i32_99 = arith.constant 7 : i32
    %183 = vector.broadcast %c7_i32_99 : i32 to vector<16x128xi32>
    %184 = arith.andi %178, %183 : vector<16x128xi32>
    %c0_100 = arith.constant 0 : index
    %c119 = arith.constant 119 : index
    %185 = vector.load %arg25[%c0_100, %c119] : memref<16x768xbf16, #tpu.memory_space<vmem>>, vector<16x128xbf16>
    %c1_i32_101 = arith.constant 1 : i32
    %186 = vector.broadcast %c1_i32_101 : i32 to vector<16x128xi32>
    %187 = arith.cmpi sge, %182, %186 : vector<16x128xi32>
    %c1_i32_102 = arith.constant 1 : i32
    %188 = vector.broadcast %c1_i32_102 : i32 to vector<16x128xi32>
    %189 = arith.cmpi sge, %184, %188 : vector<16x128xi32>
    %190 = arith.andi %187, %189 : vector<16x128xi1>
    %cst_103 = arith.constant 0.000000e+00 : f32
    %191 = arith.truncf %cst_103 : f32 to bf16
    %192 = vector.broadcast %191 : bf16 to vector<16x128xbf16>
    %193 = arith.select %190, %185, %192 : vector<16x128xi1>, vector<16x128xbf16>
    %c0_104 = arith.constant 0 : index
    %c120 = arith.constant 120 : index
    %194 = vector.load %arg25[%c0_104, %c120] : memref<16x768xbf16, #tpu.memory_space<vmem>>, vector<16x128xbf16>
    %c1_i32_105 = arith.constant 1 : i32
    %195 = vector.broadcast %c1_i32_105 : i32 to vector<16x128xi32>
    %196 = arith.cmpi sge, %182, %195 : vector<16x128xi32>
    %cst_106 = arith.constant 0.000000e+00 : f32
    %197 = arith.truncf %cst_106 : f32 to bf16
    %198 = vector.broadcast %197 : bf16 to vector<16x128xbf16>
    %199 = arith.select %196, %194, %198 : vector<16x128xi1>, vector<16x128xbf16>
    %c0_107 = arith.constant 0 : index
    %c121 = arith.constant 121 : index
    %200 = vector.load %arg25[%c0_107, %c121] : memref<16x768xbf16, #tpu.memory_space<vmem>>, vector<16x128xbf16>
    %c1_i32_108 = arith.constant 1 : i32
    %201 = vector.broadcast %c1_i32_108 : i32 to vector<16x128xi32>
    %202 = arith.cmpi sge, %182, %201 : vector<16x128xi32>
    %c7_i32_109 = arith.constant 7 : i32
    %203 = vector.broadcast %c7_i32_109 : i32 to vector<16x128xi32>
    %204 = arith.cmpi slt, %184, %203 : vector<16x128xi32>
    %205 = arith.andi %202, %204 : vector<16x128xi1>
    %cst_110 = arith.constant 0.000000e+00 : f32
    %206 = arith.truncf %cst_110 : f32 to bf16
    %207 = vector.broadcast %206 : bf16 to vector<16x128xbf16>
    %208 = arith.select %205, %200, %207 : vector<16x128xi1>, vector<16x128xbf16>
    %c0_111 = arith.constant 0 : index
    %c127_112 = arith.constant 127 : index
    %209 = vector.load %arg25[%c0_111, %c127_112] : memref<16x768xbf16, #tpu.memory_space<vmem>>, vector<16x128xbf16>
    %c1_i32_113 = arith.constant 1 : i32
    %210 = vector.broadcast %c1_i32_113 : i32 to vector<16x128xi32>
    %211 = arith.cmpi sge, %184, %210 : vector<16x128xi32>
    %cst_114 = arith.constant 0.000000e+00 : f32
    %212 = arith.truncf %cst_114 : f32 to bf16
    %213 = vector.broadcast %212 : bf16 to vector<16x128xbf16>
    %214 = arith.select %211, %209, %213 : vector<16x128xi1>, vector<16x128xbf16>
    %c0_115 = arith.constant 0 : index
    %c129_116 = arith.constant 129 : index
    %215 = vector.load %arg25[%c0_115, %c129_116] : memref<16x768xbf16, #tpu.memory_space<vmem>>, vector<16x128xbf16>
    %c7_i32_117 = arith.constant 7 : i32
    %216 = vector.broadcast %c7_i32_117 : i32 to vector<16x128xi32>
    %217 = arith.cmpi slt, %184, %216 : vector<16x128xi32>
    %cst_118 = arith.constant 0.000000e+00 : f32
    %218 = arith.truncf %cst_118 : f32 to bf16
    %219 = vector.broadcast %218 : bf16 to vector<16x128xbf16>
    %220 = arith.select %217, %215, %219 : vector<16x128xi1>, vector<16x128xbf16>
    %c0_119 = arith.constant 0 : index
    %c135 = arith.constant 135 : index
    %221 = vector.load %arg25[%c0_119, %c135] : memref<16x768xbf16, #tpu.memory_space<vmem>>, vector<16x128xbf16>
    %c7_i32_120 = arith.constant 7 : i32
    %222 = vector.broadcast %c7_i32_120 : i32 to vector<16x128xi32>
    %223 = arith.cmpi slt, %182, %222 : vector<16x128xi32>
    %c1_i32_121 = arith.constant 1 : i32
    %224 = vector.broadcast %c1_i32_121 : i32 to vector<16x128xi32>
    %225 = arith.cmpi sge, %184, %224 : vector<16x128xi32>
    %226 = arith.andi %223, %225 : vector<16x128xi1>
    %cst_122 = arith.constant 0.000000e+00 : f32
    %227 = arith.truncf %cst_122 : f32 to bf16
    %228 = vector.broadcast %227 : bf16 to vector<16x128xbf16>
    %229 = arith.select %226, %221, %228 : vector<16x128xi1>, vector<16x128xbf16>
    %c0_123 = arith.constant 0 : index
    %c136 = arith.constant 136 : index
    %230 = vector.load %arg25[%c0_123, %c136] : memref<16x768xbf16, #tpu.memory_space<vmem>>, vector<16x128xbf16>
    %c7_i32_124 = arith.constant 7 : i32
    %231 = vector.broadcast %c7_i32_124 : i32 to vector<16x128xi32>
    %232 = arith.cmpi slt, %182, %231 : vector<16x128xi32>
    %cst_125 = arith.constant 0.000000e+00 : f32
    %233 = arith.truncf %cst_125 : f32 to bf16
    %234 = vector.broadcast %233 : bf16 to vector<16x128xbf16>
    %235 = arith.select %232, %230, %234 : vector<16x128xi1>, vector<16x128xbf16>
    %c0_126 = arith.constant 0 : index
    %c137 = arith.constant 137 : index
    %236 = vector.load %arg25[%c0_126, %c137] : memref<16x768xbf16, #tpu.memory_space<vmem>>, vector<16x128xbf16>
    %c7_i32_127 = arith.constant 7 : i32
    %237 = vector.broadcast %c7_i32_127 : i32 to vector<16x128xi32>
    %238 = arith.cmpi slt, %182, %237 : vector<16x128xi32>
    %c7_i32_128 = arith.constant 7 : i32
    %239 = vector.broadcast %c7_i32_128 : i32 to vector<16x128xi32>
    %240 = arith.cmpi slt, %184, %239 : vector<16x128xi32>
    %241 = arith.andi %238, %240 : vector<16x128xi1>
    %cst_129 = arith.constant 0.000000e+00 : f32
    %242 = arith.truncf %cst_129 : f32 to bf16
    %243 = vector.broadcast %242 : bf16 to vector<16x128xbf16>
    %244 = arith.select %241, %236, %243 : vector<16x128xi1>, vector<16x128xbf16>
    %245 = tpu.concatenate %193, %199, %208, %214, %176, %220, %229, %235, %244 in 0 : vector<16x128xbf16>, vector<16x128xbf16>, vector<16x128xbf16>, vector<16x128xbf16>, vector<16x128xbf16>, vector<16x128xbf16>, vector<16x128xbf16>, vector<16x128xbf16>, vector<16x128xbf16> -> vector<144x128xbf16>
    %c0_130 = arith.constant 0 : index
    %c0_131 = arith.constant 0 : index
    %246 = vector.load %arg16[%c0_130, %c0_131] : memref<8x144xbf16, #tpu.memory_space<vmem>>, vector<8x144xbf16>
    %cst_132 = arith.constant dense<0.000000e+00> : vector<8x128xf32>
    %247 = tpu.matmul %246, %245, %cst_132 {dimension_numbers = #tpu.dot_dimension_numbers<[1], [0], [0], [1], [0, 0, 1, 1], [], []>} : vector<8x144xbf16>, vector<144x128xbf16>, vector<8x128xf32> -> vector<8x128xf32>
    %248 = tpu.concatenate %167, %247 in 0 : vector<16x128xf32>, vector<8x128xf32> -> vector<24x128xf32>
    %c0_133 = arith.constant 0 : index
    %c0_134 = arith.constant 0 : index
    %249 = vector.load %arg19[%c0_133, %c0_134] : memref<24x1xf32, #tpu.memory_space<vmem>>, vector<24x1xf32>
    %250 = vector.broadcast %249 : vector<24x1xf32> to vector<24x128xf32>
    %251 = arith.mulf %248, %250 : vector<24x128xf32>
    %c0_135 = arith.constant 0 : index
    %c0_136 = arith.constant 0 : index
    %252 = vector.load %arg17[%c0_135, %c0_136] : memref<24x1xf32, #tpu.memory_space<vmem>>, vector<24x1xf32>
    %253 = vector.broadcast %252 : vector<24x1xf32> to vector<24x128xf32>
    %254 = arith.addf %251, %253 : vector<24x128xf32>
    %cst_137 = arith.constant 0.000000e+00 : f32
    %255 = vector.broadcast %cst_137 : f32 to vector<24x128xf32>
    %256 = arith.maximumf %254, %255 : vector<24x128xf32>
    %257 = arith.truncf %256 : vector<24x128xf32> to vector<24x128xbf16>
    %c0_138 = arith.constant 0 : index
    %c0_139 = arith.constant 0 : index
    %258 = vector.load %arg20[%c0_138, %c0_139] : memref<16x24xbf16, #tpu.memory_space<vmem>>, vector<16x24xbf16>
    %cst_140 = arith.constant dense<0.000000e+00> : vector<16x128xf32>
    %259 = tpu.matmul %258, %257, %cst_140 {dimension_numbers = #tpu.dot_dimension_numbers<[1], [0], [0], [1], [0, 0, 1, 1], [], []>} : vector<16x24xbf16>, vector<24x128xbf16>, vector<16x128xf32> -> vector<16x128xf32>
    %260 = arith.truncf %259 : vector<16x128xf32> to vector<16x128xbf16>
    %c0_141 = arith.constant 0 : index
    %c0_142 = arith.constant 0 : index
    %261 = vector.load %arg18[%c0_141, %c0_142] : memref<128x32xbf16, #tpu.memory_space<vmem>>, vector<128x32xbf16>
    %cst_143 = arith.constant dense<0.000000e+00> : vector<16x32xf32>
    %262 = tpu.matmul %260, %261, %cst_143 {dimension_numbers = #tpu.dot_dimension_numbers<[1], [0], [0], [1], [0, 0, 1, 1], [], []>} : vector<16x128xbf16>, vector<128x32xbf16>, vector<16x32xf32> -> vector<16x32xf32>
    %c0_144 = arith.constant 0 : index
    %c0_145 = arith.constant 0 : index
    %263 = vector.load %arg22[%c0_144, %c0_145] : memref<16x1xf32, #tpu.memory_space<vmem>>, vector<16x1xf32>
    %264 = vector.broadcast %263 : vector<16x1xf32> to vector<16x32xf32>
    %265 = arith.mulf %262, %264 : vector<16x32xf32>
    %c0_146 = arith.constant 0 : index
    %c0_147 = arith.constant 0 : index
    %266 = vector.load %arg21[%c0_146, %c0_147] : memref<16x1xf32, #tpu.memory_space<vmem>>, vector<16x1xf32>
    %267 = vector.broadcast %266 : vector<16x1xf32> to vector<16x32xf32>
    %268 = arith.addf %265, %267 : vector<16x32xf32>
    %cst_148 = arith.constant 0.000000e+00 : f32
    %269 = vector.broadcast %cst_148 : f32 to vector<16x32xf32>
    %270 = arith.maximumf %268, %269 : vector<16x32xf32>
    %271 = arith.truncf %270 : vector<16x32xf32> to vector<16x32xbf16>
    %c0_149 = arith.constant 0 : index
    %c128_150 = arith.constant 128 : index
    %272 = vector.load %arg25[%c0_149, %c128_150] : memref<16x768xbf16, #tpu.memory_space<vmem>>, vector<16x32xbf16>
    tpu.vector_store %arg25[%c0_149, %c128_150], %271 {strides = array<i32>} : memref<16x768xbf16, #tpu.memory_space<vmem>>, vector<16x32xbf16>,
    %273 = tpu.iota {dimensions = array<i32: 1>} : vector<16x32xi32>
    %c2_i32 = arith.constant 2 : i32
    %274 = vector.broadcast %c2_i32 : i32 to vector<16x32xi32>
    %275 = arith.shrsi %273, %274 : vector<16x32xi32>
    %c3_i32_151 = arith.constant 3 : i32
    %276 = vector.broadcast %c3_i32_151 : i32 to vector<16x32xi32>
    %277 = arith.andi %275, %276 : vector<16x32xi32>
    %c3_i32_152 = arith.constant 3 : i32
    %278 = vector.broadcast %c3_i32_152 : i32 to vector<16x32xi32>
    %279 = arith.andi %273, %278 : vector<16x32xi32>
    %c0_153 = arith.constant 0 : index
    %c123 = arith.constant 123 : index
    %280 = vector.load %arg25[%c0_153, %c123] : memref<16x768xbf16, #tpu.memory_space<vmem>>, vector<16x32xbf16>
    %c1_i32_154 = arith.constant 1 : i32
    %281 = vector.broadcast %c1_i32_154 : i32 to vector<16x32xi32>
    %282 = arith.cmpi sge, %277, %281 : vector<16x32xi32>
    %c1_i32_155 = arith.constant 1 : i32
    %283 = vector.broadcast %c1_i32_155 : i32 to vector<16x32xi32>
    %284 = arith.cmpi sge, %279, %283 : vector<16x32xi32>
    %285 = arith.andi %282, %284 : vector<16x32xi1>
    %cst_156 = arith.constant 0.000000e+00 : f32
    %286 = arith.truncf %cst_156 : f32 to bf16
    %287 = vector.broadcast %286 : bf16 to vector<16x32xbf16>
    %288 = arith.select %285, %280, %287 : vector<16x32xi1>, vector<16x32xbf16>
    %c0_157 = arith.constant 0 : index
    %c124 = arith.constant 124 : index
    %289 = vector.load %arg25[%c0_157, %c124] : memref<16x768xbf16, #tpu.memory_space<vmem>>, vector<16x32xbf16>
    %c1_i32_158 = arith.constant 1 : i32
    %290 = vector.broadcast %c1_i32_158 : i32 to vector<16x32xi32>
    %291 = arith.cmpi sge, %277, %290 : vector<16x32xi32>
    %cst_159 = arith.constant 0.000000e+00 : f32
    %292 = arith.truncf %cst_159 : f32 to bf16
    %293 = vector.broadcast %292 : bf16 to vector<16x32xbf16>
    %294 = arith.select %291, %289, %293 : vector<16x32xi1>, vector<16x32xbf16>
    %c0_160 = arith.constant 0 : index
    %c125 = arith.constant 125 : index
    %295 = vector.load %arg25[%c0_160, %c125] : memref<16x768xbf16, #tpu.memory_space<vmem>>, vector<16x32xbf16>
    %c1_i32_161 = arith.constant 1 : i32
    %296 = vector.broadcast %c1_i32_161 : i32 to vector<16x32xi32>
    %297 = arith.cmpi sge, %277, %296 : vector<16x32xi32>
    %c3_i32_162 = arith.constant 3 : i32
    %298 = vector.broadcast %c3_i32_162 : i32 to vector<16x32xi32>
    %299 = arith.cmpi slt, %279, %298 : vector<16x32xi32>
    %300 = arith.andi %297, %299 : vector<16x32xi1>
    %cst_163 = arith.constant 0.000000e+00 : f32
    %301 = arith.truncf %cst_163 : f32 to bf16
    %302 = vector.broadcast %301 : bf16 to vector<16x32xbf16>
    %303 = arith.select %300, %295, %302 : vector<16x32xi1>, vector<16x32xbf16>
    %c0_164 = arith.constant 0 : index
    %c127_165 = arith.constant 127 : index
    %304 = vector.load %arg25[%c0_164, %c127_165] : memref<16x768xbf16, #tpu.memory_space<vmem>>, vector<16x32xbf16>
    %c1_i32_166 = arith.constant 1 : i32
    %305 = vector.broadcast %c1_i32_166 : i32 to vector<16x32xi32>
    %306 = arith.cmpi sge, %279, %305 : vector<16x32xi32>
    %cst_167 = arith.constant 0.000000e+00 : f32
    %307 = arith.truncf %cst_167 : f32 to bf16
    %308 = vector.broadcast %307 : bf16 to vector<16x32xbf16>
    %309 = arith.select %306, %304, %308 : vector<16x32xi1>, vector<16x32xbf16>
    %c0_168 = arith.constant 0 : index
    %c129_169 = arith.constant 129 : index
    %310 = vector.load %arg25[%c0_168, %c129_169] : memref<16x768xbf16, #tpu.memory_space<vmem>>, vector<16x32xbf16>
    %c3_i32_170 = arith.constant 3 : i32
    %311 = vector.broadcast %c3_i32_170 : i32 to vector<16x32xi32>
    %312 = arith.cmpi slt, %279, %311 : vector<16x32xi32>
    %cst_171 = arith.constant 0.000000e+00 : f32
    %313 = arith.truncf %cst_171 : f32 to bf16
    %314 = vector.broadcast %313 : bf16 to vector<16x32xbf16>
    %315 = arith.select %312, %310, %314 : vector<16x32xi1>, vector<16x32xbf16>
    %c0_172 = arith.constant 0 : index
    %c131 = arith.constant 131 : index
    %316 = vector.load %arg25[%c0_172, %c131] : memref<16x768xbf16, #tpu.memory_space<vmem>>, vector<16x32xbf16>
    %c3_i32_173 = arith.constant 3 : i32
    %317 = vector.broadcast %c3_i32_173 : i32 to vector<16x32xi32>
    %318 = arith.cmpi slt, %277, %317 : vector<16x32xi32>
    %c1_i32_174 = arith.constant 1 : i32
    %319 = vector.broadcast %c1_i32_174 : i32 to vector<16x32xi32>
    %320 = arith.cmpi sge, %279, %319 : vector<16x32xi32>
    %321 = arith.andi %318, %320 : vector<16x32xi1>
    %cst_175 = arith.constant 0.000000e+00 : f32
    %322 = arith.truncf %cst_175 : f32 to bf16
    %323 = vector.broadcast %322 : bf16 to vector<16x32xbf16>
    %324 = arith.select %321, %316, %323 : vector<16x32xi1>, vector<16x32xbf16>
    %c0_176 = arith.constant 0 : index
    %c132 = arith.constant 132 : index
    %325 = vector.load %arg25[%c0_176, %c132] : memref<16x768xbf16, #tpu.memory_space<vmem>>, vector<16x32xbf16>
    %c3_i32_177 = arith.constant 3 : i32
    %326 = vector.broadcast %c3_i32_177 : i32 to vector<16x32xi32>
    %327 = arith.cmpi slt, %277, %326 : vector<16x32xi32>
    %cst_178 = arith.constant 0.000000e+00 : f32
    %328 = arith.truncf %cst_178 : f32 to bf16
    %329 = vector.broadcast %328 : bf16 to vector<16x32xbf16>
    %330 = arith.select %327, %325, %329 : vector<16x32xi1>, vector<16x32xbf16>
    %c0_179 = arith.constant 0 : index
    %c133 = arith.constant 133 : index
    %331 = vector.load %arg25[%c0_179, %c133] : memref<16x768xbf16, #tpu.memory_space<vmem>>, vector<16x32xbf16>
    %c3_i32_180 = arith.constant 3 : i32
    %332 = vector.broadcast %c3_i32_180 : i32 to vector<16x32xi32>
    %333 = arith.cmpi slt, %277, %332 : vector<16x32xi32>
    %c3_i32_181 = arith.constant 3 : i32
    %334 = vector.broadcast %c3_i32_181 : i32 to vector<16x32xi32>
    %335 = arith.cmpi slt, %279, %334 : vector<16x32xi32>
    %336 = arith.andi %333, %335 : vector<16x32xi1>
    %cst_182 = arith.constant 0.000000e+00 : f32
    %337 = arith.truncf %cst_182 : f32 to bf16
    %338 = vector.broadcast %337 : bf16 to vector<16x32xbf16>
    %339 = arith.select %336, %331, %338 : vector<16x32xi1>, vector<16x32xbf16>
    %340 = tpu.concatenate %288, %294, %303, %309, %271, %315, %324, %330, %339 in 0 : vector<16x32xbf16>, vector<16x32xbf16>, vector<16x32xbf16>, vector<16x32xbf16>, vector<16x32xbf16>, vector<16x32xbf16>, vector<16x32xbf16>, vector<16x32xbf16>, vector<16x32xbf16> -> vector<144x32xbf16>
    %c0_183 = arith.constant 0 : index
    %c0_184 = arith.constant 0 : index
    %341 = vector.load %arg23[%c0_183, %c0_184] : memref<8x144xbf16, #tpu.memory_space<vmem>>, vector<8x144xbf16>
    %cst_185 = arith.constant dense<0.000000e+00> : vector<8x32xf32>
    %342 = tpu.matmul %341, %340, %cst_185 {dimension_numbers = #tpu.dot_dimension_numbers<[1], [0], [0], [1], [0, 0, 1, 1], [], []>} : vector<8x144xbf16>, vector<144x32xbf16>, vector<8x32xf32> -> vector<8x32xf32>
    %343 = tpu.concatenate %262, %342 in 0 : vector<16x32xf32>, vector<8x32xf32> -> vector<24x32xf32>
    %c0_186 = arith.constant 0 : index
    %c0_187 = arith.constant 0 : index
    %344 = vector.load %arg2[%c0_186, %c0_187] : memref<24x1xf32, #tpu.memory_space<vmem>>, vector<24x1xf32>
    %345 = vector.broadcast %344 : vector<24x1xf32> to vector<24x32xf32>
    %346 = arith.mulf %343, %345 : vector<24x32xf32>
    %c0_188 = arith.constant 0 : index
    %c0_189 = arith.constant 0 : index
    %347 = vector.load %arg1[%c0_188, %c0_189] : memref<24x1xf32, #tpu.memory_space<vmem>>, vector<24x1xf32>
    %348 = vector.broadcast %347 : vector<24x1xf32> to vector<24x32xf32>
    %349 = arith.addf %346, %348 : vector<24x32xf32>
    %cst_190 = arith.constant 0.000000e+00 : f32
    %350 = vector.broadcast %cst_190 : f32 to vector<24x32xf32>
    %351 = arith.maximumf %349, %350 : vector<24x32xf32>
    %352 = arith.truncf %351 : vector<24x32xf32> to vector<24x32xbf16>
    %c0_191 = arith.constant 0 : index
    %c0_192 = arith.constant 0 : index
    %353 = vector.load %arg6[%c0_191, %c0_192] : memref<32x2xbf16, #tpu.memory_space<vmem>>, vector<32x2xbf16>
    %cst_193 = arith.constant dense<0.000000e+00> : vector<24x2xf32>
    %354 = tpu.matmul %352, %353, %cst_193 {dimension_numbers = #tpu.dot_dimension_numbers<[1], [0], [0], [1], [0, 0, 1, 1], [], []>} : vector<24x32xbf16>, vector<32x2xbf16>, vector<24x2xf32> -> vector<24x2xf32>
    %c0_194 = arith.constant 0 : index
    %c0_195 = arith.constant 0 : index
    %355 = vector.load %arg5[%c0_194, %c0_195] : memref<10x24xf32, #tpu.memory_space<vmem>>, vector<10x24xf32>
    %cst_196 = arith.constant dense<0.000000e+00> : vector<10x2xf32>
    %356 = tpu.matmul %355, %354, %cst_196 {dimension_numbers = #tpu.dot_dimension_numbers<[1], [0], [0], [1], [0, 0, 1, 1], [], []>} : vector<10x24xf32>, vector<24x2xf32>, vector<10x2xf32> -> vector<10x2xf32>
    %c0_197 = arith.constant 0 : index
    %c0_198 = arith.constant 0 : index
    %357 = vector.load %arg4[%c0_197, %c0_198] : memref<10x1xf32, #tpu.memory_space<vmem>>, vector<10x1xf32>
    %358 = vector.broadcast %357 : vector<10x1xf32> to vector<10x2xf32>
    %359 = arith.addf %356, %358 : vector<10x2xf32>
    %c0_199 = arith.constant 0 : index
    %c0_200 = arith.constant 0 : index
    %360 = vector.load %arg24[%c0_199, %c0_200] : memref<10x2xf32, #tpu.memory_space<vmem>>, vector<10x2xf32>
    tpu.vector_store %arg24[%c0_199, %c0_200], %359 {strides = array<i32>} : memref<10x2xf32, #tpu.memory_space<vmem>>, vector<10x2xf32>,
    return
  }
}

</mosaic_0001>

<llo_original>
// kernel: forward.1
$region0: #{forward.1}
  #allocation0 [shape = 'u32[]', space=smem, size = 0x4, offset = 0x4, fixed_abs, tag = 'smem constant byte address 0x4 - core index']
  #allocation1 [shape = 'u32[144,128]{1,0:T(1,128)}', space=vmem, size = 0x12000, scoped, tag = 'internal scratch']
  #allocation2 [shape = 'bf16[16,768]{1,0:T(8,128)(2,1)}', space=vmem, size = 0x6000, scoped, tag = 'scratch operand']
  %s0 = inlined_call_operand.vmem [shape: f32[16,512], index: 0, kind: input, shape index: {}]
  %s1 = inlined_call_operand.vmem [shape: f32[24,1], index: 1, kind: input, shape index: {}, may-alias: {1,10,17}]
  %s2 = inlined_call_operand.vmem [shape: f32[24,1], index: 2, kind: input, shape index: {}]
  %s3 = inlined_call_operand.vmem [shape: bf16[16,144], index: 3, kind: input, shape index: {}]
  %s4 = inlined_call_operand.vmem [shape: f32[10,1], index: 4, kind: input, shape index: {}]
  %s5 = inlined_call_operand.vmem [shape: f32[10,24], index: 5, kind: input, shape index: {}]
  %s6 = inlined_call_operand.vmem [shape: bf16[32,2], index: 6, kind: input, shape index: {}]
  %s7 = inlined_call_operand.vmem [shape: f32[16,1], index: 7, kind: input, shape index: {}, may-alias: {7,14,21}]
  %s8 = inlined_call_operand.vmem [shape: f32[16,1], index: 8, kind: input, shape index: {}]
  %s9 = inlined_call_operand.vmem [shape: bf16[8,144], index: 9, kind: input, shape index: {}]
  %s10 = inlined_call_operand.vmem [shape: f32[24,1], index: 10, kind: input, shape index: {}, may-alias: {1,10,17}]
  %s11 = inlined_call_operand.vmem [shape: bf16[512,128], index: 11, kind: input, shape index: {}]
  %s12 = inlined_call_operand.vmem [shape: f32[24,1], index: 12, kind: input, shape index: {}]
  %s13 = inlined_call_operand.vmem [shape: bf16[16,24], index: 13, kind: input, shape index: {}]
  %s14 = inlined_call_operand.vmem [shape: f32[16,1], index: 14, kind: input, shape index: {}, may-alias: {7,14,21}]
  %s15 = inlined_call_operand.vmem [shape: f32[16,1], index: 15, kind: input, shape index: {}]
  %s16 = inlined_call_operand.vmem [shape: bf16[8,144], index: 16, kind: input, shape index: {}]
  %s17 = inlined_call_operand.vmem [shape: f32[24,1], index: 17, kind: input, shape index: {}, may-alias: {1,10,17}]
  %s18 = inlined_call_operand.vmem [shape: bf16[128,32], index: 18, kind: input, shape index: {}]
  %s19 = inlined_call_operand.vmem [shape: f32[24,1], index: 19, kind: input, shape index: {}]
  %s20 = inlined_call_operand.vmem [shape: bf16[16,24], index: 20, kind: input, shape index: {}]
  %s21 = inlined_call_operand.vmem [shape: f32[16,1], index: 21, kind: input, shape index: {}, may-alias: {7,14,21}]
  %s22 = inlined_call_operand.vmem [shape: f32[16,1], index: 22, kind: input, shape index: {}]
  %s23 = inlined_call_operand.vmem [shape: bf16[8,144], index: 23, kind: input, shape index: {}]
  %s24 = inlined_call_operand.vmem [shape: f32[10,2], index: 24, kind: output, shape index: {}]
  %s25 = sld [smem:[#allocation0]]
  $region106: #{forward.1} parent=0
    _
  %s27 = ssub.s32 1, %s25
  %s28 = scalar_select 0, %s27, %s25
  // Predicated region
  $region2: #{forward.1} parent=0 // pred_check
    _
  $region3: #{forward.1} parent=0 // pred_check_branch
    %30 = sbr.rel (0) target = $region5
  $region4: #{forward.1} parent=0 // pred_region
    _
  $region5: #{forward.1} parent=0 // pred_fallthru
    _
  // Predicated region
  $region6: #{forward.1} parent=0 // pred_check
    _
  $region7: #{forward.1} parent=0 // pred_check_branch
    %32 = sbr.rel (0) target = $region9
  $region8: #{forward.1} parent=0 // pred_region
    _
  $region9: #{forward.1} parent=0 // pred_fallthru
    _
  // Predicated region
  $region10: #{forward.1} parent=0 // pred_check
    _
  $region11: #{forward.1} parent=0 // pred_check_branch
    %34 = sbr.rel (0) target = $region13
  $region12: #{forward.1} parent=0 // pred_region
    _
  $region13: #{forward.1} parent=0 // pred_fallthru
    _
  // Predicated region
  $region14: #{forward.1} parent=0 // pred_check
    _
  $region15: #{forward.1} parent=0 // pred_check_branch
    %36 = sbr.rel (0) target = $region17
  $region16: #{forward.1} parent=0 // pred_region
    _
  $region17: #{forward.1} parent=0 // pred_fallthru
    _
  // Predicated region
  $region18: #{forward.1} parent=0 // pred_check
    _
  $region19: #{forward.1} parent=0 // pred_check_branch
    %38 = sbr.rel (0) target = $region21
  $region20: #{forward.1} parent=0 // pred_region
    _
  $region21: #{forward.1} parent=0 // pred_fallthru
    _
  // Predicated region
  $region22: #{forward.1} parent=0 // pred_check
    _
  $region23: #{forward.1} parent=0 // pred_check_branch
    %40 = sbr.rel (0) target = $region25
  $region24: #{forward.1} parent=0 // pred_region
    _
  $region25: #{forward.1} parent=0 // pred_fallthru
    _
  // Predicated region
  $region26: #{forward.1} parent=0 // pred_check
    _
  $region27: #{forward.1} parent=0 // pred_check_branch
    %42 = sbr.rel (0) target = $region29
  $region28: #{forward.1} parent=0 // pred_region
    _
  $region29: #{forward.1} parent=0 // pred_fallthru
    _
  // Predicated region
  $region30: #{forward.1} parent=0 // pred_check
    _
  $region31: #{forward.1} parent=0 // pred_check_branch
    %44 = sbr.rel (0) target = $region33
  $region32: #{forward.1} parent=0 // pred_region
    _
  $region33: #{forward.1} parent=0 // pred_fallthru
    _
  // Predicated region
  $region34: #{forward.1} parent=0 // pred_check
    _
  $region35: #{forward.1} parent=0 // pred_check_branch
    %46 = sbr.rel (0) target = $region37
  $region36: #{forward.1} parent=0 // pred_region
    _
  $region37: #{forward.1} parent=0 // pred_fallthru
    _
  // Predicated region
  $region38: #{forward.1} parent=0 // pred_check
    _
  $region39: #{forward.1} parent=0 // pred_check_branch
    %48 = sbr.rel (0) target = $region41
  $region40: #{forward.1} parent=0 // pred_region
    _
  $region41: #{forward.1} parent=0 // pred_fallthru
    _
  // Predicated region
  $region42: #{forward.1} parent=0 // pred_check
    _
  $region43: #{forward.1} parent=0 // pred_check_branch
    %50 = sbr.rel (0) target = $region45
  $region44: #{forward.1} parent=0 // pred_region
    _
  $region45: #{forward.1} parent=0 // pred_fallthru
    _
  // Predicated region
  $region46: #{forward.1} parent=0 // pred_check
    _
  $region47: #{forward.1} parent=0 // pred_check_branch
    %52 = sbr.rel (0) target = $region49
  $region48: #{forward.1} parent=0 // pred_region
    _
  $region49: #{forward.1} parent=0 // pred_fallthru
    _
  // Predicated region
  $region50: #{forward.1} parent=0 // pred_check
    _
  $region51: #{forward.1} parent=0 // pred_check_branch
    %54 = sbr.rel (0) target = $region53
  $region52: #{forward.1} parent=0 // pred_region
    _
  $region53: #{forward.1} parent=0 // pred_fallthru
    _
  // Predicated region
  $region54: #{forward.1} parent=0 // pred_check
    _
  $region55: #{forward.1} parent=0 // pred_check_branch
    %56 = sbr.rel (0) target = $region57
  $region56: #{forward.1} parent=0 // pred_region
    _
  $region57: #{forward.1} parent=0 // pred_fallthru
    _
  // Predicated region
  $region58: #{forward.1} parent=0 // pred_check
    _
  $region59: #{forward.1} parent=0 // pred_check_branch
    %58 = sbr.rel (0) target = $region61
  $region60: #{forward.1} parent=0 // pred_region
    _
  $region61: #{forward.1} parent=0 // pred_fallthru
    _
  // Predicated region
  $region62: #{forward.1} parent=0 // pred_check
    _
  $region63: #{forward.1} parent=0 // pred_check_branch
    %60 = sbr.rel (0) target = $region65
  $region64: #{forward.1} parent=0 // pred_region
    _
  $region65: #{forward.1} parent=0 // pred_fallthru
    _
  // Predicated region
  $region66: #{forward.1} parent=0 // pred_check
    _
  $region67: #{forward.1} parent=0 // pred_check_branch
    %62 = sbr.rel (0) target = $region69
  $region68: #{forward.1} parent=0 // pred_region
    _
  $region69: #{forward.1} parent=0 // pred_fallthru
    _
  // Predicated region
  $region70: #{forward.1} parent=0 // pred_check
    _
  $region71: #{forward.1} parent=0 // pred_check_branch
    %64 = sbr.rel (0) target = $region73
  $region72: #{forward.1} parent=0 // pred_region
    _
  $region73: #{forward.1} parent=0 // pred_fallthru
    _
  // Predicated region
  $region74: #{forward.1} parent=0 // pred_check
    _
  $region75: #{forward.1} parent=0 // pred_check_branch
    %66 = sbr.rel (0) target = $region77
  $region76: #{forward.1} parent=0 // pred_region
    _
  $region77: #{forward.1} parent=0 // pred_fallthru
    _
  // Predicated region
  $region78: #{forward.1} parent=0 // pred_check
    _
  $region79: #{forward.1} parent=0 // pred_check_branch
    %68 = sbr.rel (0) target = $region81
  $region80: #{forward.1} parent=0 // pred_region
    _
  $region81: #{forward.1} parent=0 // pred_fallthru
    _
  // Predicated region
  $region82: #{forward.1} parent=0 // pred_check
    _
  $region83: #{forward.1} parent=0 // pred_check_branch
    %70 = sbr.rel (0) target = $region85
  $region84: #{forward.1} parent=0 // pred_region
    _
  $region85: #{forward.1} parent=0 // pred_fallthru
    _
  // Predicated region
  $region86: #{forward.1} parent=0 // pred_check
    _
  $region87: #{forward.1} parent=0 // pred_check_branch
    %72 = sbr.rel (0) target = $region89
  $region88: #{forward.1} parent=0 // pred_region
    _
  $region89: #{forward.1} parent=0 // pred_fallthru
    _
  // Predicated region
  $region90: #{forward.1} parent=0 // pred_check
    _
  $region91: #{forward.1} parent=0 // pred_check_branch
    %74 = sbr.rel (0) target = $region93
  $region92: #{forward.1} parent=0 // pred_region
    _
  $region93: #{forward.1} parent=0 // pred_fallthru
    _
  // Predicated region
  $region94: #{forward.1} parent=0 // pred_check
    _
  $region95: #{forward.1} parent=0 // pred_check_branch
    %76 = sbr.rel (0) target = $region97
  $region96: #{forward.1} parent=0 // pred_region
    _
  $region97: #{forward.1} parent=0 // pred_fallthru
    _
  %v80 = vld [vmem:[%s0] sm:$0xff]
  %v81 = vld [vmem:[%s0 + $0x8] sm:$0xff]
  %v82 = vld [vmem:[%s0 + $0x10] sm:$0xff]
  %v83 = vld [vmem:[%s0 + $0x18] sm:$0xff]
  %v84 = vld [vmem:[%s0 + $0x20] sm:$0xff]
  %v85 = vld [vmem:[%s0 + $0x28] sm:$0xff]
  %v86 = vld [vmem:[%s0 + $0x30] sm:$0xff]
  %v87 = vld [vmem:[%s0 + $0x38] sm:$0xff]
  %v88 = vpack.c.bf16 %v84, %v80
  %v89 = vpack.c.bf16 %v85, %v81
  %v90 = vpack.c.bf16 %v86, %v82
  %v91 = vpack.c.bf16 %v87, %v83
  %v96 = vunpack.c.l.b16 %v88
  %v97 = vunpack.c.l.b16 %v89
  %v98 = vunpack.c.l.b16 %v90
  %v99 = vunpack.c.l.b16 %v91
  %v100 = vunpack.c.h.b16 %v88
  %v101 = vunpack.c.h.b16 %v89
  %v102 = vunpack.c.h.b16 %v90
  %v103 = vunpack.c.h.b16 %v91
  %v104 = vpack.c.b16 %v97, %v96
  %v105 = vpack.c.b16 %v99, %v98
  %v106 = vpack.c.b16 %v101, %v100
  %v107 = vpack.c.b16 %v103, %v102
  %112 = vst [vmem:[#allocation2 + $0x4] sm:$0xff] %v104
  %113 = vst [vmem:[#allocation2 + $0xc] sm:$0xff] %v105
  %114 = vst [vmem:[#allocation2 + $0x1c] sm:$0xff] %v106
  %115 = vst [vmem:[#allocation2 + $0x24] sm:$0xff] %v107
  %v116 = vlaneseq
  %v117 = vand.u32 %v116, 127
  %v118 = vadd.s32 %v117, 128
  %v119 = vadd.s32 %v117, 256
  %v120 = vadd.s32 %v117, 384
  %v121 = vshra.s32 %v117, 4
  %v122 = vshra.s32 %v118, 4
  %v123 = vshra.s32 %v119, 4
  %v124 = vshra.s32 %v120, 4
  %v125 = vand.u32 %v121, 15
  %v126 = vand.u32 %v122, 15
  %v127 = vand.u32 %v123, 15
  %v128 = vand.u32 %v124, 15
  %v129 = vand.u32 %v117, 15
  %v130 = vand.u32 %v118, 15
  %v131 = vand.u32 %v119, 15
  %v132 = vand.u32 %v120, 15
  %v133 = vld [vmem:[#allocation2] sm:$0xff]
  %v134 = vld [vmem:[#allocation2 + $0x8] sm:$0xff]
  %v135 = vld [vmem:[#allocation2 + $0x10] sm:$0xf]
  %v136 = vld [vmem:[#allocation2 + $0x18] sm:$0xff]
  %v137 = vld [vmem:[#allocation2 + $0x20] sm:$0xff]
  %v138 = vld [vmem:[#allocation2 + $0x28] sm:$0xf]
  %vm139 = vcmp.ge.s32.totalorder %v125, 1
  %vm140 = vcmp.ge.s32.totalorder %v126, 1
  %vm141 = vcmp.ge.s32.totalorder %v127, 1
  %vm142 = vcmp.ge.s32.totalorder %v128, 1
  %vm143 = vcmp.ge.s32.totalorder %v129, 1
  %vm144 = vcmp.ge.s32.totalorder %v130, 1
  %vm145 = vcmp.ge.s32.totalorder %v131, 1
  %vm146 = vcmp.ge.s32.totalorder %v132, 1
  %vm147 = vmand %vm139, %vm143
  %vm148 = vmand %vm140, %vm144
  %vm149 = vmand %vm141, %vm145
  %vm150 = vmand %vm142, %vm146
  %vm151 = vmpackc.low %vm148, %vm147
  %vm152 = vmpackc.low %vm150, %vm149
  %v153 = vsel %vm151, 65537, 0
  %v154 = vsel %vm152, 65537, 0
  %155 = vrot.lane.b32.xlu0 %v153, 111
  %v156 = vpop.permute.xlu0 %155
  %157 = vrot.lane.b32.xlu0 %v154, 111
  %v158 = vpop.permute.xlu0 %157
  %v159 = vrot.slane %v156, 4
  %v160 = vrot.slane %v158, 4
  %vm161 = vcmask 908288
  %v162 = vsel %vm161, %v159, %v156
  %vm163 = vcmask 1043456
  %v164 = vsel %vm163, %v159, %v160
  %v165 = vsel %vm161, %v164, %v158
  %vm166 = vcmp.ne.s16.totalorder %v162, 0
  %vm167 = vcmp.ne.s16.totalorder %v165, 0
  %vm168 = vcmp.ne.s16.totalorder %v160, 0
  %v169 = vsel %vm166, %v133, 0
  %v170 = vsel %vm167, %v134, 0
  %v171 = vsel %vm168, %v135, 0
  %v172 = vsel %vm166, %v136, 0
  %v173 = vsel %vm167, %v137, 0
  %v174 = vsel %vm168, %v138, 0
  %vm175 = vmpackc.low %vm140, %vm139
  %vm176 = vmpackc.low %vm142, %vm141
  %v177 = vsel %vm175, 65537, 0
  %v178 = vsel %vm176, 65537, 0
  %179 = vrot.lane.b32.xlu0 %v177, 112
  %v180 = vpop.permute.xlu0 %179
  %181 = vrot.lane.b32.xlu0 %v178, 112
  %v182 = vpop.permute.xlu0 %181
  %v183 = vrot.slane %v180, 4
  %v184 = vrot.slane %v182, 4
  %vm185 = vcmask 916480
  %v186 = vsel %vm185, %v183, %v180
  %v187 = vsel %vm163, %v183, %v184
  %v188 = vsel %vm185, %v187, %v182
  %vm189 = vcmp.ne.s16.totalorder %v186, 0
  %vm190 = vcmp.ne.s16.totalorder %v188, 0
  %vm191 = vcmp.ne.s16.totalorder %v184, 0
  %v192 = vsel %vm189, %v133, 0
  %v193 = vsel %vm190, %v134, 0
  %v194 = vsel %vm191, %v135, 0
  %v195 = vsel %vm189, %v136, 0
  %v196 = vsel %vm190, %v137, 0
  %v197 = vsel %vm191, %v138, 0
  %vm198 = vcmp.lt.s32.totalorder %v129, 15
  %vm199 = vcmp.lt.s32.totalorder %v130, 15
  %vm200 = vcmp.lt.s32.totalorder %v131, 15
  %vm201 = vcmp.lt.s32.totalorder %v132, 15
  %vm202 = vmand %vm139, %vm198
  %vm203 = vmand %vm140, %vm199
  %vm204 = vmand %vm141, %vm200
  %vm205 = vmand %vm142, %vm201
  %vm206 = vmpackc.low %vm203, %vm202
  %vm207 = vmpackc.low %vm205, %vm204
  %v208 = vsel %vm206, 65537, 0
  %v209 = vsel %vm207, 65537, 0
  %210 = vrot.lane.b32.xlu0 %v208, 113
  %v211 = vpop.permute.xlu0 %210
  %212 = vrot.lane.b32.xlu0 %v209, 113
  %v213 = vpop.permute.xlu0 %212
  %v214 = vrot.slane %v211, 4
  %v215 = vrot.slane %v213, 4
  %vm216 = vcmask 924672
  %v217 = vsel %vm216, %v214, %v211
  %v218 = vsel %vm163, %v214, %v215
  %v219 = vsel %vm216, %v218, %v213
  %vm220 = vcmp.ne.s16.totalorder %v217, 0
  %vm221 = vcmp.ne.s16.totalorder %v219, 0
  %vm222 = vcmp.ne.s16.totalorder %v215, 0
  %v223 = vsel %vm220, %v133, 0
  %v224 = vsel %vm221, %v134, 0
  %v225 = vsel %vm222, %v135, 0
  %v226 = vsel %vm220, %v136, 0
  %v227 = vsel %vm221, %v137, 0
  %v228 = vsel %vm222, %v138, 0
  %vm229 = vmpackc.low %vm144, %vm143
  %vm230 = vmpackc.low %vm146, %vm145
  %v231 = vsel %vm229, 65537, 0
  %v232 = vsel %vm230, 65537, 0
  %233 = vrot.lane.b32.xlu0 %v231, 127
  %v234 = vpop.permute.xlu0 %233
  %235 = vrot.lane.b32.xlu0 %v232, 127
  %v236 = vpop.permute.xlu0 %235
  %v237 = vrot.slane %v234, 4
  %v238 = vrot.slane %v236, 4
  %vm239 = vcmask 1039360
  %v240 = vsel %vm239, %v237, %v234
  %v241 = vsel %vm163, %v237, %v238
  %v242 = vsel %vm239, %v241, %v236
  %vm243 = vcmp.ne.s16.totalorder %v240, 0
  %vm244 = vcmp.ne.s16.totalorder %v242, 0
  %vm245 = vcmp.ne.s16.totalorder %v238, 0
  %v246 = vsel %vm243, %v133, 0
  %v247 = vsel %vm244, %v134, 0
  %v248 = vsel %vm245, %v135, 0
  %v249 = vsel %vm243, %v136, 0
  %v250 = vsel %vm244, %v137, 0
  %v251 = vsel %vm245, %v138, 0
  %v252 = vld [vmem:[#allocation2 + $0x4] sm:$0xff]
  %v253 = vld [vmem:[#allocation2 + $0xc] sm:$0xff]
  %v254 = vld [vmem:[#allocation2 + $0x14] sm:$0xf]
  %v255 = vld [vmem:[#allocation2 + $0x1c] sm:$0xff]
  %v256 = vld [vmem:[#allocation2 + $0x24] sm:$0xff]
  %v257 = vld [vmem:[#allocation2 + $0x2c] sm:$0xf]
  %vm258 = vmpackc.low %vm199, %vm198
  %vm259 = vmpackc.low %vm201, %vm200
  %v260 = vsel %vm258, 65537, 0
  %v261 = vsel %vm259, 65537, 0
  %262 = vrot.lane.b32.xlu0 %v260, 1
  %v263 = vpop.permute.xlu0 %262
  %264 = vrot.lane.b32.xlu0 %v261, 1
  %v265 = vpop.permute.xlu0 %264
  %v266 = vrot.slane %v263, 4
  %v267 = vrot.slane %v265, 4
  %vm268 = vcmask 7168
  %v269 = vsel %vm268, %v266, %v263
  %v270 = vsel %vm163, %v266, %v267
  %v271 = vsel %vm268, %v270, %v265
  %vm272 = vcmp.ne.s16.totalorder %v269, 0
  %vm273 = vcmp.ne.s16.totalorder %v271, 0
  %vm274 = vcmp.ne.s16.totalorder %v267, 0
  %v275 = vsel %vm272, %v252, 0
  %v276 = vsel %vm273, %v253, 0
  %v277 = vsel %vm274, %v254, 0
  %v278 = vsel %vm272, %v255, 0
  %v279 = vsel %vm273, %v256, 0
  %v280 = vsel %vm274, %v257, 0
  %vm281 = vcmp.lt.s32.totalorder %v125, 15
  %vm282 = vcmp.lt.s32.totalorder %v126, 15
  %vm283 = vcmp.lt.s32.totalorder %v127, 15
  %vm284 = vcmp.lt.s32.totalorder %v128, 15
  %vm285 = vmand %vm281, %vm143
  %vm286 = vmand %vm282, %vm144
  %vm287 = vmand %vm283, %vm145
  %vm288 = vmand %vm284, %vm146
  %vm289 = vmpackc.low %vm286, %vm285
  %vm290 = vmpackc.low %vm288, %vm287
  %v291 = vsel %vm289, 65537, 0
  %v292 = vsel %vm290, 65537, 0
  %293 = vrot.lane.b32.xlu0 %v291, 15
  %v294 = vpop.permute.xlu0 %293
  %295 = vrot.lane.b32.xlu0 %v292, 15
  %v296 = vpop.permute.xlu0 %295
  %v297 = vrot.slane %v294, 4
  %v298 = vrot.slane %v296, 4
  %vm299 = vcmask 121856
  %v300 = vsel %vm299, %v297, %v294
  %v301 = vsel %vm163, %v297, %v298
  %v302 = vsel %vm299, %v301, %v296
  %vm303 = vcmp.ne.s16.totalorder %v300, 0
  %vm304 = vcmp.ne.s16.totalorder %v302, 0
  %vm305 = vcmp.ne.s16.totalorder %v298, 0
  %v306 = vsel %vm303, %v252, 0
  %v307 = vsel %vm304, %v253, 0
  %v308 = vsel %vm305, %v254, 0
  %v309 = vsel %vm303, %v255, 0
  %v310 = vsel %vm304, %v256, 0
  %v311 = vsel %vm305, %v257, 0
  %vm312 = vmpackc.low %vm282, %vm281
  %vm313 = vmpackc.low %vm284, %vm283
  %v314 = vsel %vm312, 65537, 0
  %v315 = vsel %vm313, 65537, 0
  %316 = vrot.lane.b32.xlu0 %v314, 16
  %v317 = vpop.permute.xlu0 %316
  %318 = vrot.lane.b32.xlu0 %v315, 16
  %v319 = vpop.permute.xlu0 %318
  %v320 = vrot.slane %v317, 4
  %v321 = vrot.slane %v319, 4
  %vm322 = vcmask 130048
  %v323 = vsel %vm322, %v320, %v317
  %v324 = vsel %vm163, %v320, %v321
  %v325 = vsel %vm322, %v324, %v319
  %vm326 = vcmp.ne.s16.totalorder %v323, 0
  %vm327 = vcmp.ne.s16.totalorder %v325, 0
  %vm328 = vcmp.ne.s16.totalorder %v321, 0
  %v329 = vsel %vm326, %v252, 0
  %v330 = vsel %vm327, %v253, 0
  %v331 = vsel %vm328, %v254, 0
  %v332 = vsel %vm326, %v255, 0
  %v333 = vsel %vm327, %v256, 0
  %v334 = vsel %vm328, %v257, 0
  %vm335 = vmand %vm281, %vm198
  %vm336 = vmand %vm282, %vm199
  %vm337 = vmand %vm283, %vm200
  %vm338 = vmand %vm284, %vm201
  %vm339 = vmpackc.low %vm336, %vm335
  %vm340 = vmpackc.low %vm338, %vm337
  %v341 = vsel %vm339, 65537, 0
  %v342 = vsel %vm340, 65537, 0
  %343 = vrot.lane.b32.xlu0 %v341, 17
  %v344 = vpop.permute.xlu0 %343
  %345 = vrot.lane.b32.xlu0 %v342, 17
  %v346 = vpop.permute.xlu0 %345
  %v347 = vrot.slane %v344, 4
  %v348 = vrot.slane %v346, 4
  %vm349 = vcmask 138240
  %v350 = vsel %vm349, %v347, %v344
  %v351 = vsel %vm163, %v347, %v348
  %v352 = vsel %vm349, %v351, %v346
  %vm353 = vcmp.ne.s16.totalorder %v350, 0
  %vm354 = vcmp.ne.s16.totalorder %v352, 0
  %vm355 = vcmp.ne.s16.totalorder %v348, 0
  %v356 = vsel %vm353, %v252, 0
  %v357 = vsel %vm354, %v253, 0
  %v358 = vsel %vm355, %v254, 0
  %v359 = vsel %vm353, %v255, 0
  %v360 = vsel %vm354, %v256, 0
  %v361 = vsel %vm355, %v257, 0
  %v368 = vunpack.c.l.b16 %v169
  %v369 = vunpack.c.h.b16 %v169
  %v370 = vunpack.c.l.b16 %v170
  %v371 = vunpack.c.h.b16 %v170
  %v372 = vunpack.c.l.b16 %v171
  %v373 = vunpack.c.l.b16 %v172
  %v374 = vunpack.c.h.b16 %v172
  %v375 = vunpack.c.l.b16 %v173
  %v376 = vunpack.c.h.b16 %v173
  %v377 = vunpack.c.l.b16 %v174
  %v378 = vpack.c.b16 %v373, %v368
  %v379 = vpack.c.b16 %v374, %v369
  %v380 = vpack.c.b16 %v375, %v370
  %v381 = vpack.c.b16 %v376, %v371
  %v382 = vpack.c.b16 %v377, %v372
  %v389 = vunpack.c.l.b16 %v192
  %v390 = vunpack.c.h.b16 %v192
  %v391 = vunpack.c.l.b16 %v193
  %v392 = vunpack.c.h.b16 %v193
  %v393 = vunpack.c.l.b16 %v194
  %v394 = vunpack.c.l.b16 %v195
  %v395 = vunpack.c.h.b16 %v195
  %v396 = vunpack.c.l.b16 %v196
  %v397 = vunpack.c.h.b16 %v196
  %v398 = vunpack.c.l.b16 %v197
  %v399 = vpack.c.b16 %v394, %v389
  %v400 = vpack.c.b16 %v395, %v390
  %v401 = vpack.c.b16 %v396, %v391
  %v402 = vpack.c.b16 %v397, %v392
  %v403 = vpack.c.b16 %v398, %v393
  %404 = vrot.lane.b32.xlu0 %v399, 127
  %v405 = vpop.permute.xlu0 %404
  %406 = vrot.lane.b32.xlu0 %v400, 127
  %v407 = vpop.permute.xlu0 %406
  %408 = vrot.lane.b32.xlu0 %v401, 127
  %v409 = vpop.permute.xlu0 %408
  %410 = vrot.lane.b32.xlu0 %v402, 127
  %v411 = vpop.permute.xlu0 %410
  %412 = vrot.lane.b32.xlu0 %v403, 127
  %v413 = vpop.permute.xlu0 %412
  %v414 = vsel %vm239, %v405, %v407
  %v415 = vsel %vm239, %v407, %v409
  %v416 = vsel %vm239, %v409, %v411
  %v417 = vsel %vm239, %v411, %v413
  %v424 = vunpack.c.l.b16 %v223
  %v425 = vunpack.c.h.b16 %v223
  %v426 = vunpack.c.l.b16 %v224
  %v427 = vunpack.c.h.b16 %v224
  %v428 = vunpack.c.l.b16 %v225
  %v429 = vunpack.c.l.b16 %v226
  %v430 = vunpack.c.h.b16 %v226
  %v431 = vunpack.c.l.b16 %v227
  %v432 = vunpack.c.h.b16 %v227
  %v433 = vunpack.c.l.b16 %v228
  %v434 = vpack.c.b16 %v429, %v424
  %v435 = vpack.c.b16 %v430, %v425
  %v436 = vpack.c.b16 %v431, %v426
  %v437 = vpack.c.b16 %v432, %v427
  %v438 = vpack.c.b16 %v433, %v428
  %439 = vrot.lane.b32.xlu0 %v434, 126
  %v440 = vpop.permute.xlu0 %439
  %441 = vrot.lane.b32.xlu0 %v435, 126
  %v442 = vpop.permute.xlu0 %441
  %443 = vrot.lane.b32.xlu0 %v436, 126
  %v444 = vpop.permute.xlu0 %443
  %445 = vrot.lane.b32.xlu0 %v437, 126
  %v446 = vpop.permute.xlu0 %445
  %447 = vrot.lane.b32.xlu0 %v438, 126
  %v448 = vpop.permute.xlu0 %447
  %vm449 = vcmask 1031168
  %v450 = vsel %vm449, %v440, %v442
  %v451 = vsel %vm449, %v442, %v444
  %v452 = vsel %vm449, %v444, %v446
  %v453 = vsel %vm449, %v446, %v448
  %v460 = vunpack.c.l.b16 %v246
  %v461 = vunpack.c.h.b16 %v246
  %v462 = vunpack.c.l.b16 %v247
  %v463 = vunpack.c.h.b16 %v247
  %v464 = vunpack.c.l.b16 %v248
  %v465 = vunpack.c.l.b16 %v249
  %v466 = vunpack.c.h.b16 %v249
  %v467 = vunpack.c.l.b16 %v250
  %v468 = vunpack.c.h.b16 %v250
  %v469 = vunpack.c.l.b16 %v251
  %v470 = vpack.c.b16 %v465, %v460
  %v471 = vpack.c.b16 %v466, %v461
  %v472 = vpack.c.b16 %v467, %v462
  %v473 = vpack.c.b16 %v468, %v463
  %v474 = vpack.c.b16 %v469, %v464
  %475 = vrot.lane.b32.xlu0 %v470, 112
  %v476 = vpop.permute.xlu0 %475
  %477 = vrot.lane.b32.xlu0 %v471, 112
  %v478 = vpop.permute.xlu0 %477
  %479 = vrot.lane.b32.xlu0 %v472, 112
  %v480 = vpop.permute.xlu0 %479
  %481 = vrot.lane.b32.xlu0 %v473, 112
  %v482 = vpop.permute.xlu0 %481
  %483 = vrot.lane.b32.xlu0 %v474, 112
  %v484 = vpop.permute.xlu0 %483
  %v485 = vsel %vm185, %v476, %v478
  %v486 = vsel %vm185, %v478, %v480
  %v487 = vsel %vm185, %v480, %v482
  %v488 = vsel %vm185, %v482, %v484
  %489 = vrot.lane.b32.xlu0 %v88, 111
  %v490 = vpop.permute.xlu0 %489
  %491 = vrot.lane.b32.xlu0 %v89, 111
  %v492 = vpop.permute.xlu0 %491
  %493 = vrot.lane.b32.xlu0 %v90, 111
  %v494 = vpop.permute.xlu0 %493
  %495 = vrot.lane.b32.xlu0 %v91, 111
  %v496 = vpop.permute.xlu0 %495
  %v497 = vsel %vm161, %v490, %v492
  %v498 = vsel %vm161, %v492, %v494
  %v499 = vsel %vm161, %v494, %v496
  %v506 = vunpack.c.l.b16 %v275
  %v507 = vunpack.c.h.b16 %v275
  %v508 = vunpack.c.l.b16 %v276
  %v509 = vunpack.c.h.b16 %v276
  %v510 = vunpack.c.l.b16 %v277
  %v511 = vunpack.c.l.b16 %v278
  %v512 = vunpack.c.h.b16 %v278
  %v513 = vunpack.c.l.b16 %v279
  %v514 = vunpack.c.h.b16 %v279
  %v515 = vunpack.c.l.b16 %v280
  %v516 = vpack.c.b16 %v511, %v506
  %v517 = vpack.c.b16 %v512, %v507
  %v518 = vpack.c.b16 %v513, %v508
  %v519 = vpack.c.b16 %v514, %v509
  %v520 = vpack.c.b16 %v515, %v510
  %521 = vrot.lane.b32.xlu0 %v516, 110
  %v522 = vpop.permute.xlu0 %521
  %523 = vrot.lane.b32.xlu0 %v517, 110
  %v524 = vpop.permute.xlu0 %523
  %525 = vrot.lane.b32.xlu0 %v518, 110
  %v526 = vpop.permute.xlu0 %525
  %527 = vrot.lane.b32.xlu0 %v519, 110
  %v528 = vpop.permute.xlu0 %527
  %529 = vrot.lane.b32.xlu0 %v520, 110
  %v530 = vpop.permute.xlu0 %529
  %vm531 = vcmask 900096
  %v532 = vsel %vm531, %v522, %v524
  %v533 = vsel %vm531, %v524, %v526
  %v534 = vsel %vm531, %v526, %v528
  %v535 = vsel %vm531, %v528, %v530
  %v542 = vunpack.c.l.b16 %v306
  %v543 = vunpack.c.h.b16 %v306
  %v544 = vunpack.c.l.b16 %v307
  %v545 = vunpack.c.h.b16 %v307
  %v546 = vunpack.c.l.b16 %v308
  %v547 = vunpack.c.l.b16 %v309
  %v548 = vunpack.c.h.b16 %v309
  %v549 = vunpack.c.l.b16 %v310
  %v550 = vunpack.c.h.b16 %v310
  %v551 = vunpack.c.l.b16 %v311
  %v552 = vpack.c.b16 %v547, %v542
  %v553 = vpack.c.b16 %v548, %v543
  %v554 = vpack.c.b16 %v549, %v544
  %v555 = vpack.c.b16 %v550, %v545
  %v556 = vpack.c.b16 %v551, %v546
  %557 = vrot.lane.b32.xlu0 %v552, 96
  %v558 = vpop.permute.xlu0 %557
  %559 = vrot.lane.b32.xlu0 %v553, 96
  %v560 = vpop.permute.xlu0 %559
  %561 = vrot.lane.b32.xlu0 %v554, 96
  %v562 = vpop.permute.xlu0 %561
  %563 = vrot.lane.b32.xlu0 %v555, 96
  %v564 = vpop.permute.xlu0 %563
  %565 = vrot.lane.b32.xlu0 %v556, 96
  %v566 = vpop.permute.xlu0 %565
  %vm567 = vcmask 785408
  %v568 = vsel %vm567, %v558, %v560
  %v569 = vsel %vm567, %v560, %v562
  %v570 = vsel %vm567, %v562, %v564
  %v571 = vsel %vm567, %v564, %v566
  %v578 = vunpack.c.l.b16 %v329
  %v579 = vunpack.c.h.b16 %v329
  %v580 = vunpack.c.l.b16 %v330
  %v581 = vunpack.c.h.b16 %v330
  %v582 = vunpack.c.l.b16 %v331
  %v583 = vunpack.c.l.b16 %v332
  %v584 = vunpack.c.h.b16 %v332
  %v585 = vunpack.c.l.b16 %v333
  %v586 = vunpack.c.h.b16 %v333
  %v587 = vunpack.c.l.b16 %v334
  %v588 = vpack.c.b16 %v583, %v578
  %v589 = vpack.c.b16 %v584, %v579
  %v590 = vpack.c.b16 %v585, %v580
  %v591 = vpack.c.b16 %v586, %v581
  %v592 = vpack.c.b16 %v587, %v582
  %593 = vrot.lane.b32.xlu0 %v588, 95
  %v594 = vpop.permute.xlu0 %593
  %595 = vrot.lane.b32.xlu0 %v589, 95
  %v596 = vpop.permute.xlu0 %595
  %597 = vrot.lane.b32.xlu0 %v590, 95
  %v598 = vpop.permute.xlu0 %597
  %599 = vrot.lane.b32.xlu0 %v591, 95
  %v600 = vpop.permute.xlu0 %599
  %601 = vrot.lane.b32.xlu0 %v592, 95
  %v602 = vpop.permute.xlu0 %601
  %vm603 = vcmask 777216
  %v604 = vsel %vm603, %v594, %v596
  %v605 = vsel %vm603, %v596, %v598
  %v606 = vsel %vm603, %v598, %v600
  %v607 = vsel %vm603, %v600, %v602
  %v614 = vunpack.c.l.b16 %v356
  %v615 = vunpack.c.h.b16 %v356
  %v616 = vunpack.c.l.b16 %v357
  %v617 = vunpack.c.h.b16 %v357
  %v618 = vunpack.c.l.b16 %v358
  %v619 = vunpack.c.l.b16 %v359
  %v620 = vunpack.c.h.b16 %v359
  %v621 = vunpack.c.l.b16 %v360
  %v622 = vunpack.c.h.b16 %v360
  %v623 = vunpack.c.l.b16 %v361
  %v624 = vpack.c.b16 %v619, %v614
  %v625 = vpack.c.b16 %v620, %v615
  %v626 = vpack.c.b16 %v621, %v616
  %v627 = vpack.c.b16 %v622, %v617
  %v628 = vpack.c.b16 %v623, %v618
  %629 = vrot.lane.b32.xlu0 %v624, 94
  %v630 = vpop.permute.xlu0 %629
  %631 = vrot.lane.b32.xlu0 %v625, 94
  %v632 = vpop.permute.xlu0 %631
  %633 = vrot.lane.b32.xlu0 %v626, 94
  %v634 = vpop.permute.xlu0 %633
  %635 = vrot.lane.b32.xlu0 %v627, 94
  %v636 = vpop.permute.xlu0 %635
  %637 = vrot.lane.b32.xlu0 %v628, 94
  %v638 = vpop.permute.xlu0 %637
  %vm639 = vcmask 769024
  %v640 = vsel %vm639, %v630, %v632
  %v641 = vsel %vm639, %v632, %v634
  %v642 = vsel %vm639, %v634, %v636
  %v643 = vsel %vm639, %v636, %v638
  %v644 = vld [vmem:[%s3] sm:$0xff]
  %v645 = vld [vmem:[%s3 + $0x8] sm:$0xff]
  %v648 = vunpack.c.l.b16 %v644
  %v649 = vunpack.c.h.b16 %v644
  %v650 = vunpack.c.l.b16 %v645
  %v651 = vunpack.c.h.b16 %v645
  %v652 = vpack.c.b16 %v650, %v648
  %v653 = vpack.c.b16 %v651, %v649
  %655 = vrot.lane.b32.xlu0 %v378, 17
  %v656 = vpop.permute.xlu0 %655
  %657 = vrot.lane.b32.xlu0 %v379, 17
  %v658 = vpop.permute.xlu0 %657
  %659 = vrot.lane.b32.xlu0 %v380, 17
  %v660 = vpop.permute.xlu0 %659
  %661 = vrot.lane.b32.xlu0 %v381, 17
  %v662 = vpop.permute.xlu0 %661
  %663 = vrot.lane.b32.xlu0 %v382, 17
  %v664 = vpop.permute.xlu0 %663
  %665 = vrot.lane.b32.xlu0 %v414, 17
  %v666 = vpop.permute.xlu0 %665
  %667 = vrot.lane.b32.xlu0 %v415, 17
  %v668 = vpop.permute.xlu0 %667
  %669 = vrot.lane.b32.xlu0 %v416, 17
  %v670 = vpop.permute.xlu0 %669
  %671 = vrot.lane.b32.xlu0 %v417, 17
  %v672 = vpop.permute.xlu0 %671
  %673 = vrot.lane.b32.xlu0 %v413, 17
  %v674 = vpop.permute.xlu0 %673
  %675 = vrot.lane.b32.xlu0 %v450, 17
  %v676 = vpop.permute.xlu0 %675
  %677 = vrot.lane.b32.xlu0 %v451, 17
  %v678 = vpop.permute.xlu0 %677
  %679 = vrot.lane.b32.xlu0 %v452, 17
  %v680 = vpop.permute.xlu0 %679
  %681 = vrot.lane.b32.xlu0 %v453, 17
  %v682 = vpop.permute.xlu0 %681
  %683 = vrot.lane.b32.xlu0 %v448, 17
  %v684 = vpop.permute.xlu0 %683
  %685 = vrot.lane.b32.xlu0 %v485, 17
  %v686 = vpop.permute.xlu0 %685
  %687 = vrot.lane.b32.xlu0 %v486, 17
  %v688 = vpop.permute.xlu0 %687
  %689 = vrot.lane.b32.xlu0 %v487, 17
  %v690 = vpop.permute.xlu0 %689
  %691 = vrot.lane.b32.xlu0 %v488, 17
  %v692 = vpop.permute.xlu0 %691
  %693 = vrot.lane.b32.xlu0 %v484, 17
  %v694 = vpop.permute.xlu0 %693
  %695 = vrot.lane.b32.xlu0 %v490, 17
  %v696 = vpop.permute.xlu0 %695
  %697 = vrot.lane.b32.xlu0 %v497, 17
  %v698 = vpop.permute.xlu0 %697
  %699 = vrot.lane.b32.xlu0 %v498, 17
  %v700 = vpop.permute.xlu0 %699
  %701 = vrot.lane.b32.xlu0 %v499, 17
  %v702 = vpop.permute.xlu0 %701
  %703 = vrot.lane.b32.xlu0 %v496, 17
  %v704 = vpop.permute.xlu0 %703
  %705 = vrot.lane.b32.xlu0 %v522, 17
  %v706 = vpop.permute.xlu0 %705
  %707 = vrot.lane.b32.xlu0 %v532, 17
  %v708 = vpop.permute.xlu0 %707
  %709 = vrot.lane.b32.xlu0 %v533, 17
  %v710 = vpop.permute.xlu0 %709
  %711 = vrot.lane.b32.xlu0 %v534, 17
  %v712 = vpop.permute.xlu0 %711
  %713 = vrot.lane.b32.xlu0 %v535, 17
  %v714 = vpop.permute.xlu0 %713
  %715 = vrot.lane.b32.xlu0 %v558, 17
  %v716 = vpop.permute.xlu0 %715
  %717 = vrot.lane.b32.xlu0 %v568, 17
  %v718 = vpop.permute.xlu0 %717
  %719 = vrot.lane.b32.xlu0 %v569, 17
  %v720 = vpop.permute.xlu0 %719
  %721 = vrot.lane.b32.xlu0 %v570, 17
  %v722 = vpop.permute.xlu0 %721
  %723 = vrot.lane.b32.xlu0 %v571, 17
  %v724 = vpop.permute.xlu0 %723
  %725 = vrot.lane.b32.xlu0 %v594, 17
  %v726 = vpop.permute.xlu0 %725
  %727 = vrot.lane.b32.xlu0 %v604, 17
  %v728 = vpop.permute.xlu0 %727
  %729 = vrot.lane.b32.xlu0 %v605, 17
  %v730 = vpop.permute.xlu0 %729
  %731 = vrot.lane.b32.xlu0 %v606, 17
  %v732 = vpop.permute.xlu0 %731
  %733 = vrot.lane.b32.xlu0 %v607, 17
  %v734 = vpop.permute.xlu0 %733
  %735 = vrot.lane.b32.xlu0 %v630, 17
  %v736 = vpop.permute.xlu0 %735
  %737 = vrot.lane.b32.xlu0 %v640, 17
  %v738 = vpop.permute.xlu0 %737
  %739 = vrot.lane.b32.xlu0 %v641, 17
  %v740 = vpop.permute.xlu0 %739
  %741 = vrot.lane.b32.xlu0 %v642, 17
  %v742 = vpop.permute.xlu0 %741
  %743 = vrot.lane.b32.xlu0 %v643, 17
  %v744 = vpop.permute.xlu0 %743
  %v745 = vsel %vm349, %v656, %v658
  %v746 = vsel %vm349, %v658, %v660
  %v747 = vsel %vm349, %v660, %v662
  %v748 = vsel %vm349, %v662, %v664
  %v749 = vsel %vm349, %v666, %v668
  %v750 = vsel %vm349, %v668, %v670
  %v751 = vsel %vm349, %v670, %v672
  %v752 = vsel %vm349, %v672, %v674
  %v753 = vsel %vm349, %v676, %v678
  %v754 = vsel %vm349, %v678, %v680
  %v755 = vsel %vm349, %v680, %v682
  %v756 = vsel %vm349, %v682, %v684
  %v757 = vsel %vm349, %v686, %v688
  %v758 = vsel %vm349, %v688, %v690
  %v759 = vsel %vm349, %v690, %v692
  %v760 = vsel %vm349, %v692, %v694
  %v761 = vsel %vm349, %v696, %v698
  %v762 = vsel %vm349, %v698, %v700
  %v763 = vsel %vm349, %v700, %v702
  %v764 = vsel %vm349, %v702, %v704
  %v765 = vsel %vm349, %v706, %v708
  %v766 = vsel %vm349, %v708, %v710
  %v767 = vsel %vm349, %v710, %v712
  %v768 = vsel %vm349, %v712, %v714
  %v769 = vsel %vm349, %v716, %v718
  %v770 = vsel %vm349, %v718, %v720
  %v771 = vsel %vm349, %v720, %v722
  %v772 = vsel %vm349, %v722, %v724
  %v773 = vsel %vm349, %v726, %v728
  %v774 = vsel %vm349, %v728, %v730
  %v775 = vsel %vm349, %v730, %v732
  %v776 = vsel %vm349, %v732, %v734
  %v777 = vsel %vm349, %v736, %v738
  %v778 = vsel %vm349, %v738, %v740
  %v779 = vsel %vm349, %v740, %v742
  %v780 = vsel %vm349, %v742, %v744
  %vm817 = vcmask 130048
  %v819 = vsel %vm817, %v653, 0
  %821 = vmatprep.subr.bf16.mxu0 %v774
  %822 = vmatpush1.bf16.msra.mxu0 %v773
  %823 = vmatprep.subr.bf16.mxu0 %v770
  %824 = vmatpush1.bf16.msra.mxu0 %v769
  %825 = vmatprep.subr.bf16.mxu0 %v766
  %826 = vmatpush1.bf16.msra.mxu0 %v765
  %827 = vmatprep.subr.bf16.mxu0 %v762
  %828 = vmatpush1.bf16.msra.mxu0 %v761
  %829 = vmatprep.subr.bf16.mxu0 %v758
  %830 = vmatpush1.bf16.msra.mxu0 %v757
  %831 = vmatprep.subr.bf16.mxu0 %v754
  %832 = vmatpush1.bf16.msra.mxu0 %v753
  %833 = vmatprep.subr.bf16.mxu0 %v750
  %834 = vmatpush1.bf16.msra.mxu0 %v749
  %835 = vmatprep.subr.bf16.mxu0 %v746
  %836 = vmatpush1.bf16.msra.mxu0 %v745
  %837 = vmatprep.subr.bf16.mxu0 0
  %838 = vmatpush2.bf16.msra.mxu0 0
  %839 = vmatprep.subr.bf16.mxu0 0
  %840 = vmatpush2.bf16.msra.mxu0 0
  %841 = vmatprep.subr.bf16.mxu0 0
  %842 = vmatpush2.bf16.msra.mxu0 0
  %843 = vmatprep.subr.bf16.mxu0 0
  %844 = vmatpush2.bf16.msra.mxu0 0
  %845 = vmatprep.subr.bf16.mxu0 0
  %846 = vmatpush2.bf16.msra.mxu0 0
  %847 = vmatprep.subr.bf16.mxu0 0
  %848 = vmatpush2.bf16.msra.mxu0 0
  %849 = vmatprep.subr.bf16.mxu0 0
  %850 = vmatpush2.bf16.msra.mxu0 0
  %851 = vmatprep.subr.bf16.mxu0 %v778
  %852 = vmatpush2.bf16.msra.mxu0 %v777
  %853 = vmatprep.mubr.bf16.mxu0 %v819
  %854 = vmatmul.mubr.bf16.gmra.mxu0 %v652
  %v855 = vpop.f32.mrf.mxu0
  %v856 = vadd.f32 0.0, %v855
  %v857 = vpop.f32.mrf.mxu0
  %v858 = vadd.f32 0.0, %v857
  %v859 = vpop.f32.mrf.mxu0
  %v860 = vadd.f32 0.0, %v859
  %v861 = vpop.f32.mrf.mxu0
  %v862 = vadd.f32 0.0, %v861
  %863 = vdwg.mxu0
  %864 = vmatprep.subr.bf16.mxu0 %v776
  %865 = vmatpush1.bf16.msra.mxu0 %v775
  %866 = vmatprep.subr.bf16.mxu0 %v772
  %867 = vmatpush1.bf16.msra.mxu0 %v771
  %868 = vmatprep.subr.bf16.mxu0 %v768
  %869 = vmatpush1.bf16.msra.mxu0 %v767
  %870 = vmatprep.subr.bf16.mxu0 %v764
  %871 = vmatpush1.bf16.msra.mxu0 %v763
  %872 = vmatprep.subr.bf16.mxu0 %v760
  %873 = vmatpush1.bf16.msra.mxu0 %v759
  %874 = vmatprep.subr.bf16.mxu0 %v756
  %875 = vmatpush1.bf16.msra.mxu0 %v755
  %876 = vmatprep.subr.bf16.mxu0 %v752
  %877 = vmatpush1.bf16.msra.mxu0 %v751
  %878 = vmatprep.subr.bf16.mxu0 %v748
  %879 = vmatpush1.bf16.msra.mxu0 %v747
  %880 = vmatprep.subr.bf16.mxu0 0
  %881 = vmatpush2.bf16.msra.mxu0 0
  %882 = vmatprep.subr.bf16.mxu0 0
  %883 = vmatpush2.bf16.msra.mxu0 0
  %884 = vmatprep.subr.bf16.mxu0 0
  %885 = vmatpush2.bf16.msra.mxu0 0
  %886 = vmatprep.subr.bf16.mxu0 0
  %887 = vmatpush2.bf16.msra.mxu0 0
  %888 = vmatprep.subr.bf16.mxu0 0
  %889 = vmatpush2.bf16.msra.mxu0 0
  %890 = vmatprep.subr.bf16.mxu0 0
  %891 = vmatpush2.bf16.msra.mxu0 0
  %892 = vmatprep.subr.bf16.mxu0 0
  %893 = vmatpush2.bf16.msra.mxu0 0
  %894 = vmatprep.subr.bf16.mxu0 %v780
  %895 = vmatpush2.bf16.msra.mxu0 %v779
  %896 = vmatprep.mubr.bf16.mxu0 %v819
  %897 = vmatmul.mubr.bf16.gmra.mxu0 %v652
  %v898 = vpop.f32.mrf.mxu0
  %v899 = vadd.f32 0.0, %v898
  %v900 = vpop.f32.mrf.mxu0
  %v901 = vadd.f32 0.0, %v900
  %v902 = vpop.f32.mrf.mxu0
  %v903 = vadd.f32 0.0, %v902
  %v904 = vpop.f32.mrf.mxu0
  %v905 = vadd.f32 0.0, %v904
  %906 = vdwg.mxu0
  %v907 = vld [vmem:[%s8] sm:$0xff]
  %v908 = vld [vmem:[%s8 + $0x8] sm:$0xff]
  %910 = vset.pattern.permute.xlu0 0
  %911 = vperm.xlu0 %910, %v907
  %v912 = vpop.permute.xlu0 %911
  %915 = vset.pattern.permute.xlu0 0
  %916 = vperm.xlu0 %915, %v908
  %v917 = vpop.permute.xlu0 %916
  %v919 = vmul.f32 %v856, %v912
  %v920 = vmul.f32 %v858, %v912
  %v921 = vmul.f32 %v899, %v912
  %v922 = vmul.f32 %v901, %v912
  %v923 = vmul.f32 %v860, %v917
  %v924 = vmul.f32 %v862, %v917
  %v925 = vmul.f32 %v903, %v917
  %v926 = vmul.f32 %v905, %v917
  %v927 = vld [vmem:[%s7] sm:$0xff]
  %v928 = vld [vmem:[%s7 + $0x8] sm:$0xff]
  %930 = vset.pattern.permute.xlu0 0
  %931 = vperm.xlu0 %930, %v927
  %v932 = vpop.permute.xlu0 %931
  %935 = vset.pattern.permute.xlu0 0
  %936 = vperm.xlu0 %935, %v928
  %v937 = vpop.permute.xlu0 %936
  %v939 = vadd.f32 %v919, %v932
  %v940 = vadd.f32 %v920, %v932
  %v941 = vadd.f32 %v921, %v932
  %v942 = vadd.f32 %v922, %v932
  %v943 = vadd.f32 %v923, %v937
  %v944 = vadd.f32 %v924, %v937
  %v945 = vadd.f32 %v925, %v937
  %v946 = vadd.f32 %v926, %v937
  %v947 = vmax.f32 %v939, 0.0
  %v948 = vmax.f32 %v940, 0.0
  %v949 = vmax.f32 %v941, 0.0
  %v950 = vmax.f32 %v942, 0.0
  %v951 = vmax.f32 %v943, 0.0
  %v952 = vmax.f32 %v944, 0.0
  %v953 = vmax.f32 %v945, 0.0
  %v954 = vmax.f32 %v946, 0.0
  %v955 = vpack.c.bf16 %v951, %v947
  %v956 = vpack.c.bf16 %v952, %v948
  %v957 = vpack.c.bf16 %v953, %v949
  %v958 = vpack.c.bf16 %v954, %v950
  %v963 = vunpack.c.l.b16 %v955
  %v964 = vunpack.c.l.b16 %v956
  %v965 = vunpack.c.l.b16 %v957
  %v966 = vunpack.c.l.b16 %v958
  %v967 = vunpack.c.h.b16 %v955
  %v968 = vunpack.c.h.b16 %v956
  %v969 = vunpack.c.h.b16 %v957
  %v970 = vunpack.c.h.b16 %v958
  %v971 = vpack.c.b16 %v964, %v963
  %v972 = vpack.c.b16 %v966, %v965
  %v973 = vpack.c.b16 %v968, %v967
  %v974 = vpack.c.b16 %v970, %v969
  %979 = vst [vmem:[#allocation2 + $0x4] sm:$0xff] %v971
  %980 = vst [vmem:[#allocation2 + $0xc] sm:$0xff] %v972
  %981 = vst [vmem:[#allocation2 + $0x1c] sm:$0xff] %v973
  %982 = vst [vmem:[#allocation2 + $0x24] sm:$0xff] %v974
  %v983 = vld [vmem:[#allocation2] sm:$0xff]
  %v984 = vld [vmem:[#allocation2 + $0x8] sm:$0xff]
  %v985 = vld [vmem:[#allocation2 + $0x10] sm:$0xf]
  %v986 = vld [vmem:[#allocation2 + $0x18] sm:$0xff]
  %v987 = vld [vmem:[#allocation2 + $0x20] sm:$0xff]
  %v988 = vld [vmem:[#allocation2 + $0x28] sm:$0xf]
  %v989 = vsel %vm166, %v983, 0
  %v990 = vsel %vm167, %v984, 0
  %v991 = vsel %vm168, %v985, 0
  %v992 = vsel %vm166, %v986, 0
  %v993 = vsel %vm167, %v987, 0
  %v994 = vsel %vm168, %v988, 0
  %v995 = vsel %vm189, %v983, 0
  %v996 = vsel %vm190, %v984, 0
  %v997 = vsel %vm191, %v985, 0
  %v998 = vsel %vm189, %v986, 0
  %v999 = vsel %vm190, %v987, 0
  %v1000 = vsel %vm191, %v988, 0
  %v1001 = vsel %vm220, %v983, 0
  %v1002 = vsel %vm221, %v984, 0
  %v1003 = vsel %vm222, %v985, 0
  %v1004 = vsel %vm220, %v986, 0
  %v1005 = vsel %vm221, %v987, 0
  %v1006 = vsel %vm222, %v988, 0
  %v1007 = vsel %vm243, %v983, 0
  %v1008 = vsel %vm244, %v984, 0
  %v1009 = vsel %vm245, %v985, 0
  %v1010 = vsel %vm243, %v986, 0
  %v1011 = vsel %vm244, %v987, 0
  %v1012 = vsel %vm245, %v988, 0
  %v1013 = vld [vmem:[#allocation2 + $0x4] sm:$0xff]
  %v1014 = vld [vmem:[#allocation2 + $0xc] sm:$0xff]
  %v1015 = vld [vmem:[#allocation2 + $0x14] sm:$0xf]
  %v1016 = vld [vmem:[#allocation2 + $0x1c] sm:$0xff]
  %v1017 = vld [vmem:[#allocation2 + $0x24] sm:$0xff]
  %v1018 = vld [vmem:[#allocation2 + $0x2c] sm:$0xf]
  %v1019 = vsel %vm272, %v1013, 0
  %v1020 = vsel %vm273, %v1014, 0
  %v1021 = vsel %vm274, %v1015, 0
  %v1022 = vsel %vm272, %v1016, 0
  %v1023 = vsel %vm273, %v1017, 0
  %v1024 = vsel %vm274, %v1018, 0
  %v1025 = vsel %vm303, %v1013, 0
  %v1026 = vsel %vm304, %v1014, 0
  %v1027 = vsel %vm305, %v1015, 0
  %v1028 = vsel %vm303, %v1016, 0
  %v1029 = vsel %vm304, %v1017, 0
  %v1030 = vsel %vm305, %v1018, 0
  %v1031 = vsel %vm326, %v1013, 0
  %v1032 = vsel %vm327, %v1014, 0
  %v1033 = vsel %vm328, %v1015, 0
  %v1034 = vsel %vm326, %v1016, 0
  %v1035 = vsel %vm327, %v1017, 0
  %v1036 = vsel %vm328, %v1018, 0
  %v1037 = vsel %vm353, %v1013, 0
  %v1038 = vsel %vm354, %v1014, 0
  %v1039 = vsel %vm355, %v1015, 0
  %v1040 = vsel %vm353, %v1016, 0
  %v1041 = vsel %vm354, %v1017, 0
  %v1042 = vsel %vm355, %v1018, 0
  %v1049 = vunpack.c.l.b16 %v989
  %v1050 = vunpack.c.h.b16 %v989
  %v1051 = vunpack.c.l.b16 %v990
  %v1052 = vunpack.c.h.b16 %v990
  %v1053 = vunpack.c.l.b16 %v991
  %v1054 = vunpack.c.l.b16 %v992
  %v1055 = vunpack.c.h.b16 %v992
  %v1056 = vunpack.c.l.b16 %v993
  %v1057 = vunpack.c.h.b16 %v993
  %v1058 = vunpack.c.l.b16 %v994
  %v1059 = vpack.c.b16 %v1054, %v1049
  %v1060 = vpack.c.b16 %v1055, %v1050
  %v1061 = vpack.c.b16 %v1056, %v1051
  %v1062 = vpack.c.b16 %v1057, %v1052
  %v1063 = vpack.c.b16 %v1058, %v1053
  %v1070 = vunpack.c.l.b16 %v995
  %v1071 = vunpack.c.h.b16 %v995
  %v1072 = vunpack.c.l.b16 %v996
  %v1073 = vunpack.c.h.b16 %v996
  %v1074 = vunpack.c.l.b16 %v997
  %v1075 = vunpack.c.l.b16 %v998
  %v1076 = vunpack.c.h.b16 %v998
  %v1077 = vunpack.c.l.b16 %v999
  %v1078 = vunpack.c.h.b16 %v999
  %v1079 = vunpack.c.l.b16 %v1000
  %v1080 = vpack.c.b16 %v1075, %v1070
  %v1081 = vpack.c.b16 %v1076, %v1071
  %v1082 = vpack.c.b16 %v1077, %v1072
  %v1083 = vpack.c.b16 %v1078, %v1073
  %v1084 = vpack.c.b16 %v1079, %v1074
  %1085 = vrot.lane.b32.xlu0 %v1080, 127
  %v1086 = vpop.permute.xlu0 %1085
  %1087 = vrot.lane.b32.xlu0 %v1081, 127
  %v1088 = vpop.permute.xlu0 %1087
  %1089 = vrot.lane.b32.xlu0 %v1082, 127
  %v1090 = vpop.permute.xlu0 %1089
  %1091 = vrot.lane.b32.xlu0 %v1083, 127
  %v1092 = vpop.permute.xlu0 %1091
  %1093 = vrot.lane.b32.xlu0 %v1084, 127
  %v1094 = vpop.permute.xlu0 %1093
  %v1095 = vsel %vm239, %v1086, %v1088
  %v1096 = vsel %vm239, %v1088, %v1090
  %v1097 = vsel %vm239, %v1090, %v1092
  %v1098 = vsel %vm239, %v1092, %v1094
  %v1105 = vunpack.c.l.b16 %v1001
  %v1106 = vunpack.c.h.b16 %v1001
  %v1107 = vunpack.c.l.b16 %v1002
  %v1108 = vunpack.c.h.b16 %v1002
  %v1109 = vunpack.c.l.b16 %v1003
  %v1110 = vunpack.c.l.b16 %v1004
  %v1111 = vunpack.c.h.b16 %v1004
  %v1112 = vunpack.c.l.b16 %v1005
  %v1113 = vunpack.c.h.b16 %v1005
  %v1114 = vunpack.c.l.b16 %v1006
  %v1115 = vpack.c.b16 %v1110, %v1105
  %v1116 = vpack.c.b16 %v1111, %v1106
  %v1117 = vpack.c.b16 %v1112, %v1107
  %v1118 = vpack.c.b16 %v1113, %v1108
  %v1119 = vpack.c.b16 %v1114, %v1109
  %1120 = vrot.lane.b32.xlu0 %v1115, 126
  %v1121 = vpop.permute.xlu0 %1120
  %1122 = vrot.lane.b32.xlu0 %v1116, 126
  %v1123 = vpop.permute.xlu0 %1122
  %1124 = vrot.lane.b32.xlu0 %v1117, 126
  %v1125 = vpop.permute.xlu0 %1124
  %1126 = vrot.lane.b32.xlu0 %v1118, 126
  %v1127 = vpop.permute.xlu0 %1126
  %1128 = vrot.lane.b32.xlu0 %v1119, 126
  %v1129 = vpop.permute.xlu0 %1128
  %v1130 = vsel %vm449, %v1121, %v1123
  %v1131 = vsel %vm449, %v1123, %v1125
  %v1132 = vsel %vm449, %v1125, %v1127
  %v1133 = vsel %vm449, %v1127, %v1129
  %v1140 = vunpack.c.l.b16 %v1007
  %v1141 = vunpack.c.h.b16 %v1007
  %v1142 = vunpack.c.l.b16 %v1008
  %v1143 = vunpack.c.h.b16 %v1008
  %v1144 = vunpack.c.l.b16 %v1009
  %v1145 = vunpack.c.l.b16 %v1010
  %v1146 = vunpack.c.h.b16 %v1010
  %v1147 = vunpack.c.l.b16 %v1011
  %v1148 = vunpack.c.h.b16 %v1011
  %v1149 = vunpack.c.l.b16 %v1012
  %v1150 = vpack.c.b16 %v1145, %v1140
  %v1151 = vpack.c.b16 %v1146, %v1141
  %v1152 = vpack.c.b16 %v1147, %v1142
  %v1153 = vpack.c.b16 %v1148, %v1143
  %v1154 = vpack.c.b16 %v1149, %v1144
  %1155 = vrot.lane.b32.xlu0 %v1150, 112
  %v1156 = vpop.permute.xlu0 %1155
  %1157 = vrot.lane.b32.xlu0 %v1151, 112
  %v1158 = vpop.permute.xlu0 %1157
  %1159 = vrot.lane.b32.xlu0 %v1152, 112
  %v1160 = vpop.permute.xlu0 %1159
  %1161 = vrot.lane.b32.xlu0 %v1153, 112
  %v1162 = vpop.permute.xlu0 %1161
  %1163 = vrot.lane.b32.xlu0 %v1154, 112
  %v1164 = vpop.permute.xlu0 %1163
  %v1165 = vsel %vm185, %v1156, %v1158
  %v1166 = vsel %vm185, %v1158, %v1160
  %v1167 = vsel %vm185, %v1160, %v1162
  %v1168 = vsel %vm185, %v1162, %v1164
  %1169 = vrot.lane.b32.xlu0 %v955, 111
  %v1170 = vpop.permute.xlu0 %1169
  %1171 = vrot.lane.b32.xlu0 %v956, 111
  %v1172 = vpop.permute.xlu0 %1171
  %1173 = vrot.lane.b32.xlu0 %v957, 111
  %v1174 = vpop.permute.xlu0 %1173
  %1175 = vrot.lane.b32.xlu0 %v958, 111
  %v1176 = vpop.permute.xlu0 %1175
  %v1177 = vsel %vm161, %v1170, %v1172
  %v1178 = vsel %vm161, %v1172, %v1174
  %v1179 = vsel %vm161, %v1174, %v1176
  %v1186 = vunpack.c.l.b16 %v1019
  %v1187 = vunpack.c.h.b16 %v1019
  %v1188 = vunpack.c.l.b16 %v1020
  %v1189 = vunpack.c.h.b16 %v1020
  %v1190 = vunpack.c.l.b16 %v1021
  %v1191 = vunpack.c.l.b16 %v1022
  %v1192 = vunpack.c.h.b16 %v1022
  %v1193 = vunpack.c.l.b16 %v1023
  %v1194 = vunpack.c.h.b16 %v1023
  %v1195 = vunpack.c.l.b16 %v1024
  %v1196 = vpack.c.b16 %v1191, %v1186
  %v1197 = vpack.c.b16 %v1192, %v1187
  %v1198 = vpack.c.b16 %v1193, %v1188
  %v1199 = vpack.c.b16 %v1194, %v1189
  %v1200 = vpack.c.b16 %v1195, %v1190
  %1201 = vrot.lane.b32.xlu0 %v1196, 110
  %v1202 = vpop.permute.xlu0 %1201
  %1203 = vrot.lane.b32.xlu0 %v1197, 110
  %v1204 = vpop.permute.xlu0 %1203
  %1205 = vrot.lane.b32.xlu0 %v1198, 110
  %v1206 = vpop.permute.xlu0 %1205
  %1207 = vrot.lane.b32.xlu0 %v1199, 110
  %v1208 = vpop.permute.xlu0 %1207
  %1209 = vrot.lane.b32.xlu0 %v1200, 110
  %v1210 = vpop.permute.xlu0 %1209
  %v1211 = vsel %vm531, %v1202, %v1204
  %v1212 = vsel %vm531, %v1204, %v1206
  %v1213 = vsel %vm531, %v1206, %v1208
  %v1214 = vsel %vm531, %v1208, %v1210
  %v1221 = vunpack.c.l.b16 %v1025
  %v1222 = vunpack.c.h.b16 %v1025
  %v1223 = vunpack.c.l.b16 %v1026
  %v1224 = vunpack.c.h.b16 %v1026
  %v1225 = vunpack.c.l.b16 %v1027
  %v1226 = vunpack.c.l.b16 %v1028
  %v1227 = vunpack.c.h.b16 %v1028
  %v1228 = vunpack.c.l.b16 %v1029
  %v1229 = vunpack.c.h.b16 %v1029
  %v1230 = vunpack.c.l.b16 %v1030
  %v1231 = vpack.c.b16 %v1226, %v1221
  %v1232 = vpack.c.b16 %v1227, %v1222
  %v1233 = vpack.c.b16 %v1228, %v1223
  %v1234 = vpack.c.b16 %v1229, %v1224
  %v1235 = vpack.c.b16 %v1230, %v1225
  %1236 = vrot.lane.b32.xlu0 %v1231, 96
  %v1237 = vpop.permute.xlu0 %1236
  %1238 = vrot.lane.b32.xlu0 %v1232, 96
  %v1239 = vpop.permute.xlu0 %1238
  %1240 = vrot.lane.b32.xlu0 %v1233, 96
  %v1241 = vpop.permute.xlu0 %1240
  %1242 = vrot.lane.b32.xlu0 %v1234, 96
  %v1243 = vpop.permute.xlu0 %1242
  %1244 = vrot.lane.b32.xlu0 %v1235, 96
  %v1245 = vpop.permute.xlu0 %1244
  %v1246 = vsel %vm567, %v1237, %v1239
  %v1247 = vsel %vm567, %v1239, %v1241
  %v1248 = vsel %vm567, %v1241, %v1243
  %v1249 = vsel %vm567, %v1243, %v1245
  %v1256 = vunpack.c.l.b16 %v1031
  %v1257 = vunpack.c.h.b16 %v1031
  %v1258 = vunpack.c.l.b16 %v1032
  %v1259 = vunpack.c.h.b16 %v1032
  %v1260 = vunpack.c.l.b16 %v1033
  %v1261 = vunpack.c.l.b16 %v1034
  %v1262 = vunpack.c.h.b16 %v1034
  %v1263 = vunpack.c.l.b16 %v1035
  %v1264 = vunpack.c.h.b16 %v1035
  %v1265 = vunpack.c.l.b16 %v1036
  %v1266 = vpack.c.b16 %v1261, %v1256
  %v1267 = vpack.c.b16 %v1262, %v1257
  %v1268 = vpack.c.b16 %v1263, %v1258
  %v1269 = vpack.c.b16 %v1264, %v1259
  %v1270 = vpack.c.b16 %v1265, %v1260
  %1271 = vrot.lane.b32.xlu0 %v1266, 95
  %v1272 = vpop.permute.xlu0 %1271
  %1273 = vrot.lane.b32.xlu0 %v1267, 95
  %v1274 = vpop.permute.xlu0 %1273
  %1275 = vrot.lane.b32.xlu0 %v1268, 95
  %v1276 = vpop.permute.xlu0 %1275
  %1277 = vrot.lane.b32.xlu0 %v1269, 95
  %v1278 = vpop.permute.xlu0 %1277
  %1279 = vrot.lane.b32.xlu0 %v1270, 95
  %v1280 = vpop.permute.xlu0 %1279
  %v1281 = vsel %vm603, %v1272, %v1274
  %v1282 = vsel %vm603, %v1274, %v1276
  %v1283 = vsel %vm603, %v1276, %v1278
  %v1284 = vsel %vm603, %v1278, %v1280
  %v1291 = vunpack.c.l.b16 %v1037
  %v1292 = vunpack.c.h.b16 %v1037
  %v1293 = vunpack.c.l.b16 %v1038
  %v1294 = vunpack.c.h.b16 %v1038
  %v1295 = vunpack.c.l.b16 %v1039
  %v1296 = vunpack.c.l.b16 %v1040
  %v1297 = vunpack.c.h.b16 %v1040
  %v1298 = vunpack.c.l.b16 %v1041
  %v1299 = vunpack.c.h.b16 %v1041
  %v1300 = vunpack.c.l.b16 %v1042
  %v1301 = vpack.c.b16 %v1296, %v1291
  %v1302 = vpack.c.b16 %v1297, %v1292
  %v1303 = vpack.c.b16 %v1298, %v1293
  %v1304 = vpack.c.b16 %v1299, %v1294
  %v1305 = vpack.c.b16 %v1300, %v1295
  %1306 = vrot.lane.b32.xlu0 %v1301, 94
  %v1307 = vpop.permute.xlu0 %1306
  %1308 = vrot.lane.b32.xlu0 %v1302, 94
  %v1309 = vpop.permute.xlu0 %1308
  %1310 = vrot.lane.b32.xlu0 %v1303, 94
  %v1311 = vpop.permute.xlu0 %1310
  %1312 = vrot.lane.b32.xlu0 %v1304, 94
  %v1313 = vpop.permute.xlu0 %1312
  %1314 = vrot.lane.b32.xlu0 %v1305, 94
  %v1315 = vpop.permute.xlu0 %1314
  %v1316 = vsel %vm639, %v1307, %v1309
  %v1317 = vsel %vm639, %v1309, %v1311
  %v1318 = vsel %vm639, %v1311, %v1313
  %v1319 = vsel %vm639, %v1313, %v1315
  %v1320 = vld [vmem:[%s9] sm:$0xff]
  %v1322 = vunpack.c.l.b16 %v1320
  %v1323 = vunpack.c.h.b16 %v1320
  %v1324 = vpack.c.b16 %v1322, %v1322
  %v1325 = vpack.c.b16 %v1323, %v1323
  %1327 = vrot.lane.b32.xlu0 %v1059, 17
  %v1328 = vpop.permute.xlu0 %1327
  %1329 = vrot.lane.b32.xlu0 %v1060, 17
  %v1330 = vpop.permute.xlu0 %1329
  %1331 = vrot.lane.b32.xlu0 %v1061, 17
  %v1332 = vpop.permute.xlu0 %1331
  %1333 = vrot.lane.b32.xlu0 %v1062, 17
  %v1334 = vpop.permute.xlu0 %1333
  %1335 = vrot.lane.b32.xlu0 %v1063, 17
  %v1336 = vpop.permute.xlu0 %1335
  %1337 = vrot.lane.b32.xlu0 %v1095, 17
  %v1338 = vpop.permute.xlu0 %1337
  %1339 = vrot.lane.b32.xlu0 %v1096, 17
  %v1340 = vpop.permute.xlu0 %1339
  %1341 = vrot.lane.b32.xlu0 %v1097, 17
  %v1342 = vpop.permute.xlu0 %1341
  %1343 = vrot.lane.b32.xlu0 %v1098, 17
  %v1344 = vpop.permute.xlu0 %1343
  %1345 = vrot.lane.b32.xlu0 %v1094, 17
  %v1346 = vpop.permute.xlu0 %1345
  %1347 = vrot.lane.b32.xlu0 %v1130, 17
  %v1348 = vpop.permute.xlu0 %1347
  %1349 = vrot.lane.b32.xlu0 %v1131, 17
  %v1350 = vpop.permute.xlu0 %1349
  %1351 = vrot.lane.b32.xlu0 %v1132, 17
  %v1352 = vpop.permute.xlu0 %1351
  %1353 = vrot.lane.b32.xlu0 %v1133, 17
  %v1354 = vpop.permute.xlu0 %1353
  %1355 = vrot.lane.b32.xlu0 %v1129, 17
  %v1356 = vpop.permute.xlu0 %1355
  %1357 = vrot.lane.b32.xlu0 %v1165, 17
  %v1358 = vpop.permute.xlu0 %1357
  %1359 = vrot.lane.b32.xlu0 %v1166, 17
  %v1360 = vpop.permute.xlu0 %1359
  %1361 = vrot.lane.b32.xlu0 %v1167, 17
  %v1362 = vpop.permute.xlu0 %1361
  %1363 = vrot.lane.b32.xlu0 %v1168, 17
  %v1364 = vpop.permute.xlu0 %1363
  %1365 = vrot.lane.b32.xlu0 %v1164, 17
  %v1366 = vpop.permute.xlu0 %1365
  %1367 = vrot.lane.b32.xlu0 %v1170, 17
  %v1368 = vpop.permute.xlu0 %1367
  %1369 = vrot.lane.b32.xlu0 %v1177, 17
  %v1370 = vpop.permute.xlu0 %1369
  %1371 = vrot.lane.b32.xlu0 %v1178, 17
  %v1372 = vpop.permute.xlu0 %1371
  %1373 = vrot.lane.b32.xlu0 %v1179, 17
  %v1374 = vpop.permute.xlu0 %1373
  %1375 = vrot.lane.b32.xlu0 %v1176, 17
  %v1376 = vpop.permute.xlu0 %1375
  %1377 = vrot.lane.b32.xlu0 %v1202, 17
  %v1378 = vpop.permute.xlu0 %1377
  %1379 = vrot.lane.b32.xlu0 %v1211, 17
  %v1380 = vpop.permute.xlu0 %1379
  %1381 = vrot.lane.b32.xlu0 %v1212, 17
  %v1382 = vpop.permute.xlu0 %1381
  %1383 = vrot.lane.b32.xlu0 %v1213, 17
  %v1384 = vpop.permute.xlu0 %1383
  %1385 = vrot.lane.b32.xlu0 %v1214, 17
  %v1386 = vpop.permute.xlu0 %1385
  %1387 = vrot.lane.b32.xlu0 %v1237, 17
  %v1388 = vpop.permute.xlu0 %1387
  %1389 = vrot.lane.b32.xlu0 %v1246, 17
  %v1390 = vpop.permute.xlu0 %1389
  %1391 = vrot.lane.b32.xlu0 %v1247, 17
  %v1392 = vpop.permute.xlu0 %1391
  %1393 = vrot.lane.b32.xlu0 %v1248, 17
  %v1394 = vpop.permute.xlu0 %1393
  %1395 = vrot.lane.b32.xlu0 %v1249, 17
  %v1396 = vpop.permute.xlu0 %1395
  %1397 = vrot.lane.b32.xlu0 %v1272, 17
  %v1398 = vpop.permute.xlu0 %1397
  %1399 = vrot.lane.b32.xlu0 %v1281, 17
  %v1400 = vpop.permute.xlu0 %1399
  %1401 = vrot.lane.b32.xlu0 %v1282, 17
  %v1402 = vpop.permute.xlu0 %1401
  %1403 = vrot.lane.b32.xlu0 %v1283, 17
  %v1404 = vpop.permute.xlu0 %1403
  %1405 = vrot.lane.b32.xlu0 %v1284, 17
  %v1406 = vpop.permute.xlu0 %1405
  %1407 = vrot.lane.b32.xlu0 %v1307, 17
  %v1408 = vpop.permute.xlu0 %1407
  %1409 = vrot.lane.b32.xlu0 %v1316, 17
  %v1410 = vpop.permute.xlu0 %1409
  %1411 = vrot.lane.b32.xlu0 %v1317, 17
  %v1412 = vpop.permute.xlu0 %1411
  %1413 = vrot.lane.b32.xlu0 %v1318, 17
  %v1414 = vpop.permute.xlu0 %1413
  %1415 = vrot.lane.b32.xlu0 %v1319, 17
  %v1416 = vpop.permute.xlu0 %1415
  %v1417 = vsel %vm349, %v1328, %v1330
  %v1418 = vsel %vm349, %v1330, %v1332
  %v1419 = vsel %vm349, %v1332, %v1334
  %v1420 = vsel %vm349, %v1334, %v1336
  %v1421 = vsel %vm349, %v1338, %v1340
  %v1422 = vsel %vm349, %v1340, %v1342
  %v1423 = vsel %vm349, %v1342, %v1344
  %v1424 = vsel %vm349, %v1344, %v1346
  %v1425 = vsel %vm349, %v1348, %v1350
  %v1426 = vsel %vm349, %v1350, %v1352
  %v1427 = vsel %vm349, %v1352, %v1354
  %v1428 = vsel %vm349, %v1354, %v1356
  %v1429 = vsel %vm349, %v1358, %v1360
  %v1430 = vsel %vm349, %v1360, %v1362
  %v1431 = vsel %vm349, %v1362, %v1364
  %v1432 = vsel %vm349, %v1364, %v1366
  %v1433 = vsel %vm349, %v1368, %v1370
  %v1434 = vsel %vm349, %v1370, %v1372
  %v1435 = vsel %vm349, %v1372, %v1374
  %v1436 = vsel %vm349, %v1374, %v1376
  %v1437 = vsel %vm349, %v1378, %v1380
  %v1438 = vsel %vm349, %v1380, %v1382
  %v1439 = vsel %vm349, %v1382, %v1384
  %v1440 = vsel %vm349, %v1384, %v1386
  %v1441 = vsel %vm349, %v1388, %v1390
  %v1442 = vsel %vm349, %v1390, %v1392
  %v1443 = vsel %vm349, %v1392, %v1394
  %v1444 = vsel %vm349, %v1394, %v1396
  %v1445 = vsel %vm349, %v1398, %v1400
  %v1446 = vsel %vm349, %v1400, %v1402
  %v1447 = vsel %vm349, %v1402, %v1404
  %v1448 = vsel %vm349, %v1404, %v1406
  %v1449 = vsel %vm349, %v1408, %v1410
  %v1450 = vsel %vm349, %v1410, %v1412
  %v1451 = vsel %vm349, %v1412, %v1414
  %v1452 = vsel %vm349, %v1414, %v1416
  %v1490 = vsel %vm817, %v1325, 0
  %1492 = vmatprep.subr.bf16.mxu0 %v1446
  %1493 = vmatpush1.bf16.msra.mxu0 %v1445
  %1494 = vmatprep.subr.bf16.mxu0 %v1442
  %1495 = vmatpush1.bf16.msra.mxu0 %v1441
  %1496 = vmatprep.subr.bf16.mxu0 %v1438
  %1497 = vmatpush1.bf16.msra.mxu0 %v1437
  %1498 = vmatprep.subr.bf16.mxu0 %v1434
  %1499 = vmatpush1.bf16.msra.mxu0 %v1433
  %1500 = vmatprep.subr.bf16.mxu0 %v1430
  %1501 = vmatpush1.bf16.msra.mxu0 %v1429
  %1502 = vmatprep.subr.bf16.mxu0 %v1426
  %1503 = vmatpush1.bf16.msra.mxu0 %v1425
  %1504 = vmatprep.subr.bf16.mxu0 %v1422
  %1505 = vmatpush1.bf16.msra.mxu0 %v1421
  %1506 = vmatprep.subr.bf16.mxu0 %v1418
  %1507 = vmatpush1.bf16.msra.mxu0 %v1417
  %1508 = vmatprep.subr.bf16.mxu0 0
  %1509 = vmatpush2.bf16.msra.mxu0 0
  %1510 = vmatprep.subr.bf16.mxu0 0
  %1511 = vmatpush2.bf16.msra.mxu0 0
  %1512 = vmatprep.subr.bf16.mxu0 0
  %1513 = vmatpush2.bf16.msra.mxu0 0
  %1514 = vmatprep.subr.bf16.mxu0 0
  %1515 = vmatpush2.bf16.msra.mxu0 0
  %1516 = vmatprep.subr.bf16.mxu0 0
  %1517 = vmatpush2.bf16.msra.mxu0 0
  %1518 = vmatprep.subr.bf16.mxu0 0
  %1519 = vmatpush2.bf16.msra.mxu0 0
  %1520 = vmatprep.subr.bf16.mxu0 0
  %1521 = vmatpush2.bf16.msra.mxu0 0
  %1522 = vmatprep.subr.bf16.mxu0 %v1450
  %1523 = vmatpush2.bf16.msra.mxu0 %v1449
  %1524 = vmatprep.mubr.bf16.mxu0 %v1490
  %1525 = vmatmul.mubr.bf16.gmra.mxu0 %v1324
  %v1526 = vpop.f32.mrf.mxu0
  %v1527 = vadd.f32 0.0, %v1526
  %v1528 = vpop.f32.mrf.mxu0
  %v1529 = vadd.f32 0.0, %v1528
  %v1530 = vpop.f32.mrf.mxu0
  %v1531 = vpop.f32.mrf.mxu0
  %1532 = vdwg.mxu0
  %1533 = vmatprep.subr.bf16.mxu0 %v1448
  %1534 = vmatpush1.bf16.msra.mxu0 %v1447
  %1535 = vmatprep.subr.bf16.mxu0 %v1444
  %1536 = vmatpush1.bf16.msra.mxu0 %v1443
  %1537 = vmatprep.subr.bf16.mxu0 %v1440
  %1538 = vmatpush1.bf16.msra.mxu0 %v1439
  %1539 = vmatprep.subr.bf16.mxu0 %v1436
  %1540 = vmatpush1.bf16.msra.mxu0 %v1435
  %1541 = vmatprep.subr.bf16.mxu0 %v1432
  %1542 = vmatpush1.bf16.msra.mxu0 %v1431
  %1543 = vmatprep.subr.bf16.mxu0 %v1428
  %1544 = vmatpush1.bf16.msra.mxu0 %v1427
  %1545 = vmatprep.subr.bf16.mxu0 %v1424
  %1546 = vmatpush1.bf16.msra.mxu0 %v1423
  %1547 = vmatprep.subr.bf16.mxu0 %v1420
  %1548 = vmatpush1.bf16.msra.mxu0 %v1419
  %1549 = vmatprep.subr.bf16.mxu0 0
  %1550 = vmatpush2.bf16.msra.mxu0 0
  %1551 = vmatprep.subr.bf16.mxu0 0
  %1552 = vmatpush2.bf16.msra.mxu0 0
  %1553 = vmatprep.subr.bf16.mxu0 0
  %1554 = vmatpush2.bf16.msra.mxu0 0
  %1555 = vmatprep.subr.bf16.mxu0 0
  %1556 = vmatpush2.bf16.msra.mxu0 0
  %1557 = vmatprep.subr.bf16.mxu0 0
  %1558 = vmatpush2.bf16.msra.mxu0 0
  %1559 = vmatprep.subr.bf16.mxu0 0
  %1560 = vmatpush2.bf16.msra.mxu0 0
  %1561 = vmatprep.subr.bf16.mxu0 0
  %1562 = vmatpush2.bf16.msra.mxu0 0
  %1563 = vmatprep.subr.bf16.mxu0 %v1452
  %1564 = vmatpush2.bf16.msra.mxu0 %v1451
  %1565 = vmatprep.mubr.bf16.mxu0 %v1490
  %1566 = vmatmul.mubr.bf16.gmra.mxu0 %v1324
  %v1567 = vpop.f32.mrf.mxu0
  %v1568 = vadd.f32 0.0, %v1567
  %v1569 = vpop.f32.mrf.mxu0
  %v1570 = vadd.f32 0.0, %v1569
  %v1571 = vpop.f32.mrf.mxu0
  %v1572 = vpop.f32.mrf.mxu0
  %1573 = vdwg.mxu0
  %v1574 = vld [vmem:[%s12] sm:$0xff]
  %v1575 = vld [vmem:[%s12 + $0x8] sm:$0xff]
  %v1576 = vld [vmem:[%s12 + $0x10] sm:$0xff]
  %1578 = vset.pattern.permute.xlu0 0
  %1579 = vperm.xlu0 %1578, %v1574
  %v1580 = vpop.permute.xlu0 %1579
  %1583 = vset.pattern.permute.xlu0 0
  %1584 = vperm.xlu0 %1583, %v1575
  %v1585 = vpop.permute.xlu0 %1584
  %1588 = vset.pattern.permute.xlu0 0
  %1589 = vperm.xlu0 %1588, %v1576
  %v1590 = vpop.permute.xlu0 %1589
  %v1592 = vmul.f32 %v856, %v1580
  %v1593 = vmul.f32 %v858, %v1580
  %v1594 = vmul.f32 %v899, %v1580
  %v1595 = vmul.f32 %v901, %v1580
  %v1596 = vmul.f32 %v860, %v1585
  %v1597 = vmul.f32 %v862, %v1585
  %v1598 = vmul.f32 %v903, %v1585
  %v1599 = vmul.f32 %v905, %v1585
  %v1600 = vmul.f32 %v1527, %v1590
  %v1601 = vmul.f32 %v1529, %v1590
  %v1602 = vmul.f32 %v1568, %v1590
  %v1603 = vmul.f32 %v1570, %v1590
  %v1604 = vld [vmem:[%s10] sm:$0xff]
  %v1605 = vld [vmem:[%s10 + $0x8] sm:$0xff]
  %v1606 = vld [vmem:[%s10 + $0x10] sm:$0xff]
  %1608 = vset.pattern.permute.xlu0 0
  %1609 = vperm.xlu0 %1608, %v1604
  %v1610 = vpop.permute.xlu0 %1609
  %1613 = vset.pattern.permute.xlu0 0
  %1614 = vperm.xlu0 %1613, %v1605
  %v1615 = vpop.permute.xlu0 %1614
  %1618 = vset.pattern.permute.xlu0 0
  %1619 = vperm.xlu0 %1618, %v1606
  %v1620 = vpop.permute.xlu0 %1619
  %v1622 = vadd.f32 %v1592, %v1610
  %v1623 = vadd.f32 %v1593, %v1610
  %v1624 = vadd.f32 %v1594, %v1610
  %v1625 = vadd.f32 %v1595, %v1610
  %v1626 = vadd.f32 %v1596, %v1615
  %v1627 = vadd.f32 %v1597, %v1615
  %v1628 = vadd.f32 %v1598, %v1615
  %v1629 = vadd.f32 %v1599, %v1615
  %v1630 = vadd.f32 %v1600, %v1620
  %v1631 = vadd.f32 %v1601, %v1620
  %v1632 = vadd.f32 %v1602, %v1620
  %v1633 = vadd.f32 %v1603, %v1620
  %v1634 = vmax.f32 %v1622, 0.0
  %v1635 = vmax.f32 %v1623, 0.0
  %v1636 = vmax.f32 %v1624, 0.0
  %v1637 = vmax.f32 %v1625, 0.0
  %v1638 = vmax.f32 %v1626, 0.0
  %v1639 = vmax.f32 %v1627, 0.0
  %v1640 = vmax.f32 %v1628, 0.0
  %v1641 = vmax.f32 %v1629, 0.0
  %v1642 = vmax.f32 %v1630, 0.0
  %v1643 = vmax.f32 %v1631, 0.0
  %v1644 = vmax.f32 %v1632, 0.0
  %v1645 = vmax.f32 %v1633, 0.0
  %v1646 = vpack.c.bf16 %v1638, %v1634
  %v1647 = vpack.c.bf16 %v1639, %v1635
  %v1648 = vpack.c.bf16 %v1640, %v1636
  %v1649 = vpack.c.bf16 %v1641, %v1637
  %v1650 = vpack.c.bf16 %v1642, %v1642
  %v1651 = vpack.c.bf16 %v1643, %v1643
  %v1652 = vpack.c.bf16 %v1644, %v1644
  %v1653 = vpack.c.bf16 %v1645, %v1645
  %v1654 = vld [vmem:[%s13] sm:$0xf]
  %v1655 = vld [vmem:[%s13 + $0x4] sm:$0xf]
  %v1658 = vunpack.c.l.b16 %v1654
  %v1659 = vunpack.c.l.b16 %v1655
  %v1660 = vpack.c.b16 %v1659, %v1658
  %vm1661 = vcmask 195584
  %v1663 = vsel %vm1661, %v1660, 0
  %vm1665 = vcmask 1043456
  %v1667 = vsel %vm1665, %v1650, 0
  %v1670 = vsel %vm1665, %v1651, 0
  %v1673 = vsel %vm1665, %v1652, 0
  %v1676 = vsel %vm1665, %v1653, 0
  %1678 = vmatprep.subr.bf16.mxu0 0
  %1679 = vmatpush1.bf16.msra.mxu0 0
  %1680 = vmatprep.subr.bf16.mxu0 0
  %1681 = vmatpush1.bf16.msra.mxu0 0
  %1682 = vmatprep.subr.bf16.mxu0 0
  %1683 = vmatpush1.bf16.msra.mxu0 0
  %1684 = vmatprep.subr.bf16.mxu0 0
  %1685 = vmatpush1.bf16.msra.mxu0 0
  %1686 = vmatprep.subr.bf16.mxu0 0
  %1687 = vmatpush1.bf16.msra.mxu0 0
  %1688 = vmatprep.subr.bf16.mxu0 0
  %1689 = vmatpush1.bf16.msra.mxu0 0
  %1690 = vmatprep.subr.bf16.mxu0 %v1670
  %1691 = vmatpush1.bf16.msra.mxu0 %v1667
  %1692 = vmatprep.subr.bf16.mxu0 %v1647
  %1693 = vmatpush1.bf16.msra.mxu0 %v1646
  %1694 = vmatprep.subr.bf16.mxu0 0
  %1695 = vmatpush2.bf16.msra.mxu0 0
  %1696 = vmatprep.subr.bf16.mxu0 0
  %1697 = vmatpush2.bf16.msra.mxu0 0
  %1698 = vmatprep.subr.bf16.mxu0 0
  %1699 = vmatpush2.bf16.msra.mxu0 0
  %1700 = vmatprep.subr.bf16.mxu0 0
  %1701 = vmatpush2.bf16.msra.mxu0 0
  %1702 = vmatprep.subr.bf16.mxu0 0
  %1703 = vmatpush2.bf16.msra.mxu0 0
  %1704 = vmatprep.subr.bf16.mxu0 0
  %1705 = vmatpush2.bf16.msra.mxu0 0
  %1706 = vmatprep.subr.bf16.mxu0 0
  %1707 = vmatpush2.bf16.msra.mxu0 0
  %1708 = vmatprep.subr.bf16.mxu0 0
  %1709 = vmatpush2.bf16.msra.mxu0 0
  %1710 = vmatprep.mubr.bf16.mxu0 0
  %1711 = vmatmul.mubr.bf16.gmra.mxu0 %v1663
  %v1712 = vpop.f32.mrf.mxu0
  %v1713 = vadd.f32 0.0, %v1712
  %v1714 = vpop.f32.mrf.mxu0
  %v1715 = vadd.f32 0.0, %v1714
  %v1716 = vpop.f32.mrf.mxu0
  %v1717 = vadd.f32 0.0, %v1716
  %v1718 = vpop.f32.mrf.mxu0
  %v1719 = vadd.f32 0.0, %v1718
  %1720 = vdwg.mxu0
  %1721 = vmatprep.subr.bf16.mxu0 0
  %1722 = vmatpush1.bf16.msra.mxu0 0
  %1723 = vmatprep.subr.bf16.mxu0 0
  %1724 = vmatpush1.bf16.msra.mxu0 0
  %1725 = vmatprep.subr.bf16.mxu0 0
  %1726 = vmatpush1.bf16.msra.mxu0 0
  %1727 = vmatprep.subr.bf16.mxu0 0
  %1728 = vmatpush1.bf16.msra.mxu0 0
  %1729 = vmatprep.subr.bf16.mxu0 0
  %1730 = vmatpush1.bf16.msra.mxu0 0
  %1731 = vmatprep.subr.bf16.mxu0 0
  %1732 = vmatpush1.bf16.msra.mxu0 0
  %1733 = vmatprep.subr.bf16.mxu0 %v1676
  %1734 = vmatpush1.bf16.msra.mxu0 %v1673
  %1735 = vmatprep.subr.bf16.mxu0 %v1649
  %1736 = vmatpush1.bf16.msra.mxu0 %v1648
  %1737 = vmatprep.subr.bf16.mxu0 0
  %1738 = vmatpush2.bf16.msra.mxu0 0
  %1739 = vmatprep.subr.bf16.mxu0 0
  %1740 = vmatpush2.bf16.msra.mxu0 0
  %1741 = vmatprep.subr.bf16.mxu0 0
  %1742 = vmatpush2.bf16.msra.mxu0 0
  %1743 = vmatprep.subr.bf16.mxu0 0
  %1744 = vmatpush2.bf16.msra.mxu0 0
  %1745 = vmatprep.subr.bf16.mxu0 0
  %1746 = vmatpush2.bf16.msra.mxu0 0
  %1747 = vmatprep.subr.bf16.mxu0 0
  %1748 = vmatpush2.bf16.msra.mxu0 0
  %1749 = vmatprep.subr.bf16.mxu0 0
  %1750 = vmatpush2.bf16.msra.mxu0 0
  %1751 = vmatprep.subr.bf16.mxu0 0
  %1752 = vmatpush2.bf16.msra.mxu0 0
  %1753 = vmatprep.mubr.bf16.mxu0 0
  %1754 = vmatmul.mubr.bf16.gmra.mxu0 %v1663
  %v1755 = vpop.f32.mrf.mxu0
  %v1756 = vadd.f32 0.0, %v1755
  %v1757 = vpop.f32.mrf.mxu0
  %v1758 = vadd.f32 0.0, %v1757
  %v1759 = vpop.f32.mrf.mxu0
  %v1760 = vadd.f32 0.0, %v1759
  %v1761 = vpop.f32.mrf.mxu0
  %v1762 = vadd.f32 0.0, %v1761
  %1763 = vdwg.mxu0
  %v1764 = vpack.c.bf16 %v1717, %v1713
  %v1765 = vpack.c.bf16 %v1719, %v1715
  %v1766 = vpack.c.bf16 %v1760, %v1756
  %v1767 = vpack.c.bf16 %v1762, %v1758
  %v1768 = vld [vmem:[%s11] sm:$0xf]
  %v1769 = vld [vmem:[%s11 + $0x4] sm:$0xf]
  %v1770 = vld [vmem:[%s11 + $0x8] sm:$0xf]
  %v1771 = vld [vmem:[%s11 + $0xc] sm:$0xf]
  %v1772 = vld [vmem:[%s11 + $0x10] sm:$0xf]
  %v1773 = vld [vmem:[%s11 + $0x14] sm:$0xf]
  %v1774 = vld [vmem:[%s11 + $0x18] sm:$0xf]
  %v1775 = vld [vmem:[%s11 + $0x1c] sm:$0xf]
  %v1776 = vld [vmem:[%s11 + $0x20] sm:$0xf]
  %v1777 = vld [vmem:[%s11 + $0x24] sm:$0xf]
  %v1778 = vld [vmem:[%s11 + $0x28] sm:$0xf]
  %v1779 = vld [vmem:[%s11 + $0x2c] sm:$0xf]
  %v1780 = vld [vmem:[%s11 + $0x30] sm:$0xf]
  %v1781 = vld [vmem:[%s11 + $0x34] sm:$0xf]
  %v1782 = vld [vmem:[%s11 + $0x38] sm:$0xf]
  %v1783 = vld [vmem:[%s11 + $0x3c] sm:$0xf]
  %v1784 = vld [vmem:[%s11 + $0x40] sm:$0xf]
  %v1785 = vld [vmem:[%s11 + $0x44] sm:$0xf]
  %v1786 = vld [vmem:[%s11 + $0x48] sm:$0xf]
  %v1787 = vld [vmem:[%s11 + $0x4c] sm:$0xf]
  %v1788 = vld [vmem:[%s11 + $0x50] sm:$0xf]
  %v1789 = vld [vmem:[%s11 + $0x54] sm:$0xf]
  %v1790 = vld [vmem:[%s11 + $0x58] sm:$0xf]
  %v1791 = vld [vmem:[%s11 + $0x5c] sm:$0xf]
  %v1792 = vld [vmem:[%s11 + $0x60] sm:$0xf]
  %v1793 = vld [vmem:[%s11 + $0x64] sm:$0xf]
  %v1794 = vld [vmem:[%s11 + $0x68] sm:$0xf]
  %v1795 = vld [vmem:[%s11 + $0x6c] sm:$0xf]
  %v1796 = vld [vmem:[%s11 + $0x70] sm:$0xf]
  %v1797 = vld [vmem:[%s11 + $0x74] sm:$0xf]
  %v1798 = vld [vmem:[%s11 + $0x78] sm:$0xf]
  %v1799 = vld [vmem:[%s11 + $0x7c] sm:$0xf]
  %v1800 = vld [vmem:[%s11 + $0x80] sm:$0xf]
  %v1801 = vld [vmem:[%s11 + $0x84] sm:$0xf]
  %v1802 = vld [vmem:[%s11 + $0x88] sm:$0xf]
  %v1803 = vld [vmem:[%s11 + $0x8c] sm:$0xf]
  %v1804 = vld [vmem:[%s11 + $0x90] sm:$0xf]
  %v1805 = vld [vmem:[%s11 + $0x94] sm:$0xf]
  %v1806 = vld [vmem:[%s11 + $0x98] sm:$0xf]
  %v1807 = vld [vmem:[%s11 + $0x9c] sm:$0xf]
  %v1808 = vld [vmem:[%s11 + $0xa0] sm:$0xf]
  %v1809 = vld [vmem:[%s11 + $0xa4] sm:$0xf]
  %v1810 = vld [vmem:[%s11 + $0xa8] sm:$0xf]
  %v1811 = vld [vmem:[%s11 + $0xac] sm:$0xf]
  %v1812 = vld [vmem:[%s11 + $0xb0] sm:$0xf]
  %v1813 = vld [vmem:[%s11 + $0xb4] sm:$0xf]
  %v1814 = vld [vmem:[%s11 + $0xb8] sm:$0xf]
  %v1815 = vld [vmem:[%s11 + $0xbc] sm:$0xf]
  %v1816 = vld [vmem:[%s11 + $0xc0] sm:$0xf]
  %v1817 = vld [vmem:[%s11 + $0xc4] sm:$0xf]
  %v1818 = vld [vmem:[%s11 + $0xc8] sm:$0xf]
  %v1819 = vld [vmem:[%s11 + $0xcc] sm:$0xf]
  %v1820 = vld [vmem:[%s11 + $0xd0] sm:$0xf]
  %v1821 = vld [vmem:[%s11 + $0xd4] sm:$0xf]
  %v1822 = vld [vmem:[%s11 + $0xd8] sm:$0xf]
  %v1823 = vld [vmem:[%s11 + $0xdc] sm:$0xf]
  %v1824 = vld [vmem:[%s11 + $0xe0] sm:$0xf]
  %v1825 = vld [vmem:[%s11 + $0xe4] sm:$0xf]
  %v1826 = vld [vmem:[%s11 + $0xe8] sm:$0xf]
  %v1827 = vld [vmem:[%s11 + $0xec] sm:$0xf]
  %v1828 = vld [vmem:[%s11 + $0xf0] sm:$0xf]
  %v1829 = vld [vmem:[%s11 + $0xf4] sm:$0xf]
  %v1830 = vld [vmem:[%s11 + $0xf8] sm:$0xf]
  %v1831 = vld [vmem:[%s11 + $0xfc] sm:$0xf]
  %v1896 = vunpack.c.l.b16 %v1768
  %v1897 = vunpack.c.l.b16 %v1769
  %v1898 = vunpack.c.l.b16 %v1770
  %v1899 = vunpack.c.l.b16 %v1771
  %v1900 = vunpack.c.l.b16 %v1772
  %v1901 = vunpack.c.l.b16 %v1773
  %v1902 = vunpack.c.l.b16 %v1774
  %v1903 = vunpack.c.l.b16 %v1775
  %v1904 = vunpack.c.l.b16 %v1776
  %v1905 = vunpack.c.l.b16 %v1777
  %v1906 = vunpack.c.l.b16 %v1778
  %v1907 = vunpack.c.l.b16 %v1779
  %v1908 = vunpack.c.l.b16 %v1780
  %v1909 = vunpack.c.l.b16 %v1781
  %v1910 = vunpack.c.l.b16 %v1782
  %v1911 = vunpack.c.l.b16 %v1783
  %v1912 = vunpack.c.l.b16 %v1784
  %v1913 = vunpack.c.l.b16 %v1785
  %v1914 = vunpack.c.l.b16 %v1786
  %v1915 = vunpack.c.l.b16 %v1787
  %v1916 = vunpack.c.l.b16 %v1788
  %v1917 = vunpack.c.l.b16 %v1789
  %v1918 = vunpack.c.l.b16 %v1790
  %v1919 = vunpack.c.l.b16 %v1791
  %v1920 = vunpack.c.l.b16 %v1792
  %v1921 = vunpack.c.l.b16 %v1793
  %v1922 = vunpack.c.l.b16 %v1794
  %v1923 = vunpack.c.l.b16 %v1795
  %v1924 = vunpack.c.l.b16 %v1796
  %v1925 = vunpack.c.l.b16 %v1797
  %v1926 = vunpack.c.l.b16 %v1798
  %v1927 = vunpack.c.l.b16 %v1799
  %v1928 = vunpack.c.l.b16 %v1800
  %v1929 = vunpack.c.l.b16 %v1801
  %v1930 = vunpack.c.l.b16 %v1802
  %v1931 = vunpack.c.l.b16 %v1803
  %v1932 = vunpack.c.l.b16 %v1804
  %v1933 = vunpack.c.l.b16 %v1805
  %v1934 = vunpack.c.l.b16 %v1806
  %v1935 = vunpack.c.l.b16 %v1807
  %v1936 = vunpack.c.l.b16 %v1808
  %v1937 = vunpack.c.l.b16 %v1809
  %v1938 = vunpack.c.l.b16 %v1810
  %v1939 = vunpack.c.l.b16 %v1811
  %v1940 = vunpack.c.l.b16 %v1812
  %v1941 = vunpack.c.l.b16 %v1813
  %v1942 = vunpack.c.l.b16 %v1814
  %v1943 = vunpack.c.l.b16 %v1815
  %v1944 = vunpack.c.l.b16 %v1816
  %v1945 = vunpack.c.l.b16 %v1817
  %v1946 = vunpack.c.l.b16 %v1818
  %v1947 = vunpack.c.l.b16 %v1819
  %v1948 = vunpack.c.l.b16 %v1820
  %v1949 = vunpack.c.l.b16 %v1821
  %v1950 = vunpack.c.l.b16 %v1822
  %v1951 = vunpack.c.l.b16 %v1823
  %v1952 = vunpack.c.l.b16 %v1824
  %v1953 = vunpack.c.l.b16 %v1825
  %v1954 = vunpack.c.l.b16 %v1826
  %v1955 = vunpack.c.l.b16 %v1827
  %v1956 = vunpack.c.l.b16 %v1828
  %v1957 = vunpack.c.l.b16 %v1829
  %v1958 = vunpack.c.l.b16 %v1830
  %v1959 = vunpack.c.l.b16 %v1831
  %v1960 = vpack.c.b16 %v1897, %v1896
  %v1961 = vpack.c.b16 %v1899, %v1898
  %v1962 = vpack.c.b16 %v1901, %v1900
  %v1963 = vpack.c.b16 %v1903, %v1902
  %v1964 = vpack.c.b16 %v1905, %v1904
  %v1965 = vpack.c.b16 %v1907, %v1906
  %v1966 = vpack.c.b16 %v1909, %v1908
  %v1967 = vpack.c.b16 %v1911, %v1910
  %v1968 = vpack.c.b16 %v1913, %v1912
  %v1969 = vpack.c.b16 %v1915, %v1914
  %v1970 = vpack.c.b16 %v1917, %v1916
  %v1971 = vpack.c.b16 %v1919, %v1918
  %v1972 = vpack.c.b16 %v1921, %v1920
  %v1973 = vpack.c.b16 %v1923, %v1922
  %v1974 = vpack.c.b16 %v1925, %v1924
  %v1975 = vpack.c.b16 %v1927, %v1926
  %v1976 = vpack.c.b16 %v1929, %v1928
  %v1977 = vpack.c.b16 %v1931, %v1930
  %v1978 = vpack.c.b16 %v1933, %v1932
  %v1979 = vpack.c.b16 %v1935, %v1934
  %v1980 = vpack.c.b16 %v1937, %v1936
  %v1981 = vpack.c.b16 %v1939, %v1938
  %v1982 = vpack.c.b16 %v1941, %v1940
  %v1983 = vpack.c.b16 %v1943, %v1942
  %v1984 = vpack.c.b16 %v1945, %v1944
  %v1985 = vpack.c.b16 %v1947, %v1946
  %v1986 = vpack.c.b16 %v1949, %v1948
  %v1987 = vpack.c.b16 %v1951, %v1950
  %v1988 = vpack.c.b16 %v1953, %v1952
  %v1989 = vpack.c.b16 %v1955, %v1954
  %v1990 = vpack.c.b16 %v1957, %v1956
  %v1991 = vpack.c.b16 %v1959, %v1958
  %2024 = vmatprep.subr.bf16.mxu0 0
  %2025 = vmatpush1.bf16.msra.mxu0 %v1967
  %2026 = vmatprep.subr.bf16.mxu0 0
  %2027 = vmatpush1.bf16.msra.mxu0 %v1966
  %2028 = vmatprep.subr.bf16.mxu0 0
  %2029 = vmatpush1.bf16.msra.mxu0 %v1965
  %2030 = vmatprep.subr.bf16.mxu0 0
  %2031 = vmatpush1.bf16.msra.mxu0 %v1964
  %2032 = vmatprep.subr.bf16.mxu0 0
  %2033 = vmatpush1.bf16.msra.mxu0 %v1963
  %2034 = vmatprep.subr.bf16.mxu0 0
  %2035 = vmatpush1.bf16.msra.mxu0 %v1962
  %2036 = vmatprep.subr.bf16.mxu0 0
  %2037 = vmatpush1.bf16.msra.mxu0 %v1961
  %2038 = vmatprep.subr.bf16.mxu0 0
  %2039 = vmatpush1.bf16.msra.mxu0 %v1960
  %2040 = vmatprep.subr.bf16.mxu0 0
  %2041 = vmatpush2.bf16.msra.mxu0 %v1975
  %2042 = vmatprep.subr.bf16.mxu0 0
  %2043 = vmatpush2.bf16.msra.mxu0 %v1974
  %2044 = vmatprep.subr.bf16.mxu0 0
  %2045 = vmatpush2.bf16.msra.mxu0 %v1973
  %2046 = vmatprep.subr.bf16.mxu0 0
  %2047 = vmatpush2.bf16.msra.mxu0 %v1972
  %2048 = vmatprep.subr.bf16.mxu0 0
  %2049 = vmatpush2.bf16.msra.mxu0 %v1971
  %2050 = vmatprep.subr.bf16.mxu0 0
  %2051 = vmatpush2.bf16.msra.mxu0 %v1970
  %2052 = vmatprep.subr.bf16.mxu0 0
  %2053 = vmatpush2.bf16.msra.mxu0 %v1969
  %2054 = vmatprep.subr.bf16.mxu0 0
  %2055 = vmatpush2.bf16.msra.mxu0 %v1968
  %2056 = vmatprep.mubr.bf16.mxu0 %v1765
  %2057 = vmatmul.mubr.bf16.gmra.mxu0 %v1764
  %v2058 = vpop.f32.mrf.mxu0
  %v2059 = vadd.f32 0.0, %v2058
  %v2060 = vpop.f32.mrf.mxu0
  %v2061 = vpop.f32.mrf.mxu0
  %v2062 = vadd.f32 0.0, %v2061
  %v2063 = vpop.f32.mrf.mxu0
  %2064 = vdwg.mxu0
  %2065 = vmatprep.subr.bf16.mxu0 0
  %2066 = vmatpush1.bf16.msra.mxu0 %v1983
  %2067 = vmatprep.subr.bf16.mxu0 0
  %2068 = vmatpush1.bf16.msra.mxu0 %v1982
  %2069 = vmatprep.subr.bf16.mxu0 0
  %2070 = vmatpush1.bf16.msra.mxu0 %v1981
  %2071 = vmatprep.subr.bf16.mxu0 0
  %2072 = vmatpush1.bf16.msra.mxu0 %v1980
  %2073 = vmatprep.subr.bf16.mxu0 0
  %2074 = vmatpush1.bf16.msra.mxu0 %v1979
  %2075 = vmatprep.subr.bf16.mxu0 0
  %2076 = vmatpush1.bf16.msra.mxu0 %v1978
  %2077 = vmatprep.subr.bf16.mxu0 0
  %2078 = vmatpush1.bf16.msra.mxu0 %v1977
  %2079 = vmatprep.subr.bf16.mxu0 0
  %2080 = vmatpush1.bf16.msra.mxu0 %v1976
  %2081 = vmatprep.subr.bf16.mxu0 0
  %2082 = vmatpush2.bf16.msra.mxu0 %v1991
  %2083 = vmatprep.subr.bf16.mxu0 0
  %2084 = vmatpush2.bf16.msra.mxu0 %v1990
  %2085 = vmatprep.subr.bf16.mxu0 0
  %2086 = vmatpush2.bf16.msra.mxu0 %v1989
  %2087 = vmatprep.subr.bf16.mxu0 0
  %2088 = vmatpush2.bf16.msra.mxu0 %v1988
  %2089 = vmatprep.subr.bf16.mxu0 0
  %2090 = vmatpush2.bf16.msra.mxu0 %v1987
  %2091 = vmatprep.subr.bf16.mxu0 0
  %2092 = vmatpush2.bf16.msra.mxu0 %v1986
  %2093 = vmatprep.subr.bf16.mxu0 0
  %2094 = vmatpush2.bf16.msra.mxu0 %v1985
  %2095 = vmatprep.subr.bf16.mxu0 0
  %2096 = vmatpush2.bf16.msra.mxu0 %v1984
  %2097 = vmatprep.mubr.bf16.mxu0 %v1767
  %2098 = vmatmul.mubr.bf16.gmra.mxu0 %v1766
  %v2099 = vpop.f32.mrf.mxu0
  %v2100 = vadd.f32 %v2059, %v2099
  %v2101 = vpop.f32.mrf.mxu0
  %v2102 = vpop.f32.mrf.mxu0
  %v2103 = vadd.f32 %v2062, %v2102
  %v2104 = vpop.f32.mrf.mxu0
  %2105 = vdwg.mxu0
  %v2106 = vld [vmem:[%s15] sm:$0xff]
  %v2107 = vld [vmem:[%s15 + $0x8] sm:$0xff]
  %2109 = vset.pattern.permute.xlu0 0
  %2110 = vperm.xlu0 %2109, %v2106
  %v2111 = vpop.permute.xlu0 %2110
  %2114 = vset.pattern.permute.xlu0 0
  %2115 = vperm.xlu0 %2114, %v2107
  %v2116 = vpop.permute.xlu0 %2115
  %v2118 = vmul.f32 %v2100, %v2111
  %v2119 = vmul.f32 %v2103, %v2116
  %v2120 = vld [vmem:[%s14] sm:$0xff]
  %v2121 = vld [vmem:[%s14 + $0x8] sm:$0xff]
  %2123 = vset.pattern.permute.xlu0 0
  %2124 = vperm.xlu0 %2123, %v2120
  %v2125 = vpop.permute.xlu0 %2124
  %2128 = vset.pattern.permute.xlu0 0
  %2129 = vperm.xlu0 %2128, %v2121
  %v2130 = vpop.permute.xlu0 %2129
  %v2132 = vadd.f32 %v2118, %v2125
  %v2133 = vadd.f32 %v2119, %v2130
  %v2134 = vmax.f32 %v2132, 0.0
  %v2135 = vmax.f32 %v2133, 0.0
  %v2136 = vpack.c.bf16 %v2135, %v2134
  %v2138 = vunpack.c.l.b16 %v2136
  %v2139 = vunpack.c.h.b16 %v2136
  %v2140 = vpack.c.b16 %v2138, %v2138
  %v2141 = vpack.c.b16 %v2139, %v2139
  %2144 = vst [vmem:[#allocation2 + $0x4] sm:$0xf] %v2140
  %2145 = vst [vmem:[#allocation2 + $0x1c] sm:$0xf] %v2141
  %v2146 = vshra.s32 %v117, 3
  %v2147 = vand.u32 %v2146, 7
  %v2148 = vand.u32 %v117, 7
  %v2149 = vld [vmem:[#allocation2] sm:$0xff]
  %v2150 = vld [vmem:[#allocation2 + $0x18] sm:$0xff]
  %vm2151 = vcmp.ge.s32.totalorder %v2147, 1
  %vm2152 = vcmp.ge.s32.totalorder %v2148, 1
  %vm2153 = vmand %vm2151, %vm2152
  %vm2154 = vmpackc.low %vm2153, %vm2153
  %v2155 = vsel %vm2154, 65537, 0
  %2156 = vrot.lane.b32.xlu0 %v2155, 119
  %v2157 = vpop.permute.xlu0 %2156
  %v2158 = vrot.slane %v2157, 4
  %vm2159 = vcmask 973824
  %v2160 = vsel %vm2159, %v2158, %v2157
  %vm2161 = vcmp.ne.s16.totalorder %v2160, 0
  %v2162 = vsel %vm2161, %v2149, 0
  %v2163 = vsel %vm2161, %v2150, 0
  %vm2164 = vmpackc.low %vm2151, %vm2151
  %v2165 = vsel %vm2164, 65537, 0
  %2166 = vrot.lane.b32.xlu0 %v2165, 120
  %v2167 = vpop.permute.xlu0 %2166
  %v2168 = vrot.slane %v2167, 4
  %vm2169 = vcmask 982016
  %v2170 = vsel %vm2169, %v2168, %v2167
  %vm2171 = vcmp.ne.s16.totalorder %v2170, 0
  %v2172 = vsel %vm2171, %v2149, 0
  %v2173 = vsel %vm2171, %v2150, 0
  %vm2174 = vcmp.lt.s32.totalorder %v2148, 7
  %vm2175 = vmand %vm2151, %vm2174
  %vm2176 = vmpackc.low %vm2175, %vm2175
  %v2177 = vsel %vm2176, 65537, 0
  %2178 = vrot.lane.b32.xlu0 %v2177, 121
  %v2179 = vpop.permute.xlu0 %2178
  %v2180 = vrot.slane %v2179, 4
  %vm2181 = vcmask 990208
  %v2182 = vsel %vm2181, %v2180, %v2179
  %vm2183 = vcmp.ne.s16.totalorder %v2182, 0
  %v2184 = vsel %vm2183, %v2149, 0
  %v2185 = vsel %vm2183, %v2150, 0
  %vm2186 = vmpackc.low %vm2152, %vm2152
  %v2187 = vsel %vm2186, 65537, 0
  %2188 = vrot.lane.b32.xlu0 %v2187, 127
  %v2189 = vpop.permute.xlu0 %2188
  %v2190 = vrot.slane %v2189, 4
  %v2191 = vsel %vm239, %v2190, %v2189
  %vm2192 = vcmp.ne.s16.totalorder %v2191, 0
  %v2193 = vsel %vm2192, %v2149, 0
  %v2194 = vsel %vm2192, %v2150, 0
  %v2195 = vld [vmem:[#allocation2 + $0x4] sm:$0xff]
  %v2196 = vld [vmem:[#allocation2 + $0x1c] sm:$0xff]
  %vm2197 = vmpackc.low %vm2174, %vm2174
  %v2198 = vsel %vm2197, 65537, 0
  %2199 = vrot.lane.b32.xlu0 %v2198, 1
  %v2200 = vpop.permute.xlu0 %2199
  %v2201 = vrot.slane %v2200, 4
  %v2202 = vsel %vm268, %v2201, %v2200
  %vm2203 = vcmp.ne.s16.totalorder %v2202, 0
  %v2204 = vsel %vm2203, %v2195, 0
  %v2205 = vsel %vm2203, %v2196, 0
  %vm2206 = vcmp.lt.s32.totalorder %v2147, 7
  %vm2207 = vmand %vm2206, %vm2152
  %vm2208 = vmpackc.low %vm2207, %vm2207
  %v2209 = vsel %vm2208, 65537, 0
  %2210 = vrot.lane.b32.xlu0 %v2209, 7
  %v2211 = vpop.permute.xlu0 %2210
  %v2212 = vrot.slane %v2211, 4
  %vm2213 = vcmask 56320
  %v2214 = vsel %vm2213, %v2212, %v2211
  %vm2215 = vcmp.ne.s16.totalorder %v2214, 0
  %v2216 = vsel %vm2215, %v2195, 0
  %v2217 = vsel %vm2215, %v2196, 0
  %vm2218 = vmpackc.low %vm2206, %vm2206
  %v2219 = vsel %vm2218, 65537, 0
  %2220 = vrot.lane.b32.xlu0 %v2219, 8
  %v2221 = vpop.permute.xlu0 %2220
  %v2222 = vrot.slane %v2221, 4
  %vm2223 = vcmask 64512
  %v2224 = vsel %vm2223, %v2222, %v2221
  %vm2225 = vcmp.ne.s16.totalorder %v2224, 0
  %v2226 = vsel %vm2225, %v2195, 0
  %v2227 = vsel %vm2225, %v2196, 0
  %vm2228 = vmand %vm2206, %vm2174
  %vm2229 = vmpackc.low %vm2228, %vm2228
  %v2230 = vsel %vm2229, 65537, 0
  %2231 = vrot.lane.b32.xlu0 %v2230, 9
  %v2232 = vpop.permute.xlu0 %2231
  %v2233 = vrot.slane %v2232, 4
  %vm2234 = vcmask 72704
  %v2235 = vsel %vm2234, %v2233, %v2232
  %vm2236 = vcmp.ne.s16.totalorder %v2235, 0
  %v2237 = vsel %vm2236, %v2195, 0
  %v2238 = vsel %vm2236, %v2196, 0
  %v2241 = vunpack.c.l.b16 %v2162
  %v2242 = vunpack.c.h.b16 %v2162
  %v2243 = vunpack.c.l.b16 %v2163
  %v2244 = vunpack.c.h.b16 %v2163
  %v2245 = vpack.c.b16 %v2243, %v2241
  %v2246 = vpack.c.b16 %v2244, %v2242
  %v2249 = vunpack.c.l.b16 %v2172
  %v2250 = vunpack.c.h.b16 %v2172
  %v2251 = vunpack.c.l.b16 %v2173
  %v2252 = vunpack.c.h.b16 %v2173
  %v2253 = vpack.c.b16 %v2251, %v2249
  %v2254 = vpack.c.b16 %v2252, %v2250
  %2255 = vrot.lane.b32.xlu0 %v2253, 127
  %v2256 = vpop.permute.xlu0 %2255
  %2257 = vrot.lane.b32.xlu0 %v2254, 127
  %v2258 = vpop.permute.xlu0 %2257
  %v2259 = vsel %vm239, %v2256, %v2258
  %v2262 = vunpack.c.l.b16 %v2184
  %v2263 = vunpack.c.h.b16 %v2184
  %v2264 = vunpack.c.l.b16 %v2185
  %v2265 = vunpack.c.h.b16 %v2185
  %v2266 = vpack.c.b16 %v2264, %v2262
  %v2267 = vpack.c.b16 %v2265, %v2263
  %2268 = vrot.lane.b32.xlu0 %v2266, 126
  %v2269 = vpop.permute.xlu0 %2268
  %2270 = vrot.lane.b32.xlu0 %v2267, 126
  %v2271 = vpop.permute.xlu0 %2270
  %v2272 = vsel %vm449, %v2269, %v2271
  %v2275 = vunpack.c.l.b16 %v2193
  %v2276 = vunpack.c.h.b16 %v2193
  %v2277 = vunpack.c.l.b16 %v2194
  %v2278 = vunpack.c.h.b16 %v2194
  %v2279 = vpack.c.b16 %v2277, %v2275
  %v2280 = vpack.c.b16 %v2278, %v2276
  %2281 = vrot.lane.b32.xlu0 %v2279, 120
  %v2282 = vpop.permute.xlu0 %2281
  %2283 = vrot.lane.b32.xlu0 %v2280, 120
  %v2284 = vpop.permute.xlu0 %2283
  %v2285 = vsel %vm2169, %v2282, %v2284
  %2286 = vrot.lane.b32.xlu0 %v2136, 119
  %v2287 = vpop.permute.xlu0 %2286
  %v2290 = vunpack.c.l.b16 %v2204
  %v2291 = vunpack.c.h.b16 %v2204
  %v2292 = vunpack.c.l.b16 %v2205
  %v2293 = vunpack.c.h.b16 %v2205
  %v2294 = vpack.c.b16 %v2292, %v2290
  %v2295 = vpack.c.b16 %v2293, %v2291
  %2296 = vrot.lane.b32.xlu0 %v2294, 118
  %v2297 = vpop.permute.xlu0 %2296
  %2298 = vrot.lane.b32.xlu0 %v2295, 118
  %v2299 = vpop.permute.xlu0 %2298
  %vm2300 = vcmask 965632
  %v2301 = vsel %vm2300, %v2297, %v2299
  %v2304 = vunpack.c.l.b16 %v2216
  %v2305 = vunpack.c.h.b16 %v2216
  %v2306 = vunpack.c.l.b16 %v2217
  %v2307 = vunpack.c.h.b16 %v2217
  %v2308 = vpack.c.b16 %v2306, %v2304
  %v2309 = vpack.c.b16 %v2307, %v2305
  %2310 = vrot.lane.b32.xlu0 %v2308, 112
  %v2311 = vpop.permute.xlu0 %2310
  %2312 = vrot.lane.b32.xlu0 %v2309, 112
  %v2313 = vpop.permute.xlu0 %2312
  %v2314 = vsel %vm185, %v2311, %v2313
  %v2317 = vunpack.c.l.b16 %v2226
  %v2318 = vunpack.c.h.b16 %v2226
  %v2319 = vunpack.c.l.b16 %v2227
  %v2320 = vunpack.c.h.b16 %v2227
  %v2321 = vpack.c.b16 %v2319, %v2317
  %v2322 = vpack.c.b16 %v2320, %v2318
  %2323 = vrot.lane.b32.xlu0 %v2321, 111
  %v2324 = vpop.permute.xlu0 %2323
  %2325 = vrot.lane.b32.xlu0 %v2322, 111
  %v2326 = vpop.permute.xlu0 %2325
  %v2327 = vsel %vm161, %v2324, %v2326
  %v2330 = vunpack.c.l.b16 %v2237
  %v2331 = vunpack.c.h.b16 %v2237
  %v2332 = vunpack.c.l.b16 %v2238
  %v2333 = vunpack.c.h.b16 %v2238
  %v2334 = vpack.c.b16 %v2332, %v2330
  %v2335 = vpack.c.b16 %v2333, %v2331
  %2336 = vrot.lane.b32.xlu0 %v2334, 110
  %v2337 = vpop.permute.xlu0 %2336
  %2338 = vrot.lane.b32.xlu0 %v2335, 110
  %v2339 = vpop.permute.xlu0 %2338
  %v2340 = vsel %vm531, %v2337, %v2339
  %v2341 = vld [vmem:[%s16] sm:$0xff]
  %v2343 = vunpack.c.l.b16 %v2341
  %v2344 = vunpack.c.h.b16 %v2341
  %v2345 = vpack.c.b16 %v2343, %v2343
  %v2346 = vpack.c.b16 %v2344, %v2344
  %2348 = vrot.lane.b32.xlu0 %v2245, 9
  %v2349 = vpop.permute.xlu0 %2348
  %2350 = vrot.lane.b32.xlu0 %v2246, 9
  %v2351 = vpop.permute.xlu0 %2350
  %2352 = vrot.lane.b32.xlu0 %v2259, 9
  %v2353 = vpop.permute.xlu0 %2352
  %2354 = vrot.lane.b32.xlu0 %v2258, 9
  %v2355 = vpop.permute.xlu0 %2354
  %2356 = vrot.lane.b32.xlu0 %v2272, 9
  %v2357 = vpop.permute.xlu0 %2356
  %2358 = vrot.lane.b32.xlu0 %v2271, 9
  %v2359 = vpop.permute.xlu0 %2358
  %2360 = vrot.lane.b32.xlu0 %v2285, 9
  %v2361 = vpop.permute.xlu0 %2360
  %2362 = vrot.lane.b32.xlu0 %v2284, 9
  %v2363 = vpop.permute.xlu0 %2362
  %2364 = vrot.lane.b32.xlu0 %v2287, 9
  %v2365 = vpop.permute.xlu0 %2364
  %2366 = vrot.lane.b32.xlu0 %v2297, 9
  %v2367 = vpop.permute.xlu0 %2366
  %2368 = vrot.lane.b32.xlu0 %v2301, 9
  %v2369 = vpop.permute.xlu0 %2368
  %2370 = vrot.lane.b32.xlu0 %v2311, 9
  %v2371 = vpop.permute.xlu0 %2370
  %2372 = vrot.lane.b32.xlu0 %v2314, 9
  %v2373 = vpop.permute.xlu0 %2372
  %2374 = vrot.lane.b32.xlu0 %v2324, 9
  %v2375 = vpop.permute.xlu0 %2374
  %2376 = vrot.lane.b32.xlu0 %v2327, 9
  %v2377 = vpop.permute.xlu0 %2376
  %2378 = vrot.lane.b32.xlu0 %v2337, 9
  %v2379 = vpop.permute.xlu0 %2378
  %2380 = vrot.lane.b32.xlu0 %v2340, 9
  %v2381 = vpop.permute.xlu0 %2380
  %v2382 = vsel %vm2234, %v2349, %v2351
  %v2383 = vsel %vm2234, %v2353, %v2355
  %v2384 = vsel %vm2234, %v2357, %v2359
  %v2385 = vsel %vm2234, %v2361, %v2363
  %v2386 = vsel %vm2234, %v2367, %v2369
  %v2387 = vsel %vm2234, %v2371, %v2373
  %v2388 = vsel %vm2234, %v2375, %v2377
  %v2389 = vsel %vm2234, %v2379, %v2381
  %v2400 = vsel %vm817, %v2346, 0
  %2402 = vmatprep.subr.bf16.mxu0 0
  %2403 = vmatpush1.bf16.msra.mxu0 %v2388
  %2404 = vmatprep.subr.bf16.mxu0 0
  %2405 = vmatpush1.bf16.msra.mxu0 %v2387
  %2406 = vmatprep.subr.bf16.mxu0 0
  %2407 = vmatpush1.bf16.msra.mxu0 %v2386
  %2408 = vmatprep.subr.bf16.mxu0 0
  %2409 = vmatpush1.bf16.msra.mxu0 %v2365
  %2410 = vmatprep.subr.bf16.mxu0 0
  %2411 = vmatpush1.bf16.msra.mxu0 %v2385
  %2412 = vmatprep.subr.bf16.mxu0 0
  %2413 = vmatpush1.bf16.msra.mxu0 %v2384
  %2414 = vmatprep.subr.bf16.mxu0 0
  %2415 = vmatpush1.bf16.msra.mxu0 %v2383
  %2416 = vmatprep.subr.bf16.mxu0 0
  %2417 = vmatpush1.bf16.msra.mxu0 %v2382
  %2418 = vmatprep.subr.bf16.mxu0 0
  %2419 = vmatpush2.bf16.msra.mxu0 0
  %2420 = vmatprep.subr.bf16.mxu0 0
  %2421 = vmatpush2.bf16.msra.mxu0 0
  %2422 = vmatprep.subr.bf16.mxu0 0
  %2423 = vmatpush2.bf16.msra.mxu0 0
  %2424 = vmatprep.subr.bf16.mxu0 0
  %2425 = vmatpush2.bf16.msra.mxu0 0
  %2426 = vmatprep.subr.bf16.mxu0 0
  %2427 = vmatpush2.bf16.msra.mxu0 0
  %2428 = vmatprep.subr.bf16.mxu0 0
  %2429 = vmatpush2.bf16.msra.mxu0 0
  %2430 = vmatprep.subr.bf16.mxu0 0
  %2431 = vmatpush2.bf16.msra.mxu0 0
  %2432 = vmatprep.subr.bf16.mxu0 0
  %2433 = vmatpush2.bf16.msra.mxu0 %v2389
  %2434 = vmatprep.mubr.bf16.mxu0 %v2400
  %2435 = vmatmul.mubr.bf16.gmra.mxu0 %v2345
  %v2436 = vpop.f32.mrf.mxu0
  %v2437 = vadd.f32 0.0, %v2436
  %v2438 = vpop.f32.mrf.mxu0
  %v2439 = vpop.f32.mrf.mxu0
  %v2440 = vpop.f32.mrf.mxu0
  %2441 = vdwg.mxu0
  %v2442 = vld [vmem:[%s19] sm:$0xff]
  %v2443 = vld [vmem:[%s19 + $0x8] sm:$0xff]
  %v2444 = vld [vmem:[%s19 + $0x10] sm:$0xff]
  %2446 = vset.pattern.permute.xlu0 0
  %2447 = vperm.xlu0 %2446, %v2442
  %v2448 = vpop.permute.xlu0 %2447
  %2451 = vset.pattern.permute.xlu0 0
  %2452 = vperm.xlu0 %2451, %v2443
  %v2453 = vpop.permute.xlu0 %2452
  %2456 = vset.pattern.permute.xlu0 0
  %2457 = vperm.xlu0 %2456, %v2444
  %v2458 = vpop.permute.xlu0 %2457
  %v2460 = vmul.f32 %v2100, %v2448
  %v2461 = vmul.f32 %v2103, %v2453
  %v2462 = vmul.f32 %v2437, %v2458
  %v2463 = vld [vmem:[%s17] sm:$0xff]
  %v2464 = vld [vmem:[%s17 + $0x8] sm:$0xff]
  %v2465 = vld [vmem:[%s17 + $0x10] sm:$0xff]
  %2467 = vset.pattern.permute.xlu0 0
  %2468 = vperm.xlu0 %2467, %v2463
  %v2469 = vpop.permute.xlu0 %2468
  %2472 = vset.pattern.permute.xlu0 0
  %2473 = vperm.xlu0 %2472, %v2464
  %v2474 = vpop.permute.xlu0 %2473
  %2477 = vset.pattern.permute.xlu0 0
  %2478 = vperm.xlu0 %2477, %v2465
  %v2479 = vpop.permute.xlu0 %2478
  %v2481 = vadd.f32 %v2460, %v2469
  %v2482 = vadd.f32 %v2461, %v2474
  %v2483 = vadd.f32 %v2462, %v2479
  %v2484 = vmax.f32 %v2481, 0.0
  %v2485 = vmax.f32 %v2482, 0.0
  %v2486 = vmax.f32 %v2483, 0.0
  %v2487 = vpack.c.bf16 %v2485, %v2484
  %v2488 = vpack.c.bf16 %v2486, %v2486
  %v2489 = vld [vmem:[%s20] sm:$0xf]
  %v2490 = vld [vmem:[%s20 + $0x4] sm:$0xf]
  %v2493 = vunpack.c.l.b16 %v2489
  %v2494 = vunpack.c.l.b16 %v2490
  %v2495 = vpack.c.b16 %v2494, %v2493
  %v2497 = vsel %vm1661, %v2495, 0
  %v2500 = vsel %vm1665, %v2488, 0
  %2502 = vmatprep.subr.bf16.mxu0 0
  %2503 = vmatpush1.bf16.msra.mxu0 0
  %2504 = vmatprep.subr.bf16.mxu0 0
  %2505 = vmatpush1.bf16.msra.mxu0 0
  %2506 = vmatprep.subr.bf16.mxu0 0
  %2507 = vmatpush1.bf16.msra.mxu0 0
  %2508 = vmatprep.subr.bf16.mxu0 0
  %2509 = vmatpush1.bf16.msra.mxu0 0
  %2510 = vmatprep.subr.bf16.mxu0 0
  %2511 = vmatpush1.bf16.msra.mxu0 0
  %2512 = vmatprep.subr.bf16.mxu0 0
  %2513 = vmatpush1.bf16.msra.mxu0 0
  %2514 = vmatprep.subr.bf16.mxu0 0
  %2515 = vmatpush1.bf16.msra.mxu0 %v2500
  %2516 = vmatprep.subr.bf16.mxu0 0
  %2517 = vmatpush1.bf16.msra.mxu0 %v2487
  %2518 = vmatprep.subr.bf16.mxu0 0
  %2519 = vmatpush2.bf16.msra.mxu0 0
  %2520 = vmatprep.subr.bf16.mxu0 0
  %2521 = vmatpush2.bf16.msra.mxu0 0
  %2522 = vmatprep.subr.bf16.mxu0 0
  %2523 = vmatpush2.bf16.msra.mxu0 0
  %2524 = vmatprep.subr.bf16.mxu0 0
  %2525 = vmatpush2.bf16.msra.mxu0 0
  %2526 = vmatprep.subr.bf16.mxu0 0
  %2527 = vmatpush2.bf16.msra.mxu0 0
  %2528 = vmatprep.subr.bf16.mxu0 0
  %2529 = vmatpush2.bf16.msra.mxu0 0
  %2530 = vmatprep.subr.bf16.mxu0 0
  %2531 = vmatpush2.bf16.msra.mxu0 0
  %2532 = vmatprep.subr.bf16.mxu0 0
  %2533 = vmatpush2.bf16.msra.mxu0 0
  %2534 = vmatprep.mubr.bf16.mxu0 0
  %2535 = vmatmul.mubr.bf16.gmra.mxu0 %v2497
  %v2536 = vpop.f32.mrf.mxu0
  %v2537 = vadd.f32 0.0, %v2536
  %v2538 = vpop.f32.mrf.mxu0
  %v2539 = vpop.f32.mrf.mxu0
  %v2540 = vadd.f32 0.0, %v2539
  %v2541 = vpop.f32.mrf.mxu0
  %2542 = vdwg.mxu0
  %v2543 = vpack.c.bf16 %v2540, %v2537
  %v2544 = vld [vmem:[%s18] sm:$0xf]
  %v2545 = vld [vmem:[%s18 + $0x4] sm:$0xf]
  %v2546 = vld [vmem:[%s18 + $0x8] sm:$0xf]
  %v2547 = vld [vmem:[%s18 + $0xc] sm:$0xf]
  %v2548 = vld [vmem:[%s18 + $0x10] sm:$0xf]
  %v2549 = vld [vmem:[%s18 + $0x14] sm:$0xf]
  %v2550 = vld [vmem:[%s18 + $0x18] sm:$0xf]
  %v2551 = vld [vmem:[%s18 + $0x1c] sm:$0xf]
  %v2552 = vld [vmem:[%s18 + $0x20] sm:$0xf]
  %v2553 = vld [vmem:[%s18 + $0x24] sm:$0xf]
  %v2554 = vld [vmem:[%s18 + $0x28] sm:$0xf]
  %v2555 = vld [vmem:[%s18 + $0x2c] sm:$0xf]
  %v2556 = vld [vmem:[%s18 + $0x30] sm:$0xf]
  %v2557 = vld [vmem:[%s18 + $0x34] sm:$0xf]
  %v2558 = vld [vmem:[%s18 + $0x38] sm:$0xf]
  %v2559 = vld [vmem:[%s18 + $0x3c] sm:$0xf]
  %v2576 = vunpack.c.l.b16 %v2544
  %v2577 = vunpack.c.l.b16 %v2545
  %v2578 = vunpack.c.l.b16 %v2546
  %v2579 = vunpack.c.l.b16 %v2547
  %v2580 = vunpack.c.l.b16 %v2548
  %v2581 = vunpack.c.l.b16 %v2549
  %v2582 = vunpack.c.l.b16 %v2550
  %v2583 = vunpack.c.l.b16 %v2551
  %v2584 = vunpack.c.l.b16 %v2552
  %v2585 = vunpack.c.l.b16 %v2553
  %v2586 = vunpack.c.l.b16 %v2554
  %v2587 = vunpack.c.l.b16 %v2555
  %v2588 = vunpack.c.l.b16 %v2556
  %v2589 = vunpack.c.l.b16 %v2557
  %v2590 = vunpack.c.l.b16 %v2558
  %v2591 = vunpack.c.l.b16 %v2559
  %v2592 = vpack.c.b16 %v2577, %v2576
  %v2593 = vpack.c.b16 %v2579, %v2578
  %v2594 = vpack.c.b16 %v2581, %v2580
  %v2595 = vpack.c.b16 %v2583, %v2582
  %v2596 = vpack.c.b16 %v2585, %v2584
  %v2597 = vpack.c.b16 %v2587, %v2586
  %v2598 = vpack.c.b16 %v2589, %v2588
  %v2599 = vpack.c.b16 %v2591, %v2590
  %2608 = vmatprep.subr.bf16.mxu0 0
  %2609 = vmatpush1.bf16.msra.mxu0 %v2599
  %2610 = vmatprep.subr.bf16.mxu0 0
  %2611 = vmatpush1.bf16.msra.mxu0 %v2598
  %2612 = vmatprep.subr.bf16.mxu0 0
  %2613 = vmatpush1.bf16.msra.mxu0 %v2597
  %2614 = vmatprep.subr.bf16.mxu0 0
  %2615 = vmatpush1.bf16.msra.mxu0 %v2596
  %2616 = vmatprep.subr.bf16.mxu0 0
  %2617 = vmatpush1.bf16.msra.mxu0 %v2595
  %2618 = vmatprep.subr.bf16.mxu0 0
  %2619 = vmatpush1.bf16.msra.mxu0 %v2594
  %2620 = vmatprep.subr.bf16.mxu0 0
  %2621 = vmatpush1.bf16.msra.mxu0 %v2593
  %2622 = vmatprep.subr.bf16.mxu0 0
  %2623 = vmatpush1.bf16.msra.mxu0 %v2592
  %2624 = vmatprep.subr.bf16.mxu0 0
  %2625 = vmatpush2.bf16.msra.mxu0 0
  %2626 = vmatprep.subr.bf16.mxu0 0
  %2627 = vmatpush2.bf16.msra.mxu0 0
  %2628 = vmatprep.subr.bf16.mxu0 0
  %2629 = vmatpush2.bf16.msra.mxu0 0
  %2630 = vmatprep.subr.bf16.mxu0 0
  %2631 = vmatpush2.bf16.msra.mxu0 0
  %2632 = vmatprep.subr.bf16.mxu0 0
  %2633 = vmatpush2.bf16.msra.mxu0 0
  %2634 = vmatprep.subr.bf16.mxu0 0
  %2635 = vmatpush2.bf16.msra.mxu0 0
  %2636 = vmatprep.subr.bf16.mxu0 0
  %2637 = vmatpush2.bf16.msra.mxu0 0
  %2638 = vmatprep.subr.bf16.mxu0 0
  %2639 = vmatpush2.bf16.msra.mxu0 0
  %2640 = vmatprep.mubr.bf16.mxu0 0
  %2641 = vmatmul.mubr.bf16.gmra.mxu0 %v2543
  %v2642 = vpop.f32.mrf.mxu0
  %v2643 = vadd.f32 0.0, %v2642
  %v2644 = vpop.f32.mrf.mxu0
  %v2645 = vpop.f32.mrf.mxu0
  %v2646 = vadd.f32 0.0, %v2645
  %v2647 = vpop.f32.mrf.mxu0
  %2648 = vdwg.mxu0
  %v2649 = vld [vmem:[%s22] sm:$0xff]
  %v2650 = vld [vmem:[%s22 + $0x8] sm:$0xff]
  %2652 = vset.pattern.permute.xlu0 0
  %2653 = vperm.xlu0 %2652, %v2649
  %v2654 = vpop.permute.xlu0 %2653
  %2657 = vset.pattern.permute.xlu0 0
  %2658 = vperm.xlu0 %2657, %v2650
  %v2659 = vpop.permute.xlu0 %2658
  %v2661 = vmul.f32 %v2643, %v2654
  %v2662 = vmul.f32 %v2646, %v2659
  %v2663 = vld [vmem:[%s21] sm:$0xff]
  %v2664 = vld [vmem:[%s21 + $0x8] sm:$0xff]
  %2666 = vset.pattern.permute.xlu0 0
  %2667 = vperm.xlu0 %2666, %v2663
  %v2668 = vpop.permute.xlu0 %2667
  %2671 = vset.pattern.permute.xlu0 0
  %2672 = vperm.xlu0 %2671, %v2664
  %v2673 = vpop.permute.xlu0 %2672
  %v2675 = vadd.f32 %v2661, %v2668
  %v2676 = vadd.f32 %v2662, %v2673
  %v2677 = vmax.f32 %v2675, 0.0
  %v2678 = vmax.f32 %v2676, 0.0
  %v2679 = vpack.c.bf16 %v2678, %v2677
  %v2681 = vunpack.c.l.b16 %v2679
  %v2682 = vunpack.c.h.b16 %v2679
  %v2683 = vpack.c.b16 %v2681, %v2681
  %v2684 = vpack.c.b16 %v2682, %v2682
  %vm2687 = vcmask 257024
  %2688 = vst.msk [vmem:[#allocation2 + $0x4] sm:$0xf] %vm2687, %v2683
  %2689 = vst.msk [vmem:[#allocation2 + $0x1c] sm:$0xf] %vm2687, %v2684
  %v2690 = vshra.s32 %v117, 2
  %v2691 = vand.u32 %v2690, 3
  %v2692 = vand.u32 %v117, 3
  %v2693 = vld [vmem:[#allocation2] sm:$0xff]
  %v2694 = vld [vmem:[#allocation2 + $0x18] sm:$0xff]
  %vm2695 = vcmp.ge.s32.totalorder %v2691, 1
  %vm2696 = vcmp.ge.s32.totalorder %v2692, 1
  %vm2697 = vmand %vm2695, %vm2696
  %vm2698 = vmpackc.low %vm2697, %vm2697
  %v2699 = vsel %vm2698, 65537, 0
  %2700 = vrot.lane.b32.xlu0 %v2699, 123
  %v2701 = vpop.permute.xlu0 %2700
  %v2702 = vrot.slane %v2701, 4
  %vm2703 = vcmask 1006592
  %v2704 = vsel %vm2703, %v2702, %v2701
  %vm2705 = vcmp.ne.s16.totalorder %v2704, 0
  %v2706 = vsel %vm2705, %v2693, 0
  %v2707 = vsel %vm2705, %v2694, 0
  %vm2708 = vmpackc.low %vm2695, %vm2695
  %v2709 = vsel %vm2708, 65537, 0
  %2710 = vrot.lane.b32.xlu0 %v2709, 124
  %v2711 = vpop.permute.xlu0 %2710
  %v2712 = vrot.slane %v2711, 4
  %vm2713 = vcmask 1014784
  %v2714 = vsel %vm2713, %v2712, %v2711
  %vm2715 = vcmp.ne.s16.totalorder %v2714, 0
  %v2716 = vsel %vm2715, %v2693, 0
  %v2717 = vsel %vm2715, %v2694, 0
  %vm2718 = vcmp.lt.s32.totalorder %v2692, 3
  %vm2719 = vmand %vm2695, %vm2718
  %vm2720 = vmpackc.low %vm2719, %vm2719
  %v2721 = vsel %vm2720, 65537, 0
  %2722 = vrot.lane.b32.xlu0 %v2721, 125
  %v2723 = vpop.permute.xlu0 %2722
  %v2724 = vrot.slane %v2723, 4
  %vm2725 = vcmask 1022976
  %v2726 = vsel %vm2725, %v2724, %v2723
  %vm2727 = vcmp.ne.s16.totalorder %v2726, 0
  %v2728 = vsel %vm2727, %v2693, 0
  %v2729 = vsel %vm2727, %v2694, 0
  %vm2730 = vmpackc.low %vm2696, %vm2696
  %v2731 = vsel %vm2730, 65537, 0
  %2732 = vrot.lane.b32.xlu0 %v2731, 127
  %v2733 = vpop.permute.xlu0 %2732
  %v2734 = vrot.slane %v2733, 4
  %v2735 = vsel %vm239, %v2734, %v2733
  %vm2736 = vcmp.ne.s16.totalorder %v2735, 0
  %v2737 = vsel %vm2736, %v2693, 0
  %v2738 = vsel %vm2736, %v2694, 0
  %v2739 = vld [vmem:[#allocation2 + $0x4] sm:$0xf]
  %v2740 = vld [vmem:[#allocation2 + $0x1c] sm:$0xf]
  %vm2741 = vmpackc.low %vm2718, %vm2718
  %v2742 = vsel %vm2741, 65537, 0
  %2743 = vrot.lane.b32.xlu0 %v2742, 1
  %v2744 = vpop.permute.xlu0 %2743
  %vm2745 = vcmp.ne.s16.totalorder %v2744, 0
  %v2746 = vsel %vm2745, %v2739, 0
  %v2747 = vsel %vm2745, %v2740, 0
  %vm2748 = vcmp.lt.s32.totalorder %v2691, 3
  %vm2749 = vmand %vm2748, %vm2696
  %vm2750 = vmpackc.low %vm2749, %vm2749
  %v2751 = vsel %vm2750, 65537, 0
  %2752 = vrot.lane.b32.xlu0 %v2751, 3
  %v2753 = vpop.permute.xlu0 %2752
  %vm2754 = vcmp.ne.s16.totalorder %v2753, 0
  %v2755 = vsel %vm2754, %v2739, 0
  %v2756 = vsel %vm2754, %v2740, 0
  %vm2757 = vmpackc.low %vm2748, %vm2748
  %v2758 = vsel %vm2757, 65537, 0
  %2759 = vrot.lane.b32.xlu0 %v2758, 4
  %v2760 = vpop.permute.xlu0 %2759
  %vm2761 = vcmp.ne.s16.totalorder %v2760, 0
  %v2762 = vsel %vm2761, %v2739, 0
  %v2763 = vsel %vm2761, %v2740, 0
  %vm2764 = vmand %vm2748, %vm2718
  %vm2765 = vmpackc.low %vm2764, %vm2764
  %v2766 = vsel %vm2765, 65537, 0
  %2767 = vrot.lane.b32.xlu0 %v2766, 5
  %v2768 = vpop.permute.xlu0 %2767
  %vm2769 = vcmp.ne.s16.totalorder %v2768, 0
  %v2770 = vsel %vm2769, %v2739, 0
  %v2771 = vsel %vm2769, %v2740, 0
  %v2774 = vunpack.c.l.b16 %v2706
  %v2775 = vunpack.c.h.b16 %v2706
  %v2776 = vunpack.c.l.b16 %v2707
  %v2777 = vunpack.c.h.b16 %v2707
  %v2778 = vpack.c.b16 %v2776, %v2774
  %v2779 = vpack.c.b16 %v2777, %v2775
  %v2782 = vunpack.c.l.b16 %v2716
  %v2783 = vunpack.c.h.b16 %v2716
  %v2784 = vunpack.c.l.b16 %v2717
  %v2785 = vunpack.c.h.b16 %v2717
  %v2786 = vpack.c.b16 %v2784, %v2782
  %v2787 = vpack.c.b16 %v2785, %v2783
  %2788 = vrot.lane.b32.xlu0 %v2786, 127
  %v2789 = vpop.permute.xlu0 %2788
  %2790 = vrot.lane.b32.xlu0 %v2787, 127
  %v2791 = vpop.permute.xlu0 %2790
  %v2792 = vsel %vm239, %v2789, %v2791
  %v2795 = vunpack.c.l.b16 %v2728
  %v2796 = vunpack.c.h.b16 %v2728
  %v2797 = vunpack.c.l.b16 %v2729
  %v2798 = vunpack.c.h.b16 %v2729
  %v2799 = vpack.c.b16 %v2797, %v2795
  %v2800 = vpack.c.b16 %v2798, %v2796
  %2801 = vrot.lane.b32.xlu0 %v2799, 126
  %v2802 = vpop.permute.xlu0 %2801
  %2803 = vrot.lane.b32.xlu0 %v2800, 126
  %v2804 = vpop.permute.xlu0 %2803
  %v2805 = vsel %vm449, %v2802, %v2804
  %v2808 = vunpack.c.l.b16 %v2737
  %v2809 = vunpack.c.h.b16 %v2737
  %v2810 = vunpack.c.l.b16 %v2738
  %v2811 = vunpack.c.h.b16 %v2738
  %v2812 = vpack.c.b16 %v2810, %v2808
  %v2813 = vpack.c.b16 %v2811, %v2809
  %2814 = vrot.lane.b32.xlu0 %v2812, 124
  %v2815 = vpop.permute.xlu0 %2814
  %2816 = vrot.lane.b32.xlu0 %v2813, 124
  %v2817 = vpop.permute.xlu0 %2816
  %v2818 = vsel %vm2713, %v2815, %v2817
  %2819 = vrot.lane.b32.xlu0 %v2679, 123
  %v2820 = vpop.permute.xlu0 %2819
  %v2823 = vunpack.c.l.b16 %v2746
  %v2824 = vunpack.c.l.b16 %v2747
  %v2825 = vpack.c.b16 %v2824, %v2823
  %2826 = vrot.lane.b32.xlu0 %v2825, 122
  %v2827 = vpop.permute.xlu0 %2826
  %v2830 = vunpack.c.l.b16 %v2755
  %v2831 = vunpack.c.l.b16 %v2756
  %v2832 = vpack.c.b16 %v2831, %v2830
  %2833 = vrot.lane.b32.xlu0 %v2832, 120
  %v2834 = vpop.permute.xlu0 %2833
  %v2837 = vunpack.c.l.b16 %v2762
  %v2838 = vunpack.c.l.b16 %v2763
  %v2839 = vpack.c.b16 %v2838, %v2837
  %2840 = vrot.lane.b32.xlu0 %v2839, 119
  %v2841 = vpop.permute.xlu0 %2840
  %v2844 = vunpack.c.l.b16 %v2770
  %v2845 = vunpack.c.l.b16 %v2771
  %v2846 = vpack.c.b16 %v2845, %v2844
  %2847 = vrot.lane.b32.xlu0 %v2846, 118
  %v2848 = vpop.permute.xlu0 %2847
  %v2849 = vld [vmem:[%s23] sm:$0xff]
  %v2851 = vunpack.c.l.b16 %v2849
  %v2852 = vunpack.c.h.b16 %v2849
  %v2853 = vpack.c.b16 %v2851, %v2851
  %v2854 = vpack.c.b16 %v2852, %v2852
  %2856 = vrot.lane.b32.xlu0 %v2778, 5
  %v2857 = vpop.permute.xlu0 %2856
  %2858 = vrot.lane.b32.xlu0 %v2779, 5
  %v2859 = vpop.permute.xlu0 %2858
  %2860 = vrot.lane.b32.xlu0 %v2792, 5
  %v2861 = vpop.permute.xlu0 %2860
  %2862 = vrot.lane.b32.xlu0 %v2791, 5
  %v2863 = vpop.permute.xlu0 %2862
  %2864 = vrot.lane.b32.xlu0 %v2805, 5
  %v2865 = vpop.permute.xlu0 %2864
  %2866 = vrot.lane.b32.xlu0 %v2804, 5
  %v2867 = vpop.permute.xlu0 %2866
  %2868 = vrot.lane.b32.xlu0 %v2818, 5
  %v2869 = vpop.permute.xlu0 %2868
  %2870 = vrot.lane.b32.xlu0 %v2817, 5
  %v2871 = vpop.permute.xlu0 %2870
  %2872 = vrot.lane.b32.xlu0 %v2820, 5
  %v2873 = vpop.permute.xlu0 %2872
  %2874 = vrot.lane.b32.xlu0 %v2827, 5
  %v2875 = vpop.permute.xlu0 %2874
  %2876 = vrot.lane.b32.xlu0 %v2834, 5
  %v2877 = vpop.permute.xlu0 %2876
  %2878 = vrot.lane.b32.xlu0 %v2841, 5
  %v2879 = vpop.permute.xlu0 %2878
  %2880 = vrot.lane.b32.xlu0 %v2848, 5
  %v2881 = vpop.permute.xlu0 %2880
  %vm2882 = vcmask 39936
  %v2883 = vsel %vm2882, %v2857, %v2859
  %v2884 = vsel %vm2882, %v2861, %v2863
  %v2885 = vsel %vm2882, %v2865, %v2867
  %v2886 = vsel %vm2882, %v2869, %v2871
  %v2897 = vsel %vm817, %v2854, 0
  %2899 = vmatprep.subr.bf16.mxu0 0
  %2900 = vmatpush1.bf16.msra.mxu0 %v2879
  %2901 = vmatprep.subr.bf16.mxu0 0
  %2902 = vmatpush1.bf16.msra.mxu0 %v2877
  %2903 = vmatprep.subr.bf16.mxu0 0
  %2904 = vmatpush1.bf16.msra.mxu0 %v2875
  %2905 = vmatprep.subr.bf16.mxu0 0
  %2906 = vmatpush1.bf16.msra.mxu0 %v2873
  %2907 = vmatprep.subr.bf16.mxu0 0
  %2908 = vmatpush1.bf16.msra.mxu0 %v2886
  %2909 = vmatprep.subr.bf16.mxu0 0
  %2910 = vmatpush1.bf16.msra.mxu0 %v2885
  %2911 = vmatprep.subr.bf16.mxu0 0
  %2912 = vmatpush1.bf16.msra.mxu0 %v2884
  %2913 = vmatprep.subr.bf16.mxu0 0
  %2914 = vmatpush1.bf16.msra.mxu0 %v2883
  %2915 = vmatprep.subr.bf16.mxu0 0
  %2916 = vmatpush2.bf16.msra.mxu0 0
  %2917 = vmatprep.subr.bf16.mxu0 0
  %2918 = vmatpush2.bf16.msra.mxu0 0
  %2919 = vmatprep.subr.bf16.mxu0 0
  %2920 = vmatpush2.bf16.msra.mxu0 0
  %2921 = vmatprep.subr.bf16.mxu0 0
  %2922 = vmatpush2.bf16.msra.mxu0 0
  %2923 = vmatprep.subr.bf16.mxu0 0
  %2924 = vmatpush2.bf16.msra.mxu0 0
  %2925 = vmatprep.subr.bf16.mxu0 0
  %2926 = vmatpush2.bf16.msra.mxu0 0
  %2927 = vmatprep.subr.bf16.mxu0 0
  %2928 = vmatpush2.bf16.msra.mxu0 0
  %2929 = vmatprep.subr.bf16.mxu0 0
  %2930 = vmatpush2.bf16.msra.mxu0 %v2881
  %2931 = vmatprep.mubr.bf16.mxu0 %v2897
  %2932 = vmatmul.mubr.bf16.gmra.mxu0 %v2853
  %v2933 = vpop.f32.mrf.mxu0
  %v2934 = vadd.f32 0.0, %v2933
  %v2935 = vpop.f32.mrf.mxu0
  %v2936 = vpop.f32.mrf.mxu0
  %v2937 = vpop.f32.mrf.mxu0
  %2938 = vdwg.mxu0
  %v2939 = vld [vmem:[%s2] sm:$0xff]
  %v2940 = vld [vmem:[%s2 + $0x8] sm:$0xff]
  %v2941 = vld [vmem:[%s2 + $0x10] sm:$0xff]
  %2943 = vset.pattern.permute.xlu0 0
  %2944 = vperm.xlu0 %2943, %v2939
  %v2945 = vpop.permute.xlu0 %2944
  %2948 = vset.pattern.permute.xlu0 0
  %2949 = vperm.xlu0 %2948, %v2940
  %v2950 = vpop.permute.xlu0 %2949
  %2953 = vset.pattern.permute.xlu0 0
  %2954 = vperm.xlu0 %2953, %v2941
  %v2955 = vpop.permute.xlu0 %2954
  %v2957 = vmul.f32 %v2643, %v2945
  %v2958 = vmul.f32 %v2646, %v2950
  %v2959 = vmul.f32 %v2934, %v2955
  %v2960 = vld [vmem:[%s1] sm:$0xff]
  %v2961 = vld [vmem:[%s1 + $0x8] sm:$0xff]
  %v2962 = vld [vmem:[%s1 + $0x10] sm:$0xff]
  %2964 = vset.pattern.permute.xlu0 0
  %2965 = vperm.xlu0 %2964, %v2960
  %v2966 = vpop.permute.xlu0 %2965
  %2969 = vset.pattern.permute.xlu0 0
  %2970 = vperm.xlu0 %2969, %v2961
  %v2971 = vpop.permute.xlu0 %2970
  %2974 = vset.pattern.permute.xlu0 0
  %2975 = vperm.xlu0 %2974, %v2962
  %v2976 = vpop.permute.xlu0 %2975
  %v2978 = vadd.f32 %v2957, %v2966
  %v2979 = vadd.f32 %v2958, %v2971
  %v2980 = vadd.f32 %v2959, %v2976
  %v2981 = vmax.f32 %v2978, 0.0
  %v2982 = vmax.f32 %v2979, 0.0
  %v2983 = vmax.f32 %v2980, 0.0
  %v2984 = vpack.c.bf16 %v2982, %v2981
  %v2985 = vpack.c.bf16 %v2983, %v2983
  %v2986 = vld [vmem:[%s6] sm:$0xf]
  %v2987 = vld [vmem:[%s6 + $0x4] sm:$0xf]
  %v2988 = vld [vmem:[%s6 + $0x8] sm:$0xf]
  %v2989 = vld [vmem:[%s6 + $0xc] sm:$0xf]
  %v2994 = vunpack.c.l.b16 %v2986
  %v2995 = vunpack.c.l.b16 %v2987
  %v2996 = vunpack.c.l.b16 %v2988
  %v2997 = vunpack.c.l.b16 %v2989
  %v2998 = vpack.c.b16 %v2995, %v2994
  %v2999 = vpack.c.b16 %v2997, %v2996
  %vm3002 = vcmask 261120
  %v3004 = vsel %vm3002, %v2984, 0
  %v3007 = vsel %vm3002, %v2985, 0
  %3009 = vmatprep.subr.bf16.mxu0 0
  %3010 = vmatpush1.bf16.msra.mxu0 0
  %3011 = vmatprep.subr.bf16.mxu0 0
  %3012 = vmatpush1.bf16.msra.mxu0 0
  %3013 = vmatprep.subr.bf16.mxu0 0
  %3014 = vmatpush1.bf16.msra.mxu0 0
  %3015 = vmatprep.subr.bf16.mxu0 0
  %3016 = vmatpush1.bf16.msra.mxu0 0
  %3017 = vmatprep.subr.bf16.mxu0 0
  %3018 = vmatpush1.bf16.msra.mxu0 0
  %3019 = vmatprep.subr.bf16.mxu0 0
  %3020 = vmatpush1.bf16.msra.mxu0 0
  %3021 = vmatprep.subr.bf16.mxu0 0
  %3022 = vmatpush1.bf16.msra.mxu0 %v2999
  %3023 = vmatprep.subr.bf16.mxu0 0
  %3024 = vmatpush1.bf16.msra.mxu0 %v2998
  %3025 = vmatprep.subr.bf16.mxu0 0
  %3026 = vmatpush2.bf16.msra.mxu0 0
  %3027 = vmatprep.subr.bf16.mxu0 0
  %3028 = vmatpush2.bf16.msra.mxu0 0
  %3029 = vmatprep.subr.bf16.mxu0 0
  %3030 = vmatpush2.bf16.msra.mxu0 0
  %3031 = vmatprep.subr.bf16.mxu0 0
  %3032 = vmatpush2.bf16.msra.mxu0 0
  %3033 = vmatprep.subr.bf16.mxu0 0
  %3034 = vmatpush2.bf16.msra.mxu0 0
  %3035 = vmatprep.subr.bf16.mxu0 0
  %3036 = vmatpush2.bf16.msra.mxu0 0
  %3037 = vmatprep.subr.bf16.mxu0 0
  %3038 = vmatpush2.bf16.msra.mxu0 0
  %3039 = vmatprep.subr.bf16.mxu0 0
  %3040 = vmatpush2.bf16.msra.mxu0 0
  %3041 = vmatprep.mubr.bf16.mxu0 0
  %3042 = vmatmul.mubr.bf16.gmra.mxu0 %v3004
  %v3043 = vpop.f32.mrf.mxu0
  %v3044 = vadd.f32 0.0, %v3043
  %v3045 = vpop.f32.mrf.mxu0
  %v3046 = vpop.f32.mrf.mxu0
  %v3047 = vadd.f32 0.0, %v3046
  %v3048 = vpop.f32.mrf.mxu0
  %3049 = vmatprep.mubr.bf16.mxu0 0
  %3050 = vmatmul.mubr.bf16.gmra.mxu0 %v3007
  %v3051 = vpop.f32.mrf.mxu0
  %v3052 = vadd.f32 0.0, %v3051
  %v3053 = vpop.f32.mrf.mxu0
  %v3054 = vpop.f32.mrf.mxu0
  %v3055 = vpop.f32.mrf.mxu0
  %3056 = vdwg.mxu0
  %v3057 = vld [vmem:[%s5] sm:$0xff]
  %v3058 = vld [vmem:[%s5 + $0x8] sm:$0x3]
  %v3059 = vld [vmem:[%s4] sm:$0xff]
  %v3060 = vld [vmem:[%s4 + $0x8] sm:$0x3]
  %3062 = vset.pattern.permute.xlu0 0
  %3063 = vperm.xlu0 %3062, %v3059
  %v3064 = vpop.permute.xlu0 %3063
  %3067 = vset.pattern.permute.xlu0 0
  %3068 = vperm.xlu0 %3067, %v3060
  %v3069 = vpop.permute.xlu0 %3068
  %v3072 = vsel %vm1661, %v3057, 0
  %v3075 = vsel %vm1661, %v3058, 0
  %3077 = vmatprep.subr.mxu0 0.0
  %3078 = vmatpush1.msra.mxu0 0.0
  %3079 = vmatprep.subr.mxu0 0.0
  %3080 = vmatpush1.msra.mxu0 0.0
  %3081 = vmatprep.subr.mxu0 0.0
  %3082 = vmatpush1.msra.mxu0 0.0
  %3083 = vmatprep.subr.mxu0 0.0
  %3084 = vmatpush1.msra.mxu0 0.0
  %3085 = vmatprep.subr.mxu0 0.0
  %3086 = vmatpush1.msra.mxu0 0.0
  %3087 = vmatprep.subr.mxu0 0.0
  %3088 = vmatpush1.msra.mxu0 0.0
  %3089 = vmatprep.subr.mxu0 0.0
  %3090 = vmatpush1.msra.mxu0 0.0
  %3091 = vmatprep.subr.mxu0 0.0
  %3092 = vmatpush1.msra.mxu0 0.0
  %3093 = vmatprep.subr.mxu0 0.0
  %3094 = vmatpush1.msra.mxu0 0.0
  %3095 = vmatprep.subr.mxu0 0.0
  %3096 = vmatpush1.msra.mxu0 0.0
  %3097 = vmatprep.subr.mxu0 0.0
  %3098 = vmatpush1.msra.mxu0 0.0
  %3099 = vmatprep.subr.mxu0 0.0
  %3100 = vmatpush1.msra.mxu0 0.0
  %3101 = vmatprep.subr.mxu0 0.0
  %3102 = vmatpush1.msra.mxu0 0.0
  %3103 = vmatprep.subr.mxu0 0.0
  %3104 = vmatpush1.msra.mxu0 %v3052
  %3105 = vmatprep.subr.mxu0 0.0
  %3106 = vmatpush1.msra.mxu0 %v3047
  %3107 = vmatprep.subr.mxu0 0.0
  %3108 = vmatpush1.msra.mxu0 %v3044
  %3109 = vmatprep.subr.mxu0 0.0
  %3110 = vmatpush2.msra.mxu0 0.0
  %3111 = vmatprep.subr.mxu0 0.0
  %3112 = vmatpush2.msra.mxu0 0.0
  %3113 = vmatprep.subr.mxu0 0.0
  %3114 = vmatpush2.msra.mxu0 0.0
  %3115 = vmatprep.subr.mxu0 0.0
  %3116 = vmatpush2.msra.mxu0 0.0
  %3117 = vmatprep.subr.mxu0 0.0
  %3118 = vmatpush2.msra.mxu0 0.0
  %3119 = vmatprep.subr.mxu0 0.0
  %3120 = vmatpush2.msra.mxu0 0.0
  %3121 = vmatprep.subr.mxu0 0.0
  %3122 = vmatpush2.msra.mxu0 0.0
  %3123 = vmatprep.subr.mxu0 0.0
  %3124 = vmatpush2.msra.mxu0 0.0
  %3125 = vmatprep.subr.mxu0 0.0
  %3126 = vmatpush2.msra.mxu0 0.0
  %3127 = vmatprep.subr.mxu0 0.0
  %3128 = vmatpush2.msra.mxu0 0.0
  %3129 = vmatprep.subr.mxu0 0.0
  %3130 = vmatpush2.msra.mxu0 0.0
  %3131 = vmatprep.subr.mxu0 0.0
  %3132 = vmatpush2.msra.mxu0 0.0
  %3133 = vmatprep.subr.mxu0 0.0
  %3134 = vmatpush2.msra.mxu0 0.0
  %3135 = vmatprep.subr.mxu0 0.0
  %3136 = vmatpush2.msra.mxu0 0.0
  %3137 = vmatprep.subr.mxu0 0.0
  %3138 = vmatpush2.msra.mxu0 0.0
  %3139 = vmatprep.subr.mxu0 0.0
  %3140 = vmatpush2.msra.mxu0 0.0
  %3141 = vmatprep.mubr.f32.mxu0 0.0
  %3142 = vmatmul.mubr.f32.gmra.mxu0 %v3072
  %v3143 = vpop.f32.mrf.mxu0
  %v3144 = vadd.f32 %v3064, %v3143
  %v3145 = vpop.f32.mrf.mxu0
  %3146 = vmatprep.mubr.f32.mxu0 0.0
  %3147 = vmatmul.mubr.f32.gmra.mxu0 %v3075
  %v3148 = vpop.f32.mrf.mxu0
  %v3149 = vadd.f32 %v3069, %v3148
  %v3150 = vpop.f32.mrf.mxu0
  %3151 = vdwg.mxu0
  %vm3152 = vcmask 15360
  %3153 = vst.msk [vmem:[%s24] sm:$0xff] %vm3152, %v3144
  %vm3154 = vcmask 9216
  %3155 = vst.msk [vmem:[%s24 + $0x8] sm:$0x3] %vm3154, %v3149
  // Predicated region
  $region98: #{forward.1} parent=0 // pred_check
    _
  $region99: #{forward.1} parent=0 // pred_check_branch
    %3157 = sbr.rel (0) target = $region101
  $region100: #{forward.1} parent=0 // pred_region
    _
  $region101: #{forward.1} parent=0 // pred_fallthru
    _
  // Predicated region
  $region102: #{forward.1} parent=0 // pred_check
    _
  $region103: #{forward.1} parent=0 // pred_check_branch
    %3159 = sbr.rel (0) target = $region105
  $region104: #{forward.1} parent=0 // pred_region
    _
  $region105: #{forward.1} parent=0 // pred_fallthru
    _

</llo_original>
